<compile_context>
chip_gen: v7x
topology: tpu7x:2x2x1
jax: 0.10.0
libtpu: 0.0.40
codegen_flags: <defaults>
</compile_context>

<pallas_src>
import functools
import math

import jax
import jax.numpy as jnp
import numpy as np
from jax.experimental import pallas as pl
from jax.experimental.pallas import tpu as pltpu

# ----------------------- small synthetic config ------------------------------
B = 2            # image batch
CIN = 3          # image channels
IMG_HW = 16      # image height/width
PATCH = 8        # conv1 kernel == stride (patchify)
W_IMG = 128      # visual transformer width (stands in for 768; lane-aligned)
W_TXT = 128      # text transformer width   (stands in for 512; lane-aligned)
D_OUT = 128      # shared output dim        (stands in for 512; lane-aligned)
L_IMG = 2        # visual transformer layers
L_TXT = 2        # text transformer layers
H_IMG = 2        # attention heads (image) -> head_dim 64 (real CLIP head dim)
H_TXT = 2        # attention heads (text)
SEQ = 8          # text context length
VOCAB = 64       # token embedding vocab
N_CLS = 3        # number of classes
N_PROMPT = 1     # one template per class (dataset != ImageNet)
BETA = 0.9       # self.beta in CustomCLIP
EPS_NORM = 1e-12
PADC = 128                      # lane-dense padded class width for the logits store
VMEM_LIMIT = 48 * 1024 * 1024   # explicit scoped-VMEM limit (< v7x's 64 MiB physical)

BLOCK_FIELDS = ('ln1_g', 'ln1_b', 'w_q', 'b_q', 'w_k', 'b_k', 'w_v', 'b_v',
                'w_o', 'b_o', 'ln2_g', 'ln2_b', 'w_fc', 'b_fc', 'w_proj', 'b_proj')


# --------------------------- in-kernel helpers --------------------------------
def _ln(x, g, b):
    mu = jnp.mean(x, axis=-1, keepdims=True)
    xc = x - mu
    var = jnp.mean(xc * xc, axis=-1, keepdims=True)
    return xc * jax.lax.rsqrt(var + 1e-5) * g + b


def _softmax_last(s):
    # approx reciprocal (EUP slot): probabilities are ~1ulp off exact normalization,
    # acceptable for inference (flagged in review).
    m = jnp.max(s, axis=-1, keepdims=True)
    e = jnp.exp(s - m)
    return e * pl.reciprocal(jnp.sum(e, axis=-1, keepdims=True), approx=True)


def _resblock_body(x, Bb, S, n_heads, causal_mask,
                   ln1_g, ln1_b, w_q, b_q, w_k, b_k, w_v, b_v, w_o, b_o,
                   ln2_g, ln2_b, w_fc, b_fc, w_proj, b_proj):
    """CLIP ResidualAttentionBlock on a VMEM-resident activation.

    x: (Bb*S, W) f32, rows batch-major (b, s).
    Weight refs: per-head slabs w_q/w_k/w_v (H, W, hd) bf16, w_o (H, hd, W) bf16 so
    the kernel never lane-slices activations at sub-128 offsets; one layer's weights
    are streamed in per grid step."""
    SB, W = x.shape
    hd = W // n_heads
    inv = 1.0 / math.sqrt(hd)

    # --- multi-head self-attention ---
    h = _ln(x, ln1_g[...], ln1_b[...]).astype(jnp.bfloat16)
    attn = None
    for hh in range(n_heads):                                   # static unroll (H small)
        q = (jnp.dot(h, w_q[hh], preferred_element_type=jnp.float32)
             + b_q[hh]).reshape(Bb, S, hd)
        k = (jnp.dot(h, w_k[hh], preferred_element_type=jnp.float32)
             + b_k[hh]).reshape(Bb, S, hd)
        v = (jnp.dot(h, w_v[hh], preferred_element_type=jnp.float32)
             + b_v[hh]).reshape(Bb, S, hd)
        s = jnp.einsum('bqd,bkd->bqk', q.astype(jnp.bfloat16), k.astype(jnp.bfloat16),
                       preferred_element_type=jnp.float32) * inv         # (Bb,S,S) f32
        if causal_mask is not None:
            s = jnp.where(causal_mask[None, :, :], s, -1e30)
        p = _softmax_last(s)
        o = jnp.einsum('bqk,bkd->bqd', p.astype(jnp.bfloat16), v.astype(jnp.bfloat16),
                       preferred_element_type=jnp.float32).reshape(SB, hd)
        # concat(heads) @ W_out  ==  sum_h  head_h @ W_out[h]
        contrib = jnp.dot(o.astype(jnp.bfloat16), w_o[hh],
                          preferred_element_type=jnp.float32)
        attn = contrib if attn is None else attn + contrib
    x = x + attn + b_o[...]

    # --- MLP (QuickGELU, f32 on VPU/EUP) ---
    h2 = _ln(x, ln2_g[...], ln2_b[...])
    f = jnp.dot(h2.astype(jnp.bfloat16), w_fc[...],
                preferred_element_type=jnp.float32) + b_fc[...]
    f = f * jax.nn.sigmoid(1.702 * f)
    x = x + jnp.dot(f.astype(jnp.bfloat16), w_proj[...],
                    preferred_element_type=jnp.float32) + b_proj[...]
    return x


# ----------------------------- fused kernels ----------------------------------
def _image_encoder_kernel(BB, S, n_heads,
                          tok_ref, conv_w_ref, poscls_ref, ln_pre_g_ref, ln_pre_b_ref,
                          ln1_g_ref, ln1_b_ref, w_q_ref, b_q_ref, w_k_ref, b_k_ref,
                          w_v_ref, b_v_ref, w_o_ref, b_o_ref, ln2_g_ref, ln2_b_ref,
                          w_fc_ref, b_fc_ref, w_proj_ref, b_proj_ref,
                          ln_post_g_ref, ln_post_b_ref,
                          o_ref, x_ref):
    """ImageEncoder.forward, one resblock per grid step (weights streamed per layer).
    Writes ln_post(CLS) of this layer batch-major into output columns [l*W:(l+1)*W]."""
    W = poscls_ref.shape[-1]
    l = pl.program_id(1)

    @pl.when(l == 0)
    def _():
        # conv1 (kernel == stride, no bias) as one bf16 matmul; CLS token enters as a
        # zero patch row plus (class_embedding + pos[0]) folded into poscls.
        e = jnp.dot(tok_ref[...].astype(jnp.bfloat16), conv_w_ref[...],
                    preferred_element_type=jnp.float32)
        e = (e.reshape(BB, S, W) + poscls_ref[...][None, :, :]).reshape(BB * S, W)
        x_ref[...] = _ln(e, ln_pre_g_ref[...], ln_pre_b_ref[...])

    x = _resblock_body(x_ref[...], BB, S, n_heads, None,
                       ln1_g_ref, ln1_b_ref, w_q_ref, b_q_ref, w_k_ref, b_k_ref,
                       w_v_ref, b_v_ref, w_o_ref, b_o_ref, ln2_g_ref, ln2_b_ref,
                       w_fc_ref, b_fc_ref, w_proj_ref, b_proj_ref)
    x_ref[...] = x

    cls = x.reshape(BB, S, W)[:, 0, :]                           # (BB, W)
    o_ref[...] = _ln(cls, ln_post_g_ref[...], ln_post_b_ref[...])


def _text_encoder_kernel(MB, S, n_heads,
                         eot_ref,
                         x0_ref,
                         ln1_g_ref, ln1_b_ref, w_q_ref, b_q_ref, w_k_ref, b_k_ref,
                         w_v_ref, b_v_ref, w_o_ref, b_o_ref, ln2_g_ref, ln2_b_ref,
                         w_fc_ref, b_fc_ref, w_proj_ref, b_proj_ref,
                         ln_final_g_ref, ln_final_b_ref,
                         o_ref, x_ref):
    """TextEncoder.forward (all classes*prompts batched), one causal resblock per grid
    step; gathers EOT rows in-kernel (indices prefetched to SMEM) and writes only
    ln_final(EOT) of this layer -> output columns [l*W:(l+1)*W]."""
    l = pl.program_id(1)

    @pl.when(l == 0)
    def _():
        x_ref[...] = x0_ref[...]

    # causal mask built once per invocation (the layer loop is now the grid axis)
    row = jax.lax.broadcasted_iota(jnp.int32, (S, S), 0)
    col = jax.lax.broadcasted_iota(jnp.int32, (S, S), 1)
    causal = col <= row

    x = _resblock_body(x_ref[...], MB, S, n_heads, causal,
                       ln1_g_ref, ln1_b_ref, w_q_ref, b_q_ref, w_k_ref, b_k_ref,
                       w_v_ref, b_v_ref, w_o_ref, b_o_ref, ln2_g_ref, ln2_b_ref,
                       w_fc_ref, b_fc_ref, w_proj_ref, b_proj_ref)
    x_ref[...] = x

    # EOT gather in-kernel: dynamic row loads from the VMEM scratch, LN only on the
    # gathered rows (S x less writeback than emitting all tokens).
    rows = [x_ref[pl.ds(m * S + eot_ref[m], 1), :] for m in range(MB)]
    eot_tokens = jnp.concatenate(rows, axis=0)                   # (MB, W)
    o_ref[...] = _ln(eot_tokens, ln_final_g_ref[...], ln_final_b_ref[...])


def _head_kernel(Bb, Lv, C, P, Lt, padc,
                 xi_ref, xt_ref,
                 wq_i_ref, wk_i_ref, wv_i_ref,
                 wk_c_ref, wv_c_ref,
                 wq_s_ref, wk_s_ref, wv_s_ref,
                 scale_ref, o_ref):
    """Fused CustomCLIP head, vectorized over classes/prompts.  All projections and
    attention-pooling reductions are MXU matmuls; logits stored as a lane-dense
    (Bb, 128) padded slab."""
    D = wq_i_ref.shape[1]
    inv = 1.0 / math.sqrt(D)
    M = C * P

    # ---- image self-attention pooling over layers (xi rows batch-major (b, l)) ----
    xi = xi_ref[...]                                             # (Bb*Lv, W_IMG) f32
    Wi = xi.shape[1]
    xi_bf = xi.astype(jnp.bfloat16)
    Ki = jnp.dot(xi_bf, wk_i_ref[...],
                 preferred_element_type=jnp.float32).reshape(Bb, Lv, D)
    Vi = jnp.dot(xi_bf, wv_i_ref[...],
                 preferred_element_type=jnp.float32).reshape(Bb, Lv, D)
    x_last = xi.reshape(Bb, Lv, Wi)[:, Lv - 1, :]                # last-layer CLS feats
    Q = jnp.dot(x_last.astype(jnp.bfloat16), wq_i_ref[...],
                preferred_element_type=jnp.float32)              # (Bb, D)

    s_img = jnp.einsum('bqd,bkd->bqk', Q[:, None, :], Ki,
                       preferred_element_type=jnp.float32) * inv  # (Bb,1,Lv)
    p_img = _softmax_last(s_img)
    imf = jnp.einsum('bqk,bkd->bqd', p_img, Vi,
                     preferred_element_type=jnp.float32)[:, 0, :]  # (Bb, D)
    imn = imf * jax.lax.rsqrt(jnp.sum(imf * imf, axis=-1, keepdims=True) + EPS_NORM)

    # ---- text projections (xt rows (c*P+p, l) class-major, layer inner) ----
    xt = xt_ref[...]                                             # (M*Lt, W_TXT)
    Wt = xt.shape[1]
    xt_bf = xt.astype(jnp.bfloat16)
    Kc_flat = jnp.dot(xt_bf, wk_c_ref[...], preferred_element_type=jnp.float32)
    Vc = jnp.dot(xt_bf, wv_c_ref[...],
                 preferred_element_type=jnp.float32).reshape(M, Lt, D)
    Ks = jnp.dot(xt_bf, wk_s_ref[...],
                 preferred_element_type=jnp.float32).reshape(M, Lt, D)
    Vs = jnp.dot(xt_bf, wv_s_ref[...],
                 preferred_element_type=jnp.float32).reshape(M, Lt, D)
    xt_last = xt.reshape(M, Lt, Wt)[:, Lt - 1, :]                # only last-layer rows
    Qs = jnp.dot(xt_last.astype(jnp.bfloat16), wq_s_ref[...],
                 preferred_element_type=jnp.float32)             # (M, D)

    # ---- cross attention: image queries vs per-class per-layer text keys ----
    s_cross = jax.lax.dot_general(Q, Kc_flat, (((1,), (1,)), ((), ())),
                                  preferred_element_type=jnp.float32)  # (Bb, M*Lt)
    s_cross = s_cross.reshape(Bb, M, Lt) * inv
    p_cross = _softmax_last(s_cross)                             # softmax over layers
    p_cm = jnp.transpose(p_cross, (1, 0, 2))                     # (M, Bb, Lt)
    vcr = jnp.einsum('xqk,xkd->xqd', p_cm, Vc,
                     preferred_element_type=jnp.float32)          # (M, Bb, D)
    vcr = jnp.transpose(vcr, (1, 0, 2))                          # (Bb, M, D)
    mc = jnp.mean(vcr.reshape(Bb, C, P, D), axis=2)              # mean over prompts
    mcn = mc * jax.lax.rsqrt(jnp.sum(mc * mc, axis=-1, keepdims=True) + EPS_NORM)
    logits_cross = jnp.einsum('bqd,bkd->bqk', imn[:, None, :], mcn,
                              preferred_element_type=jnp.float32)[:, 0, :]  # (Bb, C)

    # ---- text self attention over layers ----
    ss = jnp.einsum('bqd,bkd->bqk', Qs[:, None, :], Ks,
                    preferred_element_type=jnp.float32) * inv     # (M,1,Lt)
    ps = _softmax_last(ss)
    vsr = jnp.einsum('bqk,bkd->bqd', ps, Vs,
                     preferred_element_type=jnp.float32)[:, 0, :]  # (M, D)
    msv = jnp.mean(vsr.reshape(C, P, D), axis=1)                 # (C, D)
    msn = msv * jax.lax.rsqrt(jnp.sum(msv * msv, axis=-1, keepdims=True) + EPS_NORM)
    logits_self = jax.lax.dot_general(imn, msn, (((1,), (1,)), ((), ())),
                                      preferred_element_type=jnp.float32)  # (Bb, C)

    scale = scale_ref[0, 0]                                      # logit_scale.exp()
    logits = scale * (BETA * logits_cross + (1.0 - BETA) * logits_self)    # (Bb, C)

    # lane-dense padded store: scatter the C real columns into a 128-wide slab via a
    # 0/1 selection matmul (exact), sliced back to C outside the kernel.
    cpos = jax.lax.broadcasted_iota(jnp.int32, (C, padc), 0)
    lane = jax.lax.broadcasted_iota(jnp.int32, (C, padc), 1)
    sel = (cpos == lane).astype(jnp.float32)
    o_ref[...] = jnp.dot(logits, sel, preferred_element_type=jnp.float32)


# ------------------------------ spec / arg helpers ------------------------------
def _block_args(blocks):
    return tuple(blocks[k] for k in BLOCK_FIELDS)


def _stacked_block_specs(W, n_heads, l3, l4):
    """BlockSpecs for the stacked (L, ...) per-layer weights: one layer per grid step
    (leading layer dim squeezed via None), default double-buffered streaming."""
    hd = W // n_heads
    specs = dict(
        ln1_g=pl.BlockSpec((None, 1, W), l3),
        ln1_b=pl.BlockSpec((None, 1, W), l3),
        w_q=pl.BlockSpec((None, n_heads, W, hd), l4),
        b_q=pl.BlockSpec((None, n_heads, 1, hd), l4),
        w_k=pl.BlockSpec((None, n_heads, W, hd), l4),
        b_k=pl.BlockSpec((None, n_heads, 1, hd), l4),
        w_v=pl.BlockSpec((None, n_heads, W, hd), l4),
        b_v=pl.BlockSpec((None, n_heads, 1, hd), l4),
        w_o=pl.BlockSpec((None, n_heads, hd, W), l4),
        b_o=pl.BlockSpec((None, 1, W), l3),
        ln2_g=pl.BlockSpec((None, 1, W), l3),
        ln2_b=pl.BlockSpec((None, 1, W), l3),
        w_fc=pl.BlockSpec((None, W, 4 * W), l3),
        b_fc=pl.BlockSpec((None, 1, 4 * W), l3),
        w_proj=pl.BlockSpec((None, 4 * W, W), l3),
        b_proj=pl.BlockSpec((None, 1, W), l3),
    )
    return [specs[k] for k in BLOCK_FIELDS]


# ------------------------------ thin wrappers ----------------------------------
def image_encoder_forward(image, prm):
    """ImageEncoder.forward in ONE gridded pallas_call.
    Returns (B, L_IMG*W_IMG): per-layer ln_post(CLS), batch-major (b, l)."""
    Bb, Cin, Hh, Ww = image.shape
    gh, gw = Hh // PATCH, Ww // PATCH
    G = gh * gw
    S = G + 1
    cpp = Cin * PATCH * PATCH
    # patch extraction is pure data reorganization (glue); CLS slot is a zero row.
    patches = image.reshape(Bb, Cin, gh, PATCH, gw, PATCH)
    patches = patches.transpose(0, 2, 4, 1, 3, 5).reshape(Bb, G, cpp)
    tok = jnp.concatenate([jnp.zeros((Bb, 1, cpp), jnp.float32), patches],
                          axis=1).reshape(Bb * S, cpp)
    pos_cls = prm['pos_emb'].at[0, :].add(prm['class_emb'])      # pos + class_embedding

    def l3(bb, l): return (l, 0, 0)
    def l4(bb, l): return (l, 0, 0, 0)
    def c2(bb, l): return (0, 0)

    kernel = functools.partial(_image_encoder_kernel, Bb, S, H_IMG)
    grid_spec = pltpu.PrefetchScalarGridSpec(
        num_scalar_prefetch=0,
        grid=(1, L_IMG),                 # ("parallel" batch-blocks, "arbitrary" layers)
        in_specs=(
            [pl.BlockSpec((Bb * S, cpp), lambda bb, l: (bb, 0)),
             pl.BlockSpec((cpp, W_IMG), c2),
             pl.BlockSpec((S, W_IMG), c2),
             pl.BlockSpec((1, W_IMG), c2),
             pl.BlockSpec((1, W_IMG), c2)]
            + _stacked_block_specs(W_IMG, H_IMG, l3, l4)
            + [pl.BlockSpec((1, W_IMG), c2),
               pl.BlockSpec((1, W_IMG), c2)]),
        out_specs=pl.BlockSpec((Bb, W_IMG), lambda bb, l: (bb, l)),
        scratch_shapes=[pltpu.VMEM((Bb * S, W_IMG), jnp.float32)],
    )
    return pl.pallas_call(
        kernel,
        out_shape=jax.ShapeDtypeStruct((Bb, L_IMG * W_IMG), jnp.float32),
        grid_spec=grid_spec,
        compiler_params=pltpu.CompilerParams(
            dimension_semantics=("parallel", "arbitrary"),
            vmem_limit_bytes=VMEM_LIMIT),
    )(tok, prm['conv_w_t'], pos_cls, prm['ln_pre_g'], prm['ln_pre_b'],
      *_block_args(prm['blocks']),
      prm['ln_post_g'], prm['ln_post_b'])


def precompute_text_features(tokens, prm):
    """CustomCLIP.__init__ text-feature cache in ONE gridded pallas_call.
    Returns (C, P, L_TXT, W_TXT): ln_final'd EOT features of every text layer."""
    C, P, S = tokens.shape
    M = C * P
    flat_tok = tokens.reshape(M, S)
    # token-embedding gather + positional add are data-dependent glue
    x0 = (prm['tok_emb'][flat_tok] + prm['pos_emb'][None, :, :]).reshape(M * S, W_TXT)
    eot = jnp.argmax(flat_tok, axis=-1).astype(jnp.int32)        # (M,) EOT positions

    def l3(bb, l, e): return (l, 0, 0)
    def l4(bb, l, e): return (l, 0, 0, 0)
    def c2(bb, l, e): return (0, 0)

    kernel = functools.partial(_text_encoder_kernel, M, S, H_TXT)
    grid_spec = pltpu.PrefetchScalarGridSpec(
        num_scalar_prefetch=1,           # eot indices -> SMEM, read inside the kernel
        grid=(1, L_TXT),
        in_specs=(
            [pl.BlockSpec((M * S, W_TXT), lambda bb, l, e: (bb, 0))]
            + _stacked_block_specs(W_TXT, H_TXT, l3, l4)
            + [pl.BlockSpec((1, W_TXT), c2),
               pl.BlockSpec((1, W_TXT), c2)]),
        out_specs=pl.BlockSpec((M, W_TXT), lambda bb, l, e: (bb, l)),
        scratch_shapes=[pltpu.VMEM((M * S, W_TXT), jnp.float32)],
    )
    out = pl.pallas_call(
        kernel,
        out_shape=jax.ShapeDtypeStruct((M, L_TXT * W_TXT), jnp.float32),
        grid_spec=grid_spec,
        compiler_params=pltpu.CompilerParams(
            dimension_semantics=("parallel", "arbitrary"),
            vmem_limit_bytes=VMEM_LIMIT),
    )(eot, x0, *_block_args(prm['blocks']),
      prm['ln_final_g'], prm['ln_final_b'])
    return out.reshape(C, P, L_TXT, W_TXT)                       # free reshape


def custom_clip_forward(image, text_features, params):
    # TODO(synk): nn.Dropout(p=0.2) is treated as inference-mode identity.
    img_out = image_encoder_forward(image, params['image'])      # (B, L*W), batch-major
    Bb = img_out.shape[0]
    xi = img_out.reshape(Bb * L_IMG, W_IMG)                      # rows (b, l) — no transpose glue

    C, P, Lt, Wt = text_features.shape
    xt = text_features.reshape(C * P * Lt, Wt)                   # rows (c, p, l)

    h = params['head']
    scale = jnp.exp(params['logit_scale']).reshape(1, 1).astype(jnp.float32)

    kernel = functools.partial(_head_kernel, Bb, L_IMG, C, P, Lt, PADC)
    vmem = pl.BlockSpec(memory_space=pltpu.MemorySpace.VMEM)
    smem = pl.BlockSpec(memory_space=pltpu.MemorySpace.SMEM)
    padded = pl.pallas_call(
        kernel,
        out_shape=jax.ShapeDtypeStruct((Bb, PADC), jnp.float32),
        in_specs=[vmem] * 10 + [smem],
        out_specs=vmem,
    )(xi, xt,
      h['Wq_img_t'], h['Wk_img_t'], h['Wv_img_t'],
      h['Wk_cross_t'], h['Wv_cross_t'],
      h['Wq_self_t'], h['Wk_self_t'], h['Wv_self_t'],
      scale)
    return padded[:, :C]                                         # drop lane padding


# ------------------------------- parameters -------------------------------------
def init_params(key):
    kit = iter(jax.random.split(key, 256))

    def nrm(shape, std=0.02):
        return std * jax.random.normal(next(kit), shape, dtype=jnp.float32)

    def stacked_blocks(L, W, n_heads):
        hd = W // n_heads
        return dict(
            ln1_g=jnp.ones((L, 1, W), jnp.float32), ln1_b=jnp.zeros((L, 1, W), jnp.float32),
            w_q=nrm((L, n_heads, W, hd)).astype(jnp.bfloat16), b_q=nrm((L, n_heads, 1, hd)),
            w_k=nrm((L, n_heads, W, hd)).astype(jnp.bfloat16), b_k=nrm((L, n_heads, 1, hd)),
            w_v=nrm((L, n_heads, W, hd)).astype(jnp.bfloat16), b_v=nrm((L, n_heads, 1, hd)),
            w_o=nrm((L, n_heads, hd, W)).astype(jnp.bfloat16), b_o=nrm((L, 1, W)),
            ln2_g=jnp.ones((L, 1, W), jnp.float32), ln2_b=jnp.zeros((L, 1, W), jnp.float32),
            w_fc=nrm((L, W, 4 * W)).astype(jnp.bfloat16), b_fc=nrm((L, 1, 4 * W)),
            w_proj=nrm((L, 4 * W, W)).astype(jnp.bfloat16), b_proj=nrm((L, 1, W)),
        )

    n_patch = (IMG_HW // PATCH) ** 2
    image = dict(
        conv_w_t=nrm((CIN * PATCH * PATCH, W_IMG)).astype(jnp.bfloat16),
        class_emb=nrm((W_IMG,)),
        pos_emb=nrm((n_patch + 1, W_IMG)),
        ln_pre_g=jnp.ones((1, W_IMG), jnp.float32), ln_pre_b=jnp.zeros((1, W_IMG), jnp.float32),
        ln_post_g=jnp.ones((1, W_IMG), jnp.float32), ln_post_b=jnp.zeros((1, W_IMG), jnp.float32),
        blocks=stacked_blocks(L_IMG, W_IMG, H_IMG),
    )
    text = dict(
        tok_emb=nrm((VOCAB, W_TXT)),
        pos_emb=nrm((SEQ, W_TXT)),
        ln_final_g=jnp.ones((1, W_TXT), jnp.float32), ln_final_b=jnp.zeros((1, W_TXT), jnp.float32),
        blocks=stacked_blocks(L_TXT, W_TXT, H_TXT),
    )
    head = dict(  # nn.Linear(bias=False) weights stored pre-transposed (in, out), bf16 for MXU
        Wq_img_t=nrm((W_IMG, D_OUT)).astype(jnp.bfloat16),
        Wk_img_t=nrm((W_IMG, D_OUT)).astype(jnp.bfloat16),
        Wv_img_t=nrm((W_IMG, D_OUT)).astype(jnp.bfloat16),
        Wq_self_t=nrm((W_TXT, D_OUT)).astype(jnp.bfloat16),
        Wk_self_t=nrm((W_TXT, D_OUT)).astype(jnp.bfloat16),
        Wv_self_t=nrm((W_TXT, D_OUT)).astype(jnp.bfloat16),
        Wk_cross_t=nrm((W_TXT, D_OUT)).astype(jnp.bfloat16),
        Wv_cross_t=nrm((W_TXT, D_OUT)).astype(jnp.bfloat16),
    )
    return dict(image=image, text=text, head=head,
                logit_scale=jnp.asarray(np.log(1.0 / 0.07), jnp.float32))


# ---------------------------------- main -----------------------------------------
if __name__ == "__main__":
    key = jax.random.PRNGKey(0)
    k_param, k_img, k_tok = jax.random.split(key, 3)

    params = init_params(k_param)
    image = jax.random.normal(k_img, (B, CIN, IMG_HW, IMG_HW), dtype=jnp.float32)
    tokens = jax.random.randint(k_tok, (N_CLS, N_PROMPT, SEQ), 1, VOCAB - 1, dtype=jnp.int32)
    tokens = tokens.at[:, :, SEQ - 2].set(VOCAB - 1)   # EOT token (argmax target)

    text_features = jax.jit(precompute_text_features)(tokens, params['text'])
    logits = jax.jit(custom_clip_forward)(image, text_features, params)
    logits = jax.block_until_ready(logits)

    assert logits.shape == (B, N_CLS), logits.shape
    assert bool(jnp.all(jnp.isfinite(logits)))
    print("KERNEL_OK")
</pallas_src>

<mosaic_0001>
module attributes {stable_mosaic.version = 11 : i64} {
  func.func @_text_encoder_kernel(%arg0: i32, %arg1: i32, %arg2: memref<3xi32, #tpu.memory_space<smem>>, %arg3: memref<24x128xf32, #tpu.memory_space<vmem>>, %arg4: memref<1x1x128xf32, #tpu.memory_space<vmem>>, %arg5: memref<1x1x128xf32, #tpu.memory_space<vmem>>, %arg6: memref<1x2x128x64xbf16, #tpu.memory_space<vmem>>, %arg7: memref<1x2x1x64xf32, #tpu.memory_space<vmem>>, %arg8: memref<1x2x128x64xbf16, #tpu.memory_space<vmem>>, %arg9: memref<1x2x1x64xf32, #tpu.memory_space<vmem>>, %arg10: memref<1x2x128x64xbf16, #tpu.memory_space<vmem>>, %arg11: memref<1x2x1x64xf32, #tpu.memory_space<vmem>>, %arg12: memref<1x2x64x128xbf16, #tpu.memory_space<vmem>>, %arg13: memref<1x1x128xf32, #tpu.memory_space<vmem>>, %arg14: memref<1x1x128xf32, #tpu.memory_space<vmem>>, %arg15: memref<1x1x128xf32, #tpu.memory_space<vmem>>, %arg16: memref<1x128x512xbf16, #tpu.memory_space<vmem>>, %arg17: memref<1x1x512xf32, #tpu.memory_space<vmem>>, %arg18: memref<1x512x128xbf16, #tpu.memory_space<vmem>>, %arg19: memref<1x1x128xf32, #tpu.memory_space<vmem>>, %arg20: memref<1x128xf32, #tpu.memory_space<vmem>>, %arg21: memref<1x128xf32, #tpu.memory_space<vmem>>, %arg22: memref<3x128xf32, #tpu.memory_space<vmem>>, %arg23: memref<24x128xf32, #tpu.memory_space<vmem>>) attributes {dimension_semantics = [#tpu.dimension_semantics<parallel>, #tpu.dimension_semantics<arbitrary>], iteration_bounds = array<i64: 1, 2>, scalar_prefetch = 1 : i64, scratch_operands = 1 : i64, tpu.core_type = #tpu.core_type<tc>, window_params = [{transform_indices = @transform_0, window_bounds = array<i64: 24, 128>}, {transform_indices = @transform_1, window_bounds = array<i64: 1, 1, 128>}, {transform_indices = @transform_2, window_bounds = array<i64: 1, 1, 128>}, {transform_indices = @transform_3, window_bounds = array<i64: 1, 2, 128, 64>}, {transform_indices = @transform_4, window_bounds = array<i64: 1, 2, 1, 64>}, {transform_indices = @transform_5, window_bounds = array<i64: 1, 2, 128, 64>}, {transform_indices = @transform_6, window_bounds = array<i64: 1, 2, 1, 64>}, {transform_indices = @transform_7, window_bounds = array<i64: 1, 2, 128, 64>}, {transform_indices = @transform_8, window_bounds = array<i64: 1, 2, 1, 64>}, {transform_indices = @transform_9, window_bounds = array<i64: 1, 2, 64, 128>}, {transform_indices = @transform_10, window_bounds = array<i64: 1, 1, 128>}, {transform_indices = @transform_11, window_bounds = array<i64: 1, 1, 128>}, {transform_indices = @transform_12, window_bounds = array<i64: 1, 1, 128>}, {transform_indices = @transform_13, window_bounds = array<i64: 1, 128, 512>}, {transform_indices = @transform_14, window_bounds = array<i64: 1, 1, 512>}, {transform_indices = @transform_15, window_bounds = array<i64: 1, 512, 128>}, {transform_indices = @transform_16, window_bounds = array<i64: 1, 1, 128>}, {pipeline_mode = #tpu.pipeline_mode<synchronous>, transform_indices = @transform_17, window_bounds = array<i64: 1, 128>}, {pipeline_mode = #tpu.pipeline_mode<synchronous>, transform_indices = @transform_18, window_bounds = array<i64: 1, 128>}, {transform_indices = @transform_19, window_bounds = array<i64: 3, 128>}]} {
    %c0_i32 = arith.constant 0 : i32
    %0 = arith.cmpi eq, %arg1, %c0_i32 : i32
    %1 = arith.extui %0 : i1 to i32
    %c0_i32_0 = arith.constant 0 : i32
    %2 = arith.cmpi ne, %1, %c0_i32_0 : i32
    scf.if %2 {
      %c0_136 = arith.constant 0 : index
      %c0_137 = arith.constant 0 : index
      %228 = vector.load %arg3[%c0_136, %c0_137] : memref<24x128xf32, #tpu.memory_space<vmem>>, vector<24x128xf32>
      %c0_138 = arith.constant 0 : index
      %c0_139 = arith.constant 0 : index
      %229 = vector.load %arg23[%c0_138, %c0_139] : memref<24x128xf32, #tpu.memory_space<vmem>>, vector<24x128xf32>
      tpu.vector_store %arg23[%c0_138, %c0_139], %228 {strides = array<i32>} : memref<24x128xf32, #tpu.memory_space<vmem>>, vector<24x128xf32>,
    } else {
    }
    %3 = tpu.iota {dimensions = array<i32: 0>} : vector<8x8xi32>
    %4 = tpu.iota {dimensions = array<i32: 1>} : vector<8x8xi32>
    %5 = arith.cmpi sle, %4, %3 : vector<8x8xi32>
    %c0 = arith.constant 0 : index
    %c0_1 = arith.constant 0 : index
    %6 = vector.load %arg23[%c0, %c0_1] : memref<24x128xf32, #tpu.memory_space<vmem>>, vector<24x128xf32>
    %c0_2 = arith.constant 0 : index
    %c0_3 = arith.constant 0 : index
    %c0_4 = arith.constant 0 : index
    %7 = vector.load %arg4[%c0_2, %c0_3, %c0_4] : memref<1x1x128xf32, #tpu.memory_space<vmem>>, vector<1x1x128xf32>
    %8 = vector.shape_cast %7 : vector<1x1x128xf32> to vector<1x128xf32>
    %c0_5 = arith.constant 0 : index
    %c0_6 = arith.constant 0 : index
    %c0_7 = arith.constant 0 : index
    %9 = vector.load %arg5[%c0_5, %c0_6, %c0_7] : memref<1x1x128xf32, #tpu.memory_space<vmem>>, vector<1x1x128xf32>
    %10 = vector.shape_cast %9 : vector<1x1x128xf32> to vector<1x128xf32>
    %cst = arith.constant dense<0.000000e+00> : vector<24xf32>
    %11 = vector.multi_reduction <add>, %6, %cst [1] : vector<24x128xf32> to vector<24xf32>
    %12 = vector.shape_cast %11 : vector<24xf32> to vector<24x1xf32>
    %cst_8 = arith.constant 1.280000e+02 : f32
    %13 = vector.broadcast %cst_8 : f32 to vector<24x1xf32>
    %14 = arith.divf %12, %13 : vector<24x1xf32>
    %15 = vector.broadcast %14 : vector<24x1xf32> to vector<24x128xf32>
    %16 = arith.subf %6, %15 : vector<24x128xf32>
    %17 = arith.mulf %16, %16 : vector<24x128xf32>
    %cst_9 = arith.constant dense<0.000000e+00> : vector<24xf32>
    %18 = vector.multi_reduction <add>, %17, %cst_9 [1] : vector<24x128xf32> to vector<24xf32>
    %19 = vector.shape_cast %18 : vector<24xf32> to vector<24x1xf32>
    %cst_10 = arith.constant 1.280000e+02 : f32
    %20 = vector.broadcast %cst_10 : f32 to vector<24x1xf32>
    %21 = arith.divf %19, %20 : vector<24x1xf32>
    %cst_11 = arith.constant 9.99999974E-6 : f32
    %22 = vector.broadcast %cst_11 : f32 to vector<24x1xf32>
    %23 = arith.addf %21, %22 : vector<24x1xf32>
    %24 = math.rsqrt %23 : vector<24x1xf32>
    %25 = vector.broadcast %24 : vector<24x1xf32> to vector<24x128xf32>
    %26 = arith.mulf %16, %25 : vector<24x128xf32>
    %27 = vector.broadcast %8 : vector<1x128xf32> to vector<24x128xf32>
    %28 = arith.mulf %26, %27 : vector<24x128xf32>
    %29 = vector.broadcast %10 : vector<1x128xf32> to vector<24x128xf32>
    %30 = arith.addf %28, %29 : vector<24x128xf32>
    %31 = arith.truncf %30 : vector<24x128xf32> to vector<24x128xbf16>
    %c0_12 = arith.constant 0 : index
    %c0_13 = arith.constant 0 : index
    %c0_14 = arith.constant 0 : index
    %c0_15 = arith.constant 0 : index
    %32 = vector.load %arg6[%c0_12, %c0_13, %c0_14, %c0_15] : memref<1x2x128x64xbf16, #tpu.memory_space<vmem>>, vector<1x1x128x64xbf16>
    %33 = vector.shape_cast %32 : vector<1x1x128x64xbf16> to vector<128x64xbf16>
    %cst_16 = arith.constant dense<0.000000e+00> : vector<24x64xf32>
    %34 = tpu.matmul %31, %33, %cst_16 {dimension_numbers = #tpu.dot_dimension_numbers<[1], [0], [0], [1], [0, 0, 1, 1], [], []>} : vector<24x128xbf16>, vector<128x64xbf16>, vector<24x64xf32> -> vector<24x64xf32>
    %c0_17 = arith.constant 0 : index
    %c0_18 = arith.constant 0 : index
    %c0_19 = arith.constant 0 : index
    %c0_20 = arith.constant 0 : index
    %35 = vector.load %arg7[%c0_17, %c0_18, %c0_19, %c0_20] : memref<1x2x1x64xf32, #tpu.memory_space<vmem>>, vector<1x1x1x64xf32>
    %36 = vector.shape_cast %35 : vector<1x1x1x64xf32> to vector<1x64xf32>
    %37 = vector.broadcast %36 : vector<1x64xf32> to vector<24x64xf32>
    %38 = arith.addf %34, %37 : vector<24x64xf32>
    %39 = vector.shape_cast %38 : vector<24x64xf32> to vector<3x8x64xf32>
    %c0_21 = arith.constant 0 : index
    %c0_22 = arith.constant 0 : index
    %c0_23 = arith.constant 0 : index
    %c0_24 = arith.constant 0 : index
    %40 = vector.load %arg8[%c0_21, %c0_22, %c0_23, %c0_24] : memref<1x2x128x64xbf16, #tpu.memory_space<vmem>>, vector<1x1x128x64xbf16>
    %41 = vector.shape_cast %40 : vector<1x1x128x64xbf16> to vector<128x64xbf16>
    %cst_25 = arith.constant dense<0.000000e+00> : vector<24x64xf32>
    %42 = tpu.matmul %31, %41, %cst_25 {dimension_numbers = #tpu.dot_dimension_numbers<[1], [0], [0], [1], [0, 0, 1, 1], [], []>} : vector<24x128xbf16>, vector<128x64xbf16>, vector<24x64xf32> -> vector<24x64xf32>
    %c0_26 = arith.constant 0 : index
    %c0_27 = arith.constant 0 : index
    %c0_28 = arith.constant 0 : index
    %c0_29 = arith.constant 0 : index
    %43 = vector.load %arg9[%c0_26, %c0_27, %c0_28, %c0_29] : memref<1x2x1x64xf32, #tpu.memory_space<vmem>>, vector<1x1x1x64xf32>
    %44 = vector.shape_cast %43 : vector<1x1x1x64xf32> to vector<1x64xf32>
    %45 = vector.broadcast %44 : vector<1x64xf32> to vector<24x64xf32>
    %46 = arith.addf %42, %45 : vector<24x64xf32>
    %47 = vector.shape_cast %46 : vector<24x64xf32> to vector<3x8x64xf32>
    %c0_30 = arith.constant 0 : index
    %c0_31 = arith.constant 0 : index
    %c0_32 = arith.constant 0 : index
    %c0_33 = arith.constant 0 : index
    %48 = vector.load %arg10[%c0_30, %c0_31, %c0_32, %c0_33] : memref<1x2x128x64xbf16, #tpu.memory_space<vmem>>, vector<1x1x128x64xbf16>
    %49 = vector.shape_cast %48 : vector<1x1x128x64xbf16> to vector<128x64xbf16>
    %cst_34 = arith.constant dense<0.000000e+00> : vector<24x64xf32>
    %50 = tpu.matmul %31, %49, %cst_34 {dimension_numbers = #tpu.dot_dimension_numbers<[1], [0], [0], [1], [0, 0, 1, 1], [], []>} : vector<24x128xbf16>, vector<128x64xbf16>, vector<24x64xf32> -> vector<24x64xf32>
    %c0_35 = arith.constant 0 : index
    %c0_36 = arith.constant 0 : index
    %c0_37 = arith.constant 0 : index
    %c0_38 = arith.constant 0 : index
    %51 = vector.load %arg11[%c0_35, %c0_36, %c0_37, %c0_38] : memref<1x2x1x64xf32, #tpu.memory_space<vmem>>, vector<1x1x1x64xf32>
    %52 = vector.shape_cast %51 : vector<1x1x1x64xf32> to vector<1x64xf32>
    %53 = vector.broadcast %52 : vector<1x64xf32> to vector<24x64xf32>
    %54 = arith.addf %50, %53 : vector<24x64xf32>
    %55 = vector.shape_cast %54 : vector<24x64xf32> to vector<3x8x64xf32>
    %56 = arith.truncf %39 : vector<3x8x64xf32> to vector<3x8x64xbf16>
    %57 = arith.truncf %47 : vector<3x8x64xf32> to vector<3x8x64xbf16>
    "tpu.trace_start"() <{level = 10 : i32, message = "bqd,bkd->bqk"}> : () -> ()
    %cst_39 = arith.constant dense<0.000000e+00> : vector<3x8x8xf32>
    %58 = tpu.matmul %56, %57, %cst_39 {dimension_numbers = #tpu.dot_dimension_numbers<[2], [2], [1], [1], [0, 0, 0, 1, 1, 1], [0], [0]>} : vector<3x8x64xbf16>, vector<3x8x64xbf16>, vector<3x8x8xf32> -> vector<3x8x8xf32>
    "tpu.trace_stop"() : () -> ()
    %cst_40 = arith.constant 1.250000e-01 : f32
    %59 = vector.broadcast %cst_40 : f32 to vector<3x8x8xf32>
    %60 = arith.mulf %58, %59 : vector<3x8x8xf32>
    %61 = vector.shape_cast %5 : vector<8x8xi1> to vector<1x8x8xi1>
    %cst_41 = arith.constant -1.000000e+30 : f32
    %62 = vector.shape_cast %61 : vector<1x8x8xi1> to vector<1x8x8xi1>
    %63 = vector.broadcast %62 : vector<1x8x8xi1> to vector<3x8x8xi1>
    %64 = vector.broadcast %cst_41 : f32 to vector<3x8x8xf32>
    %65 = arith.select %63, %60, %64 : vector<3x8x8xi1>, vector<3x8x8xf32>
    %cst_42 = arith.constant dense<0xFF800000> : vector<3x8xf32>
    %66 = vector.multi_reduction <maximumf>, %65, %cst_42 [2] : vector<3x8x8xf32> to vector<3x8xf32>
    %67 = vector.shape_cast %66 : vector<3x8xf32> to vector<3x8x1xf32>
    %68 = vector.broadcast %67 : vector<3x8x1xf32> to vector<3x8x8xf32>
    %69 = arith.subf %65, %68 : vector<3x8x8xf32>
    %70 = math.exp %69 : vector<3x8x8xf32>
    %cst_43 = arith.constant dense<0.000000e+00> : vector<3x8xf32>
    %71 = vector.multi_reduction <add>, %70, %cst_43 [2] : vector<3x8x8xf32> to vector<3x8xf32>
    %72 = vector.shape_cast %71 : vector<3x8xf32> to vector<3x8x1xf32>
    %73 = tpu.reciprocal %72 {approx = true} : vector<3x8x1xf32> -> vector<3x8x1xf32>
    %74 = vector.broadcast %73 : vector<3x8x1xf32> to vector<3x8x8xf32>
    %75 = arith.mulf %70, %74 : vector<3x8x8xf32>
    %76 = arith.truncf %75 : vector<3x8x8xf32> to vector<3x8x8xbf16>
    %77 = arith.truncf %55 : vector<3x8x64xf32> to vector<3x8x64xbf16>
    "tpu.trace_start"() <{level = 10 : i32, message = "bqk,bkd->bqd"}> : () -> ()
    %cst_44 = arith.constant dense<0.000000e+00> : vector<3x8x64xf32>
    %78 = tpu.matmul %76, %77, %cst_44 {dimension_numbers = #tpu.dot_dimension_numbers<[2], [1], [1], [2], [0, 0, 0, 1, 1, 2], [0], [0]>} : vector<3x8x8xbf16>, vector<3x8x64xbf16>, vector<3x8x64xf32> -> vector<3x8x64xf32>
    "tpu.trace_stop"() : () -> ()
    %79 = vector.shape_cast %78 : vector<3x8x64xf32> to vector<24x64xf32>
    %80 = arith.truncf %79 : vector<24x64xf32> to vector<24x64xbf16>
    %c0_45 = arith.constant 0 : index
    %c0_46 = arith.constant 0 : index
    %c0_47 = arith.constant 0 : index
    %c0_48 = arith.constant 0 : index
    %81 = vector.load %arg12[%c0_45, %c0_46, %c0_47, %c0_48] : memref<1x2x64x128xbf16, #tpu.memory_space<vmem>>, vector<1x1x64x128xbf16>
    %82 = vector.shape_cast %81 : vector<1x1x64x128xbf16> to vector<64x128xbf16>
    %cst_49 = arith.constant dense<0.000000e+00> : vector<24x128xf32>
    %83 = tpu.matmul %80, %82, %cst_49 {dimension_numbers = #tpu.dot_dimension_numbers<[1], [0], [0], [1], [0, 0, 1, 1], [], []>} : vector<24x64xbf16>, vector<64x128xbf16>, vector<24x128xf32> -> vector<24x128xf32>
    %c0_50 = arith.constant 0 : index
    %c1 = arith.constant 1 : index
    %c0_51 = arith.constant 0 : index
    %c0_52 = arith.constant 0 : index
    %84 = vector.load %arg6[%c0_50, %c1, %c0_51, %c0_52] : memref<1x2x128x64xbf16, #tpu.memory_space<vmem>>, vector<1x1x128x64xbf16>
    %85 = vector.shape_cast %84 : vector<1x1x128x64xbf16> to vector<128x64xbf16>
    %cst_53 = arith.constant dense<0.000000e+00> : vector<24x64xf32>
    %86 = tpu.matmul %31, %85, %cst_53 {dimension_numbers = #tpu.dot_dimension_numbers<[1], [0], [0], [1], [0, 0, 1, 1], [], []>} : vector<24x128xbf16>, vector<128x64xbf16>, vector<24x64xf32> -> vector<24x64xf32>
    %c0_54 = arith.constant 0 : index
    %c1_55 = arith.constant 1 : index
    %c0_56 = arith.constant 0 : index
    %c0_57 = arith.constant 0 : index
    %87 = vector.load %arg7[%c0_54, %c1_55, %c0_56, %c0_57] : memref<1x2x1x64xf32, #tpu.memory_space<vmem>>, vector<1x1x1x64xf32>
    %88 = vector.shape_cast %87 : vector<1x1x1x64xf32> to vector<1x64xf32>
    %89 = vector.broadcast %88 : vector<1x64xf32> to vector<24x64xf32>
    %90 = arith.addf %86, %89 : vector<24x64xf32>
    %91 = vector.shape_cast %90 : vector<24x64xf32> to vector<3x8x64xf32>
    %c0_58 = arith.constant 0 : index
    %c1_59 = arith.constant 1 : index
    %c0_60 = arith.constant 0 : index
    %c0_61 = arith.constant 0 : index
    %92 = vector.load %arg8[%c0_58, %c1_59, %c0_60, %c0_61] : memref<1x2x128x64xbf16, #tpu.memory_space<vmem>>, vector<1x1x128x64xbf16>
    %93 = vector.shape_cast %92 : vector<1x1x128x64xbf16> to vector<128x64xbf16>
    %cst_62 = arith.constant dense<0.000000e+00> : vector<24x64xf32>
    %94 = tpu.matmul %31, %93, %cst_62 {dimension_numbers = #tpu.dot_dimension_numbers<[1], [0], [0], [1], [0, 0, 1, 1], [], []>} : vector<24x128xbf16>, vector<128x64xbf16>, vector<24x64xf32> -> vector<24x64xf32>
    %c0_63 = arith.constant 0 : index
    %c1_64 = arith.constant 1 : index
    %c0_65 = arith.constant 0 : index
    %c0_66 = arith.constant 0 : index
    %95 = vector.load %arg9[%c0_63, %c1_64, %c0_65, %c0_66] : memref<1x2x1x64xf32, #tpu.memory_space<vmem>>, vector<1x1x1x64xf32>
    %96 = vector.shape_cast %95 : vector<1x1x1x64xf32> to vector<1x64xf32>
    %97 = vector.broadcast %96 : vector<1x64xf32> to vector<24x64xf32>
    %98 = arith.addf %94, %97 : vector<24x64xf32>
    %99 = vector.shape_cast %98 : vector<24x64xf32> to vector<3x8x64xf32>
    %c0_67 = arith.constant 0 : index
    %c1_68 = arith.constant 1 : index
    %c0_69 = arith.constant 0 : index
    %c0_70 = arith.constant 0 : index
    %100 = vector.load %arg10[%c0_67, %c1_68, %c0_69, %c0_70] : memref<1x2x128x64xbf16, #tpu.memory_space<vmem>>, vector<1x1x128x64xbf16>
    %101 = vector.shape_cast %100 : vector<1x1x128x64xbf16> to vector<128x64xbf16>
    %cst_71 = arith.constant dense<0.000000e+00> : vector<24x64xf32>
    %102 = tpu.matmul %31, %101, %cst_71 {dimension_numbers = #tpu.dot_dimension_numbers<[1], [0], [0], [1], [0, 0, 1, 1], [], []>} : vector<24x128xbf16>, vector<128x64xbf16>, vector<24x64xf32> -> vector<24x64xf32>
    %c0_72 = arith.constant 0 : index
    %c1_73 = arith.constant 1 : index
    %c0_74 = arith.constant 0 : index
    %c0_75 = arith.constant 0 : index
    %103 = vector.load %arg11[%c0_72, %c1_73, %c0_74, %c0_75] : memref<1x2x1x64xf32, #tpu.memory_space<vmem>>, vector<1x1x1x64xf32>
    %104 = vector.shape_cast %103 : vector<1x1x1x64xf32> to vector<1x64xf32>
    %105 = vector.broadcast %104 : vector<1x64xf32> to vector<24x64xf32>
    %106 = arith.addf %102, %105 : vector<24x64xf32>
    %107 = vector.shape_cast %106 : vector<24x64xf32> to vector<3x8x64xf32>
    %108 = arith.truncf %91 : vector<3x8x64xf32> to vector<3x8x64xbf16>
    %109 = arith.truncf %99 : vector<3x8x64xf32> to vector<3x8x64xbf16>
    "tpu.trace_start"() <{level = 10 : i32, message = "bqd,bkd->bqk"}> : () -> ()
    %cst_76 = arith.constant dense<0.000000e+00> : vector<3x8x8xf32>
    %110 = tpu.matmul %108, %109, %cst_76 {dimension_numbers = #tpu.dot_dimension_numbers<[2], [2], [1], [1], [0, 0, 0, 1, 1, 1], [0], [0]>} : vector<3x8x64xbf16>, vector<3x8x64xbf16>, vector<3x8x8xf32> -> vector<3x8x8xf32>
    "tpu.trace_stop"() : () -> ()
    %cst_77 = arith.constant 1.250000e-01 : f32
    %111 = vector.broadcast %cst_77 : f32 to vector<3x8x8xf32>
    %112 = arith.mulf %110, %111 : vector<3x8x8xf32>
    %113 = vector.shape_cast %5 : vector<8x8xi1> to vector<1x8x8xi1>
    %cst_78 = arith.constant -1.000000e+30 : f32
    %114 = vector.shape_cast %113 : vector<1x8x8xi1> to vector<1x8x8xi1>
    %115 = vector.broadcast %114 : vector<1x8x8xi1> to vector<3x8x8xi1>
    %116 = vector.broadcast %cst_78 : f32 to vector<3x8x8xf32>
    %117 = arith.select %115, %112, %116 : vector<3x8x8xi1>, vector<3x8x8xf32>
    %cst_79 = arith.constant dense<0xFF800000> : vector<3x8xf32>
    %118 = vector.multi_reduction <maximumf>, %117, %cst_79 [2] : vector<3x8x8xf32> to vector<3x8xf32>
    %119 = vector.shape_cast %118 : vector<3x8xf32> to vector<3x8x1xf32>
    %120 = vector.broadcast %119 : vector<3x8x1xf32> to vector<3x8x8xf32>
    %121 = arith.subf %117, %120 : vector<3x8x8xf32>
    %122 = math.exp %121 : vector<3x8x8xf32>
    %cst_80 = arith.constant dense<0.000000e+00> : vector<3x8xf32>
    %123 = vector.multi_reduction <add>, %122, %cst_80 [2] : vector<3x8x8xf32> to vector<3x8xf32>
    %124 = vector.shape_cast %123 : vector<3x8xf32> to vector<3x8x1xf32>
    %125 = tpu.reciprocal %124 {approx = true} : vector<3x8x1xf32> -> vector<3x8x1xf32>
    %126 = vector.broadcast %125 : vector<3x8x1xf32> to vector<3x8x8xf32>
    %127 = arith.mulf %122, %126 : vector<3x8x8xf32>
    %128 = arith.truncf %127 : vector<3x8x8xf32> to vector<3x8x8xbf16>
    %129 = arith.truncf %107 : vector<3x8x64xf32> to vector<3x8x64xbf16>
    "tpu.trace_start"() <{level = 10 : i32, message = "bqk,bkd->bqd"}> : () -> ()
    %cst_81 = arith.constant dense<0.000000e+00> : vector<3x8x64xf32>
    %130 = tpu.matmul %128, %129, %cst_81 {dimension_numbers = #tpu.dot_dimension_numbers<[2], [1], [1], [2], [0, 0, 0, 1, 1, 2], [0], [0]>} : vector<3x8x8xbf16>, vector<3x8x64xbf16>, vector<3x8x64xf32> -> vector<3x8x64xf32>
    "tpu.trace_stop"() : () -> ()
    %131 = vector.shape_cast %130 : vector<3x8x64xf32> to vector<24x64xf32>
    %132 = arith.truncf %131 : vector<24x64xf32> to vector<24x64xbf16>
    %c0_82 = arith.constant 0 : index
    %c1_83 = arith.constant 1 : index
    %c0_84 = arith.constant 0 : index
    %c0_85 = arith.constant 0 : index
    %133 = vector.load %arg12[%c0_82, %c1_83, %c0_84, %c0_85] : memref<1x2x64x128xbf16, #tpu.memory_space<vmem>>, vector<1x1x64x128xbf16>
    %134 = vector.shape_cast %133 : vector<1x1x64x128xbf16> to vector<64x128xbf16>
    %cst_86 = arith.constant dense<0.000000e+00> : vector<24x128xf32>
    %135 = tpu.matmul %132, %134, %cst_86 {dimension_numbers = #tpu.dot_dimension_numbers<[1], [0], [0], [1], [0, 0, 1, 1], [], []>} : vector<24x64xbf16>, vector<64x128xbf16>, vector<24x128xf32> -> vector<24x128xf32>
    %136 = arith.addf %83, %135 : vector<24x128xf32>
    %137 = arith.addf %6, %136 : vector<24x128xf32>
    %c0_87 = arith.constant 0 : index
    %c0_88 = arith.constant 0 : index
    %c0_89 = arith.constant 0 : index
    %138 = vector.load %arg13[%c0_87, %c0_88, %c0_89] : memref<1x1x128xf32, #tpu.memory_space<vmem>>, vector<1x1x128xf32>
    %139 = vector.shape_cast %138 : vector<1x1x128xf32> to vector<1x128xf32>
    %140 = vector.broadcast %139 : vector<1x128xf32> to vector<24x128xf32>
    %141 = arith.addf %137, %140 : vector<24x128xf32>
    %c0_90 = arith.constant 0 : index
    %c0_91 = arith.constant 0 : index
    %c0_92 = arith.constant 0 : index
    %142 = vector.load %arg14[%c0_90, %c0_91, %c0_92] : memref<1x1x128xf32, #tpu.memory_space<vmem>>, vector<1x1x128xf32>
    %143 = vector.shape_cast %142 : vector<1x1x128xf32> to vector<1x128xf32>
    %c0_93 = arith.constant 0 : index
    %c0_94 = arith.constant 0 : index
    %c0_95 = arith.constant 0 : index
    %144 = vector.load %arg15[%c0_93, %c0_94, %c0_95] : memref<1x1x128xf32, #tpu.memory_space<vmem>>, vector<1x1x128xf32>
    %145 = vector.shape_cast %144 : vector<1x1x128xf32> to vector<1x128xf32>
    %cst_96 = arith.constant dense<0.000000e+00> : vector<24xf32>
    %146 = vector.multi_reduction <add>, %141, %cst_96 [1] : vector<24x128xf32> to vector<24xf32>
    %147 = vector.shape_cast %146 : vector<24xf32> to vector<24x1xf32>
    %cst_97 = arith.constant 1.280000e+02 : f32
    %148 = vector.broadcast %cst_97 : f32 to vector<24x1xf32>
    %149 = arith.divf %147, %148 : vector<24x1xf32>
    %150 = vector.broadcast %149 : vector<24x1xf32> to vector<24x128xf32>
    %151 = arith.subf %141, %150 : vector<24x128xf32>
    %152 = arith.mulf %151, %151 : vector<24x128xf32>
    %cst_98 = arith.constant dense<0.000000e+00> : vector<24xf32>
    %153 = vector.multi_reduction <add>, %152, %cst_98 [1] : vector<24x128xf32> to vector<24xf32>
    %154 = vector.shape_cast %153 : vector<24xf32> to vector<24x1xf32>
    %cst_99 = arith.constant 1.280000e+02 : f32
    %155 = vector.broadcast %cst_99 : f32 to vector<24x1xf32>
    %156 = arith.divf %154, %155 : vector<24x1xf32>
    %cst_100 = arith.constant 9.99999974E-6 : f32
    %157 = vector.broadcast %cst_100 : f32 to vector<24x1xf32>
    %158 = arith.addf %156, %157 : vector<24x1xf32>
    %159 = math.rsqrt %158 : vector<24x1xf32>
    %160 = vector.broadcast %159 : vector<24x1xf32> to vector<24x128xf32>
    %161 = arith.mulf %151, %160 : vector<24x128xf32>
    %162 = vector.broadcast %143 : vector<1x128xf32> to vector<24x128xf32>
    %163 = arith.mulf %161, %162 : vector<24x128xf32>
    %164 = vector.broadcast %145 : vector<1x128xf32> to vector<24x128xf32>
    %165 = arith.addf %163, %164 : vector<24x128xf32>
    %166 = arith.truncf %165 : vector<24x128xf32> to vector<24x128xbf16>
    %c0_101 = arith.constant 0 : index
    %c0_102 = arith.constant 0 : index
    %c0_103 = arith.constant 0 : index
    %167 = vector.load %arg16[%c0_101, %c0_102, %c0_103] : memref<1x128x512xbf16, #tpu.memory_space<vmem>>, vector<1x128x512xbf16>
    %168 = vector.shape_cast %167 : vector<1x128x512xbf16> to vector<128x512xbf16>
    %cst_104 = arith.constant dense<0.000000e+00> : vector<24x512xf32>
    %169 = tpu.matmul %166, %168, %cst_104 {dimension_numbers = #tpu.dot_dimension_numbers<[1], [0], [0], [1], [0, 0, 1, 1], [], []>} : vector<24x128xbf16>, vector<128x512xbf16>, vector<24x512xf32> -> vector<24x512xf32>
    %c0_105 = arith.constant 0 : index
    %c0_106 = arith.constant 0 : index
    %c0_107 = arith.constant 0 : index
    %170 = vector.load %arg17[%c0_105, %c0_106, %c0_107] : memref<1x1x512xf32, #tpu.memory_space<vmem>>, vector<1x1x512xf32>
    %171 = vector.shape_cast %170 : vector<1x1x512xf32> to vector<1x512xf32>
    %172 = vector.broadcast %171 : vector<1x512xf32> to vector<24x512xf32>
    %173 = arith.addf %169, %172 : vector<24x512xf32>
    %cst_108 = arith.constant 1.702000e+00 : f32
    %174 = vector.broadcast %cst_108 : f32 to vector<24x512xf32>
    %175 = arith.mulf %174, %173 : vector<24x512xf32>
    %176 = arith.negf %175 : vector<24x512xf32>
    %177 = math.exp %176 : vector<24x512xf32>
    %cst_109 = arith.constant 1.000000e+00 : f32
    %178 = vector.broadcast %cst_109 : f32 to vector<24x512xf32>
    %179 = arith.addf %178, %177 : vector<24x512xf32>
    %180 = arith.divf %178, %179 : vector<24x512xf32>
    %181 = arith.mulf %173, %180 : vector<24x512xf32>
    %182 = arith.truncf %181 : vector<24x512xf32> to vector<24x512xbf16>
    %c0_110 = arith.constant 0 : index
    %c0_111 = arith.constant 0 : index
    %c0_112 = arith.constant 0 : index
    %183 = vector.load %arg18[%c0_110, %c0_111, %c0_112] : memref<1x512x128xbf16, #tpu.memory_space<vmem>>, vector<1x512x128xbf16>
    %184 = vector.shape_cast %183 : vector<1x512x128xbf16> to vector<512x128xbf16>
    %cst_113 = arith.constant dense<0.000000e+00> : vector<24x128xf32>
    %185 = tpu.matmul %182, %184, %cst_113 {dimension_numbers = #tpu.dot_dimension_numbers<[1], [0], [0], [1], [0, 0, 1, 1], [], []>} : vector<24x512xbf16>, vector<512x128xbf16>, vector<24x128xf32> -> vector<24x128xf32>
    %186 = arith.addf %141, %185 : vector<24x128xf32>
    %c0_114 = arith.constant 0 : index
    %c0_115 = arith.constant 0 : index
    %c0_116 = arith.constant 0 : index
    %187 = vector.load %arg19[%c0_114, %c0_115, %c0_116] : memref<1x1x128xf32, #tpu.memory_space<vmem>>, vector<1x1x128xf32>
    %188 = vector.shape_cast %187 : vector<1x1x128xf32> to vector<1x128xf32>
    %189 = vector.broadcast %188 : vector<1x128xf32> to vector<24x128xf32>
    %190 = arith.addf %186, %189 : vector<24x128xf32>
    %c0_117 = arith.constant 0 : index
    %c0_118 = arith.constant 0 : index
    %191 = vector.load %arg23[%c0_117, %c0_118] : memref<24x128xf32, #tpu.memory_space<vmem>>, vector<24x128xf32>
    tpu.vector_store %arg23[%c0_117, %c0_118], %190 {strides = array<i32>} : memref<24x128xf32, #tpu.memory_space<vmem>>, vector<24x128xf32>,
    %c0_119 = arith.constant 0 : index
    %192 = memref.load %arg2[%c0_119] : memref<3xi32, #tpu.memory_space<smem>>
    %c0_i32_120 = arith.constant 0 : i32
    %193 = arith.addi %c0_i32_120, %192 : i32
    %194 = arith.index_cast %193 : i32 to index
    %c0_121 = arith.constant 0 : index
    %195 = vector.load %arg23[%194, %c0_121] : memref<24x128xf32, #tpu.memory_space<vmem>>, vector<1x128xf32>
    %c1_122 = arith.constant 1 : index
    %196 = memref.load %arg2[%c1_122] : memref<3xi32, #tpu.memory_space<smem>>
    %c8_i32 = arith.constant 8 : i32
    %197 = arith.addi %c8_i32, %196 : i32
    %198 = arith.index_cast %197 : i32 to index
    %c0_123 = arith.constant 0 : index
    %199 = vector.load %arg23[%198, %c0_123] : memref<24x128xf32, #tpu.memory_space<vmem>>, vector<1x128xf32>
    %c2 = arith.constant 2 : index
    %200 = memref.load %arg2[%c2] : memref<3xi32, #tpu.memory_space<smem>>
    %c16_i32 = arith.constant 16 : i32
    %201 = arith.addi %c16_i32, %200 : i32
    %202 = arith.index_cast %201 : i32 to index
    %c0_124 = arith.constant 0 : index
    %203 = vector.load %arg23[%202, %c0_124] : memref<24x128xf32, #tpu.memory_space<vmem>>, vector<1x128xf32>
    %204 = tpu.concatenate %195, %199, %203 in 0 : vector<1x128xf32>, vector<1x128xf32>, vector<1x128xf32> -> vector<3x128xf32>
    %c0_125 = arith.constant 0 : index
    %c0_126 = arith.constant 0 : index
    %205 = vector.load %arg20[%c0_125, %c0_126] : memref<1x128xf32, #tpu.memory_space<vmem>>, vector<1x128xf32>
    %c0_127 = arith.constant 0 : index
    %c0_128 = arith.constant 0 : index
    %206 = vector.load %arg21[%c0_127, %c0_128] : memref<1x128xf32, #tpu.memory_space<vmem>>, vector<1x128xf32>
    %cst_129 = arith.constant dense<0.000000e+00> : vector<3xf32>
    %207 = vector.multi_reduction <add>, %204, %cst_129 [1] : vector<3x128xf32> to vector<3xf32>
    %208 = vector.shape_cast %207 : vector<3xf32> to vector<3x1xf32>
    %cst_130 = arith.constant 1.280000e+02 : f32
    %209 = vector.broadcast %cst_130 : f32 to vector<3x1xf32>
    %210 = arith.divf %208, %209 : vector<3x1xf32>
    %211 = vector.broadcast %210 : vector<3x1xf32> to vector<3x128xf32>
    %212 = arith.subf %204, %211 : vector<3x128xf32>
    %213 = arith.mulf %212, %212 : vector<3x128xf32>
    %cst_131 = arith.constant dense<0.000000e+00> : vector<3xf32>
    %214 = vector.multi_reduction <add>, %213, %cst_131 [1] : vector<3x128xf32> to vector<3xf32>
    %215 = vector.shape_cast %214 : vector<3xf32> to vector<3x1xf32>
    %cst_132 = arith.constant 1.280000e+02 : f32
    %216 = vector.broadcast %cst_132 : f32 to vector<3x1xf32>
    %217 = arith.divf %215, %216 : vector<3x1xf32>
    %cst_133 = arith.constant 9.99999974E-6 : f32
    %218 = vector.broadcast %cst_133 : f32 to vector<3x1xf32>
    %219 = arith.addf %217, %218 : vector<3x1xf32>
    %220 = math.rsqrt %219 : vector<3x1xf32>
    %221 = vector.broadcast %220 : vector<3x1xf32> to vector<3x128xf32>
    %222 = arith.mulf %212, %221 : vector<3x128xf32>
    %223 = vector.broadcast %205 : vector<1x128xf32> to vector<3x128xf32>
    %224 = arith.mulf %222, %223 : vector<3x128xf32>
    %225 = vector.broadcast %206 : vector<1x128xf32> to vector<3x128xf32>
    %226 = arith.addf %224, %225 : vector<3x128xf32>
    %c0_134 = arith.constant 0 : index
    %c0_135 = arith.constant 0 : index
    %227 = vector.load %arg22[%c0_134, %c0_135] : memref<3x128xf32, #tpu.memory_space<vmem>>, vector<3x128xf32>
    tpu.vector_store %arg22[%c0_134, %c0_135], %226 {strides = array<i32>} : memref<3x128xf32, #tpu.memory_space<vmem>>, vector<3x128xf32>,
    return
  }
  func.func @transform_0(%arg0: i32, %arg1: i32, %arg2: memref<3xi32, #tpu.memory_space<smem>>) -> (i32, i32) {
    %c0_i32 = arith.constant 0 : i32
    %c0_i32_0 = arith.constant 0 : i32
    return %arg0, %c0_i32 : i32, i32
  }
  func.func @transform_1(%arg0: i32, %arg1: i32, %arg2: memref<3xi32, #tpu.memory_space<smem>>) -> (i32, i32, i32) {
    %c0_i32 = arith.constant 0 : i32
    %c0_i32_0 = arith.constant 0 : i32
    %c0_i32_1 = arith.constant 0 : i32
    return %arg1, %c0_i32, %c0_i32_0 : i32, i32, i32
  }
  func.func @transform_2(%arg0: i32, %arg1: i32, %arg2: memref<3xi32, #tpu.memory_space<smem>>) -> (i32, i32, i32) {
    %c0_i32 = arith.constant 0 : i32
    %c0_i32_0 = arith.constant 0 : i32
    %c0_i32_1 = arith.constant 0 : i32
    return %arg1, %c0_i32, %c0_i32_0 : i32, i32, i32
  }
  func.func @transform_3(%arg0: i32, %arg1: i32, %arg2: memref<3xi32, #tpu.memory_space<smem>>) -> (i32, i32, i32, i32) {
    %c0_i32 = arith.constant 0 : i32
    %c0_i32_0 = arith.constant 0 : i32
    %c0_i32_1 = arith.constant 0 : i32
    %c0_i32_2 = arith.constant 0 : i32
    return %arg1, %c0_i32, %c0_i32_0, %c0_i32_1 : i32, i32, i32, i32
  }
  func.func @transform_4(%arg0: i32, %arg1: i32, %arg2: memref<3xi32, #tpu.memory_space<smem>>) -> (i32, i32, i32, i32) {
    %c0_i32 = arith.constant 0 : i32
    %c0_i32_0 = arith.constant 0 : i32
    %c0_i32_1 = arith.constant 0 : i32
    %c0_i32_2 = arith.constant 0 : i32
    return %arg1, %c0_i32, %c0_i32_0, %c0_i32_1 : i32, i32, i32, i32
  }
  func.func @transform_5(%arg0: i32, %arg1: i32, %arg2: memref<3xi32, #tpu.memory_space<smem>>) -> (i32, i32, i32, i32) {
    %c0_i32 = arith.constant 0 : i32
    %c0_i32_0 = arith.constant 0 : i32
    %c0_i32_1 = arith.constant 0 : i32
    %c0_i32_2 = arith.constant 0 : i32
    return %arg1, %c0_i32, %c0_i32_0, %c0_i32_1 : i32, i32, i32, i32
  }
  func.func @transform_6(%arg0: i32, %arg1: i32, %arg2: memref<3xi32, #tpu.memory_space<smem>>) -> (i32, i32, i32, i32) {
    %c0_i32 = arith.constant 0 : i32
    %c0_i32_0 = arith.constant 0 : i32
    %c0_i32_1 = arith.constant 0 : i32
    %c0_i32_2 = arith.constant 0 : i32
    return %arg1, %c0_i32, %c0_i32_0, %c0_i32_1 : i32, i32, i32, i32
  }
  func.func @transform_7(%arg0: i32, %arg1: i32, %arg2: memref<3xi32, #tpu.memory_space<smem>>) -> (i32, i32, i32, i32) {
    %c0_i32 = arith.constant 0 : i32
    %c0_i32_0 = arith.constant 0 : i32
    %c0_i32_1 = arith.constant 0 : i32
    %c0_i32_2 = arith.constant 0 : i32
    return %arg1, %c0_i32, %c0_i32_0, %c0_i32_1 : i32, i32, i32, i32
  }
  func.func @transform_8(%arg0: i32, %arg1: i32, %arg2: memref<3xi32, #tpu.memory_space<smem>>) -> (i32, i32, i32, i32) {
    %c0_i32 = arith.constant 0 : i32
    %c0_i32_0 = arith.constant 0 : i32
    %c0_i32_1 = arith.constant 0 : i32
    %c0_i32_2 = arith.constant 0 : i32
    return %arg1, %c0_i32, %c0_i32_0, %c0_i32_1 : i32, i32, i32, i32
  }
  func.func @transform_9(%arg0: i32, %arg1: i32, %arg2: memref<3xi32, #tpu.memory_space<smem>>) -> (i32, i32, i32, i32) {
    %c0_i32 = arith.constant 0 : i32
    %c0_i32_0 = arith.constant 0 : i32
    %c0_i32_1 = arith.constant 0 : i32
    %c0_i32_2 = arith.constant 0 : i32
    return %arg1, %c0_i32, %c0_i32_0, %c0_i32_1 : i32, i32, i32, i32
  }
  func.func @transform_10(%arg0: i32, %arg1: i32, %arg2: memref<3xi32, #tpu.memory_space<smem>>) -> (i32, i32, i32) {
    %c0_i32 = arith.constant 0 : i32
    %c0_i32_0 = arith.constant 0 : i32
    %c0_i32_1 = arith.constant 0 : i32
    return %arg1, %c0_i32, %c0_i32_0 : i32, i32, i32
  }
  func.func @transform_11(%arg0: i32, %arg1: i32, %arg2: memref<3xi32, #tpu.memory_space<smem>>) -> (i32, i32, i32) {
    %c0_i32 = arith.constant 0 : i32
    %c0_i32_0 = arith.constant 0 : i32
    %c0_i32_1 = arith.constant 0 : i32
    return %arg1, %c0_i32, %c0_i32_0 : i32, i32, i32
  }
  func.func @transform_12(%arg0: i32, %arg1: i32, %arg2: memref<3xi32, #tpu.memory_space<smem>>) -> (i32, i32, i32) {
    %c0_i32 = arith.constant 0 : i32
    %c0_i32_0 = arith.constant 0 : i32
    %c0_i32_1 = arith.constant 0 : i32
    return %arg1, %c0_i32, %c0_i32_0 : i32, i32, i32
  }
  func.func @transform_13(%arg0: i32, %arg1: i32, %arg2: memref<3xi32, #tpu.memory_space<smem>>) -> (i32, i32, i32) {
    %c0_i32 = arith.constant 0 : i32
    %c0_i32_0 = arith.constant 0 : i32
    %c0_i32_1 = arith.constant 0 : i32
    return %arg1, %c0_i32, %c0_i32_0 : i32, i32, i32
  }
  func.func @transform_14(%arg0: i32, %arg1: i32, %arg2: memref<3xi32, #tpu.memory_space<smem>>) -> (i32, i32, i32) {
    %c0_i32 = arith.constant 0 : i32
    %c0_i32_0 = arith.constant 0 : i32
    %c0_i32_1 = arith.constant 0 : i32
    return %arg1, %c0_i32, %c0_i32_0 : i32, i32, i32
  }
  func.func @transform_15(%arg0: i32, %arg1: i32, %arg2: memref<3xi32, #tpu.memory_space<smem>>) -> (i32, i32, i32) {
    %c0_i32 = arith.constant 0 : i32
    %c0_i32_0 = arith.constant 0 : i32
    %c0_i32_1 = arith.constant 0 : i32
    return %arg1, %c0_i32, %c0_i32_0 : i32, i32, i32
  }
  func.func @transform_16(%arg0: i32, %arg1: i32, %arg2: memref<3xi32, #tpu.memory_space<smem>>) -> (i32, i32, i32) {
    %c0_i32 = arith.constant 0 : i32
    %c0_i32_0 = arith.constant 0 : i32
    %c0_i32_1 = arith.constant 0 : i32
    return %arg1, %c0_i32, %c0_i32_0 : i32, i32, i32
  }
  func.func @transform_17(%arg0: i32, %arg1: i32, %arg2: memref<3xi32, #tpu.memory_space<smem>>) -> (i32, i32) {
    %c0_i32 = arith.constant 0 : i32
    %c0_i32_0 = arith.constant 0 : i32
    %c0_i32_1 = arith.constant 0 : i32
    return %c0_i32, %c0_i32_0 : i32, i32
  }
  func.func @transform_18(%arg0: i32, %arg1: i32, %arg2: memref<3xi32, #tpu.memory_space<smem>>) -> (i32, i32) {
    %c0_i32 = arith.constant 0 : i32
    %c0_i32_0 = arith.constant 0 : i32
    %c0_i32_1 = arith.constant 0 : i32
    return %c0_i32, %c0_i32_0 : i32, i32
  }
  func.func @transform_19(%arg0: i32, %arg1: i32, %arg2: memref<3xi32, #tpu.memory_space<smem>>) -> (i32, i32) {
    %c0_i32 = arith.constant 0 : i32
    return %arg0, %arg1 : i32, i32
  }
}

</mosaic_0001>

<llo_original>
// kernel: precompute_text_features.1
$region0: #{precompute_text_features.1}
  #allocation0 [shape = 'u32[]', space=smem, size = 0x4, offset = 0x4, fixed_abs, tag = 'smem constant byte address 0x4 - core index']
  #allocation1 [shape = 'u32[144,128]{1,0:T(1,128)}', space=vmem, size = 0x12000, scoped, tag = 'internal scratch']
  #allocation2 [shape = 'f32[24,128]{1,0:T(8,128)}', space=vmem, size = 0x3000, scoped, tag = 'scratch operand']
  #allocation3 [shape = 's32[1]{0}', space=sflag, size = 0x4, scoped, tag = 'scoped memory for precompute_text_features.1']
  #allocation4 [shape = 'u8[512]{0}', space=smem, size = 0x200, scoped, tag = 'prefetched SMEM operand 0']
  %s0 = inlined_call_operand.vmem [shape: s32[3], index: 0, kind: input, shape index: {}]
  %s1 = inlined_call_operand.vmem [shape: f32[24,128], index: 1, kind: input, shape index: {}]
  %s2 = inlined_call_operand.vmem [shape: f32[2,1,128], index: 2, kind: input, shape index: {}]
  %s3 = inlined_call_operand.vmem [shape: f32[2,1,128], index: 3, kind: input, shape index: {}]
  %s4 = inlined_call_operand.vmem [shape: bf16[2,2,128,64], index: 4, kind: input, shape index: {}]
  %s5 = inlined_call_operand.vmem [shape: f32[2,2,1,64], index: 5, kind: input, shape index: {}]
  %s6 = inlined_call_operand.vmem [shape: bf16[2,2,128,64], index: 6, kind: input, shape index: {}]
  %s7 = inlined_call_operand.vmem [shape: f32[2,2,1,64], index: 7, kind: input, shape index: {}]
  %s8 = inlined_call_operand.vmem [shape: bf16[2,2,128,64], index: 8, kind: input, shape index: {}]
  %s9 = inlined_call_operand.vmem [shape: f32[2,2,1,64], index: 9, kind: input, shape index: {}]
  %s10 = inlined_call_operand.hbm [shape: bf16[2,2,64,128], index: 10, kind: input, shape index: {}]
  %s11 = inlined_call_operand.vmem [shape: f32[2,1,128], index: 11, kind: input, shape index: {}]
  %s12 = inlined_call_operand.vmem [shape: f32[2,1,128], index: 12, kind: input, shape index: {}]
  %s13 = inlined_call_operand.vmem [shape: f32[2,1,128], index: 13, kind: input, shape index: {}]
  %s14 = inlined_call_operand.vmem [shape: bf16[2,128,512], index: 14, kind: input, shape index: {}]
  %s15 = inlined_call_operand.vmem [shape: f32[2,1,512], index: 15, kind: input, shape index: {}]
  %s16 = inlined_call_operand.vmem [shape: bf16[2,512,128], index: 16, kind: input, shape index: {}]
  %s17 = inlined_call_operand.vmem [shape: f32[2,1,128], index: 17, kind: input, shape index: {}]
  %s18 = inlined_call_operand.vmem [shape: f32[1,128], index: 18, kind: input, shape index: {}]
  %s19 = inlined_call_operand.vmem [shape: f32[1,128], index: 19, kind: input, shape index: {}]
  %s20 = inlined_call_operand.vmem [shape: f32[3,256], index: 20, kind: output, shape index: {}]
  %s21 = sld [smem:[#allocation0]]
  $region117: #{precompute_text_features.1} parent=0
    _
  %s23 = ssub.s32 1, %s21
  %s24 = scalar_select 0, %s23, %s21
  %s25 = sshll.u32 %s0, 4
  %s26 = int_to_ptr.vmem [resolvable:$true] %s25
  %28 = dma.vmem_to_smem %s26, 16, [#allocation4], [#allocation3]
  %29 = dma.done [#allocation3], 16
  %30 = sfence
  $region1: #{precompute_text_features.1} parent=0
    #allocation5 [shape = 'u8[65536]{0}', space=vmem, size = 0x10000, scoped, tag = 'input window, operand 10']
    #allocation6 [shape = 's32[2]{0}', space=sflag, size = 0x8, scoped, tag = 'scoped memory for precompute_text_features.1']
    %31 = vsyncpa [#allocation6], 0
    %s32 = scalar_lea.sflag [#allocation6], 1
    %33 = vsyncpa %s32, 0
    loop: start=0, step=1, limit=4
    $region2: #{precompute_text_features.1} parent=1 // loop_pre_header
      _
    $region3: #{precompute_text_features.1} parent=1 // loop_header
      %s35 = sphi 0, %s39
      %p36 = scmp.ge.s32.totalorder %s35, 4
      %s42 = sphi 0, %s54
      %s43 = sphi 0, %s50
      %s44 = sphi 0, %s42
      %s45 = sphi 0, %s43
      %s46 = sphi 0, %s44
      %s47 = sphi 0, %s45
      %s57 = sphi 0, %s59
      %s60 = sphi 0, %s57
      %s61 = sphi 0, %s60
      %s77 = sphi 0, %s61
      %s83 = sphi 0, %s85
      %s86 = sphi 0, %s83
      %s87 = sphi 0, %s86
      %s103 = sphi 0, %s87
      %s109 = sphi 0, %s111
      %s112 = sphi 0, %s109
      %s113 = sphi 0, %s112
      %s129 = sphi 0, %s113
      %s135 = sphi 0, %s137
      %s138 = sphi 0, %s135
      %s139 = sphi 0, %s138
      %s155 = sphi 0, %s139
      %s161 = sphi 0, %s163
      %s164 = sphi 0, %s161
      %s165 = sphi 0, %s164
      %s181 = sphi 0, %s165
      %s187 = sphi 0, %s189
      %s190 = sphi 0, %s187
      %s191 = sphi 0, %s190
      %s207 = sphi 0, %s191
      %s213 = sphi 0, %s215
      %s216 = sphi 0, %s213
      %s217 = sphi 0, %s216
      %s233 = sphi 0, %s217
      %s239 = sphi 0, %s241
      %s242 = sphi 0, %s239
      %s243 = sphi 0, %s242
      %s259 = sphi 0, %s243
      %s265 = sphi 0, %s267
      %s268 = sphi 0, %s265
      %s269 = sphi 0, %s268
      %s285 = sphi 0, %s269
      %s291 = sphi 0, %s293
      %s294 = sphi 0, %s291
      %s295 = sphi 0, %s294
      %s311 = sphi 0, %s295
      %s317 = sphi 0, %s319
      %s320 = sphi 0, %s317
      %s321 = sphi 0, %s320
      %s337 = sphi 0, %s321
      %s343 = sphi 0, %s345
      %s346 = sphi 0, %s343
      %s347 = sphi 0, %s346
      %s363 = sphi 0, %s347
      %s369 = sphi 0, %s371
      %s372 = sphi 0, %s369
      %s373 = sphi 0, %s372
      %s389 = sphi 0, %s373
      %s395 = sphi 0, %s397
      %s398 = sphi 0, %s395
      %s399 = sphi 0, %s398
      %s415 = sphi 0, %s399
      %s421 = sphi 0, %s423
      %s424 = sphi 0, %s421
      %s425 = sphi 0, %s424
      %s441 = sphi 0, %s425
      %s447 = sphi 0, %s449
      %s450 = sphi 0, %s447
      %s451 = sphi 0, %s450
      %s467 = sphi 0, %s451
      %s473 = sphi 0, %s475
      %s476 = sphi 0, %s473
      %s477 = sphi 0, %s476
      %s493 = sphi 0, %s477
      %s497 = sphi 0, %s497
      %s499 = sphi 0, %s497
      %s500 = sphi 0, %s499
      %s514 = sphi 0, %s500
      %s518 = sphi 0, %s518
      %s520 = sphi 0, %s518
      %s521 = sphi 0, %s520
      %s535 = sphi 0, %s521
      %s543 = sphi 0, %s545
      %s546 = sphi 0, %s543
      %s547 = sphi 0, %s546
      %s563 = sphi 0, %s547
    $region4: #{precompute_text_features.1} parent=1 // loop_header_branch
      %38 = sbr.rel (%p36) target = $region8
    $region5: #{precompute_text_features.1} parent=1 // loop_body
      %s40 = ssub.s32 %s35, 1
      %s41 = ssub.s32 %s35, 2
      %s48 = sadd.s32 1, %s43
      %p49 = scmp.ge.s32.totalorder %s48, 2
      %s50 = scalar_select %p49, 0, %s48
      %s51 = sadd.s32 1, %s42
      %s52 = scalar_select %p49, %s51, %s42
      %p53 = scmp.ge.s32.totalorder %s52, 1
      %s54 = scalar_select %p53, 0, %s52
      %s55 = ssub.s32 %s42, %s54
      %p56 = scmp.eq.s32.totalorder %s55, 0
      %s58 = sadd.s32 %s57, 1
      %s59 = scalar_select %p56, %s57, %s58
      %p62 = pneg %p56
      %p63 = scmp.eq.s32.totalorder %s35, 1
      %p64 = por %p62, %p63
      %p65 = scmp.ne.s32.totalorder %s57, %s60
      %p66 = scmp.eq.s32.totalorder %s35, 0
      %p67 = por %p65, %p66
      %p68 = scmp.ne.s32.totalorder %s57, %s60
      %p69 = scmp.eq.s32.totalorder %s40, 1
      %p70 = por %p68, %p69
      %p71 = scmp.ne.s32.totalorder %s60, %s61
      %p72 = scmp.eq.s32.totalorder %s40, 0
      %p73 = por %p71, %p72
      %p74 = scmp.ne.s32.totalorder %s60, %s61
      %p75 = scmp.eq.s32.totalorder %s41, 1
      %p76 = por %p74, %p75
      %p78 = scmp.ne.s32.totalorder %s61, %s77
      %p79 = scmp.eq.s32.totalorder %s41, 0
      %p80 = por %p78, %p79
      %s81 = ssub.s32 %s43, %s50
      %p82 = scmp.eq.s32.totalorder %s81, 0
      %s84 = sadd.s32 %s83, 1
      %s85 = scalar_select %p82, %s83, %s84
      %p88 = pneg %p82
      %p89 = scmp.eq.s32.totalorder %s35, 1
      %p90 = por %p88, %p89
      %p91 = scmp.ne.s32.totalorder %s83, %s86
      %p92 = scmp.eq.s32.totalorder %s35, 0
      %p93 = por %p91, %p92
      %p94 = scmp.ne.s32.totalorder %s83, %s86
      %p95 = scmp.eq.s32.totalorder %s40, 1
      %p96 = por %p94, %p95
      %p97 = scmp.ne.s32.totalorder %s86, %s87
      %p98 = scmp.eq.s32.totalorder %s40, 0
      %p99 = por %p97, %p98
      %p100 = scmp.ne.s32.totalorder %s86, %s87
      %p101 = scmp.eq.s32.totalorder %s41, 1
      %p102 = por %p100, %p101
      %p104 = scmp.ne.s32.totalorder %s87, %s103
      %p105 = scmp.eq.s32.totalorder %s41, 0
      %p106 = por %p104, %p105
      %s107 = ssub.s32 %s43, %s50
      %p108 = scmp.eq.s32.totalorder %s107, 0
      %s110 = sadd.s32 %s109, 1
      %s111 = scalar_select %p108, %s109, %s110
      %p114 = pneg %p108
      %p115 = scmp.eq.s32.totalorder %s35, 1
      %p116 = por %p114, %p115
      %p117 = scmp.ne.s32.totalorder %s109, %s112
      %p118 = scmp.eq.s32.totalorder %s35, 0
      %p119 = por %p117, %p118
      %p120 = scmp.ne.s32.totalorder %s109, %s112
      %p121 = scmp.eq.s32.totalorder %s40, 1
      %p122 = por %p120, %p121
      %p123 = scmp.ne.s32.totalorder %s112, %s113
      %p124 = scmp.eq.s32.totalorder %s40, 0
      %p125 = por %p123, %p124
      %p126 = scmp.ne.s32.totalorder %s112, %s113
      %p127 = scmp.eq.s32.totalorder %s41, 1
      %p128 = por %p126, %p127
      %p130 = scmp.ne.s32.totalorder %s113, %s129
      %p131 = scmp.eq.s32.totalorder %s41, 0
      %p132 = por %p130, %p131
      %s133 = ssub.s32 %s43, %s50
      %p134 = scmp.eq.s32.totalorder %s133, 0
      %s136 = sadd.s32 %s135, 1
      %s137 = scalar_select %p134, %s135, %s136
      %p140 = pneg %p134
      %p141 = scmp.eq.s32.totalorder %s35, 1
      %p142 = por %p140, %p141
      %p143 = scmp.ne.s32.totalorder %s135, %s138
      %p144 = scmp.eq.s32.totalorder %s35, 0
      %p145 = por %p143, %p144
      %p146 = scmp.ne.s32.totalorder %s135, %s138
      %p147 = scmp.eq.s32.totalorder %s40, 1
      %p148 = por %p146, %p147
      %p149 = scmp.ne.s32.totalorder %s138, %s139
      %p150 = scmp.eq.s32.totalorder %s40, 0
      %p151 = por %p149, %p150
      %p152 = scmp.ne.s32.totalorder %s138, %s139
      %p153 = scmp.eq.s32.totalorder %s41, 1
      %p154 = por %p152, %p153
      %p156 = scmp.ne.s32.totalorder %s139, %s155
      %p157 = scmp.eq.s32.totalorder %s41, 0
      %p158 = por %p156, %p157
      %s159 = ssub.s32 %s43, %s50
      %p160 = scmp.eq.s32.totalorder %s159, 0
      %s162 = sadd.s32 %s161, 1
      %s163 = scalar_select %p160, %s161, %s162
      %p166 = pneg %p160
      %p167 = scmp.eq.s32.totalorder %s35, 1
      %p168 = por %p166, %p167
      %p169 = scmp.ne.s32.totalorder %s161, %s164
      %p170 = scmp.eq.s32.totalorder %s35, 0
      %p171 = por %p169, %p170
      %p172 = scmp.ne.s32.totalorder %s161, %s164
      %p173 = scmp.eq.s32.totalorder %s40, 1
      %p174 = por %p172, %p173
      %p175 = scmp.ne.s32.totalorder %s164, %s165
      %p176 = scmp.eq.s32.totalorder %s40, 0
      %p177 = por %p175, %p176
      %p178 = scmp.ne.s32.totalorder %s164, %s165
      %p179 = scmp.eq.s32.totalorder %s41, 1
      %p180 = por %p178, %p179
      %p182 = scmp.ne.s32.totalorder %s165, %s181
      %p183 = scmp.eq.s32.totalorder %s41, 0
      %p184 = por %p182, %p183
      %s185 = ssub.s32 %s43, %s50
      %p186 = scmp.eq.s32.totalorder %s185, 0
      %s188 = sadd.s32 %s187, 1
      %s189 = scalar_select %p186, %s187, %s188
      %p192 = pneg %p186
      %p193 = scmp.eq.s32.totalorder %s35, 1
      %p194 = por %p192, %p193
      %p195 = scmp.ne.s32.totalorder %s187, %s190
      %p196 = scmp.eq.s32.totalorder %s35, 0
      %p197 = por %p195, %p196
      %p198 = scmp.ne.s32.totalorder %s187, %s190
      %p199 = scmp.eq.s32.totalorder %s40, 1
      %p200 = por %p198, %p199
      %p201 = scmp.ne.s32.totalorder %s190, %s191
      %p202 = scmp.eq.s32.totalorder %s40, 0
      %p203 = por %p201, %p202
      %p204 = scmp.ne.s32.totalorder %s190, %s191
      %p205 = scmp.eq.s32.totalorder %s41, 1
      %p206 = por %p204, %p205
      %p208 = scmp.ne.s32.totalorder %s191, %s207
      %p209 = scmp.eq.s32.totalorder %s41, 0
      %p210 = por %p208, %p209
      %s211 = ssub.s32 %s43, %s50
      %p212 = scmp.eq.s32.totalorder %s211, 0
      %s214 = sadd.s32 %s213, 1
      %s215 = scalar_select %p212, %s213, %s214
      %p218 = pneg %p212
      %p219 = scmp.eq.s32.totalorder %s35, 1
      %p220 = por %p218, %p219
      %p221 = scmp.ne.s32.totalorder %s213, %s216
      %p222 = scmp.eq.s32.totalorder %s35, 0
      %p223 = por %p221, %p222
      %p224 = scmp.ne.s32.totalorder %s213, %s216
      %p225 = scmp.eq.s32.totalorder %s40, 1
      %p226 = por %p224, %p225
      %p227 = scmp.ne.s32.totalorder %s216, %s217
      %p228 = scmp.eq.s32.totalorder %s40, 0
      %p229 = por %p227, %p228
      %p230 = scmp.ne.s32.totalorder %s216, %s217
      %p231 = scmp.eq.s32.totalorder %s41, 1
      %p232 = por %p230, %p231
      %p234 = scmp.ne.s32.totalorder %s217, %s233
      %p235 = scmp.eq.s32.totalorder %s41, 0
      %p236 = por %p234, %p235
      %s237 = ssub.s32 %s43, %s50
      %p238 = scmp.eq.s32.totalorder %s237, 0
      %s240 = sadd.s32 %s239, 1
      %s241 = scalar_select %p238, %s239, %s240
      %p244 = pneg %p238
      %p245 = scmp.eq.s32.totalorder %s35, 1
      %p246 = por %p244, %p245
      %p247 = scmp.ne.s32.totalorder %s239, %s242
      %p248 = scmp.eq.s32.totalorder %s35, 0
      %p249 = por %p247, %p248
      %p250 = scmp.ne.s32.totalorder %s239, %s242
      %p251 = scmp.eq.s32.totalorder %s40, 1
      %p252 = por %p250, %p251
      %p253 = scmp.ne.s32.totalorder %s242, %s243
      %p254 = scmp.eq.s32.totalorder %s40, 0
      %p255 = por %p253, %p254
      %p256 = scmp.ne.s32.totalorder %s242, %s243
      %p257 = scmp.eq.s32.totalorder %s41, 1
      %p258 = por %p256, %p257
      %p260 = scmp.ne.s32.totalorder %s243, %s259
      %p261 = scmp.eq.s32.totalorder %s41, 0
      %p262 = por %p260, %p261
      %s263 = ssub.s32 %s43, %s50
      %p264 = scmp.eq.s32.totalorder %s263, 0
      %s266 = sadd.s32 %s265, 1
      %s267 = scalar_select %p264, %s265, %s266
      %p270 = pneg %p264
      %p271 = scmp.eq.s32.totalorder %s35, 1
      %p272 = por %p270, %p271
      %p273 = scmp.ne.s32.totalorder %s265, %s268
      %p274 = scmp.eq.s32.totalorder %s35, 0
      %p275 = por %p273, %p274
      %p276 = scmp.ne.s32.totalorder %s265, %s268
      %p277 = scmp.eq.s32.totalorder %s40, 1
      %p278 = por %p276, %p277
      %p279 = scmp.ne.s32.totalorder %s268, %s269
      %p280 = scmp.eq.s32.totalorder %s40, 0
      %p281 = por %p279, %p280
      %p282 = scmp.ne.s32.totalorder %s268, %s269
      %p283 = scmp.eq.s32.totalorder %s41, 1
      %p284 = por %p282, %p283
      %p286 = scmp.ne.s32.totalorder %s269, %s285
      %p287 = scmp.eq.s32.totalorder %s41, 0
      %p288 = por %p286, %p287
      %s289 = ssub.s32 %s43, %s50
      %p290 = scmp.eq.s32.totalorder %s289, 0
      %s292 = sadd.s32 %s291, 1
      %s293 = scalar_select %p290, %s291, %s292
      %p296 = pneg %p290
      %p297 = scmp.eq.s32.totalorder %s35, 1
      %p298 = por %p296, %p297
      %p299 = scmp.ne.s32.totalorder %s291, %s294
      %p300 = scmp.eq.s32.totalorder %s35, 0
      %p301 = por %p299, %p300
      %p302 = scmp.ne.s32.totalorder %s291, %s294
      %p303 = scmp.eq.s32.totalorder %s40, 1
      %p304 = por %p302, %p303
      %p305 = scmp.ne.s32.totalorder %s294, %s295
      %p306 = scmp.eq.s32.totalorder %s40, 0
      %p307 = por %p305, %p306
      %p308 = scmp.ne.s32.totalorder %s294, %s295
      %p309 = scmp.eq.s32.totalorder %s41, 1
      %p310 = por %p308, %p309
      %p312 = scmp.ne.s32.totalorder %s295, %s311
      %p313 = scmp.eq.s32.totalorder %s41, 0
      %p314 = por %p312, %p313
      %s315 = ssub.s32 %s43, %s50
      %p316 = scmp.eq.s32.totalorder %s315, 0
      %s318 = sadd.s32 %s317, 1
      %s319 = scalar_select %p316, %s317, %s318
      %p322 = pneg %p316
      %p323 = scmp.eq.s32.totalorder %s35, 1
      %p324 = por %p322, %p323
      %p325 = scmp.ne.s32.totalorder %s317, %s320
      %p326 = scmp.eq.s32.totalorder %s35, 0
      %p327 = por %p325, %p326
      %p328 = scmp.ne.s32.totalorder %s317, %s320
      %p329 = scmp.eq.s32.totalorder %s40, 1
      %p330 = por %p328, %p329
      %p331 = scmp.ne.s32.totalorder %s320, %s321
      %p332 = scmp.eq.s32.totalorder %s40, 0
      %p333 = por %p331, %p332
      %p334 = scmp.ne.s32.totalorder %s320, %s321
      %p335 = scmp.eq.s32.totalorder %s41, 1
      %p336 = por %p334, %p335
      %p338 = scmp.ne.s32.totalorder %s321, %s337
      %p339 = scmp.eq.s32.totalorder %s41, 0
      %p340 = por %p338, %p339
      %s341 = ssub.s32 %s43, %s50
      %p342 = scmp.eq.s32.totalorder %s341, 0
      %s344 = sadd.s32 %s343, 1
      %s345 = scalar_select %p342, %s343, %s344
      %p348 = pneg %p342
      %p349 = scmp.eq.s32.totalorder %s35, 1
      %p350 = por %p348, %p349
      %p351 = scmp.ne.s32.totalorder %s343, %s346
      %p352 = scmp.eq.s32.totalorder %s35, 0
      %p353 = por %p351, %p352
      %p354 = scmp.ne.s32.totalorder %s343, %s346
      %p355 = scmp.eq.s32.totalorder %s40, 1
      %p356 = por %p354, %p355
      %p357 = scmp.ne.s32.totalorder %s346, %s347
      %p358 = scmp.eq.s32.totalorder %s40, 0
      %p359 = por %p357, %p358
      %p360 = scmp.ne.s32.totalorder %s346, %s347
      %p361 = scmp.eq.s32.totalorder %s41, 1
      %p362 = por %p360, %p361
      %p364 = scmp.ne.s32.totalorder %s347, %s363
      %p365 = scmp.eq.s32.totalorder %s41, 0
      %p366 = por %p364, %p365
      %s367 = ssub.s32 %s43, %s50
      %p368 = scmp.eq.s32.totalorder %s367, 0
      %s370 = sadd.s32 %s369, 1
      %s371 = scalar_select %p368, %s369, %s370
      %p374 = pneg %p368
      %p375 = scmp.eq.s32.totalorder %s35, 1
      %p376 = por %p374, %p375
      %p377 = scmp.ne.s32.totalorder %s369, %s372
      %p378 = scmp.eq.s32.totalorder %s35, 0
      %p379 = por %p377, %p378
      %p380 = scmp.ne.s32.totalorder %s369, %s372
      %p381 = scmp.eq.s32.totalorder %s40, 1
      %p382 = por %p380, %p381
      %p383 = scmp.ne.s32.totalorder %s372, %s373
      %p384 = scmp.eq.s32.totalorder %s40, 0
      %p385 = por %p383, %p384
      %p386 = scmp.ne.s32.totalorder %s372, %s373
      %p387 = scmp.eq.s32.totalorder %s41, 1
      %p388 = por %p386, %p387
      %p390 = scmp.ne.s32.totalorder %s373, %s389
      %p391 = scmp.eq.s32.totalorder %s41, 0
      %p392 = por %p390, %p391
      %s393 = ssub.s32 %s43, %s50
      %p394 = scmp.eq.s32.totalorder %s393, 0
      %s396 = sadd.s32 %s395, 1
      %s397 = scalar_select %p394, %s395, %s396
      %p400 = pneg %p394
      %p401 = scmp.eq.s32.totalorder %s35, 1
      %p402 = por %p400, %p401
      %p403 = scmp.ne.s32.totalorder %s395, %s398
      %p404 = scmp.eq.s32.totalorder %s35, 0
      %p405 = por %p403, %p404
      %p406 = scmp.ne.s32.totalorder %s395, %s398
      %p407 = scmp.eq.s32.totalorder %s40, 1
      %p408 = por %p406, %p407
      %p409 = scmp.ne.s32.totalorder %s398, %s399
      %p410 = scmp.eq.s32.totalorder %s40, 0
      %p411 = por %p409, %p410
      %p412 = scmp.ne.s32.totalorder %s398, %s399
      %p413 = scmp.eq.s32.totalorder %s41, 1
      %p414 = por %p412, %p413
      %p416 = scmp.ne.s32.totalorder %s399, %s415
      %p417 = scmp.eq.s32.totalorder %s41, 0
      %p418 = por %p416, %p417
      %s419 = ssub.s32 %s43, %s50
      %p420 = scmp.eq.s32.totalorder %s419, 0
      %s422 = sadd.s32 %s421, 1
      %s423 = scalar_select %p420, %s421, %s422
      %p426 = pneg %p420
      %p427 = scmp.eq.s32.totalorder %s35, 1
      %p428 = por %p426, %p427
      %p429 = scmp.ne.s32.totalorder %s421, %s424
      %p430 = scmp.eq.s32.totalorder %s35, 0
      %p431 = por %p429, %p430
      %p432 = scmp.ne.s32.totalorder %s421, %s424
      %p433 = scmp.eq.s32.totalorder %s40, 1
      %p434 = por %p432, %p433
      %p435 = scmp.ne.s32.totalorder %s424, %s425
      %p436 = scmp.eq.s32.totalorder %s40, 0
      %p437 = por %p435, %p436
      %p438 = scmp.ne.s32.totalorder %s424, %s425
      %p439 = scmp.eq.s32.totalorder %s41, 1
      %p440 = por %p438, %p439
      %p442 = scmp.ne.s32.totalorder %s425, %s441
      %p443 = scmp.eq.s32.totalorder %s41, 0
      %p444 = por %p442, %p443
      %s445 = ssub.s32 %s43, %s50
      %p446 = scmp.eq.s32.totalorder %s445, 0
      %s448 = sadd.s32 %s447, 1
      %s449 = scalar_select %p446, %s447, %s448
      %p452 = pneg %p446
      %p453 = scmp.eq.s32.totalorder %s35, 1
      %p454 = por %p452, %p453
      %p455 = scmp.ne.s32.totalorder %s447, %s450
      %p456 = scmp.eq.s32.totalorder %s35, 0
      %p457 = por %p455, %p456
      %p458 = scmp.ne.s32.totalorder %s447, %s450
      %p459 = scmp.eq.s32.totalorder %s40, 1
      %p460 = por %p458, %p459
      %p461 = scmp.ne.s32.totalorder %s450, %s451
      %p462 = scmp.eq.s32.totalorder %s40, 0
      %p463 = por %p461, %p462
      %p464 = scmp.ne.s32.totalorder %s450, %s451
      %p465 = scmp.eq.s32.totalorder %s41, 1
      %p466 = por %p464, %p465
      %p468 = scmp.ne.s32.totalorder %s451, %s467
      %p469 = scmp.eq.s32.totalorder %s41, 0
      %p470 = por %p468, %p469
      %s471 = ssub.s32 %s43, %s50
      %p472 = scmp.eq.s32.totalorder %s471, 0
      %s474 = sadd.s32 %s473, 1
      %s475 = scalar_select %p472, %s473, %s474
      %p478 = pneg %p472
      %p479 = scmp.eq.s32.totalorder %s35, 1
      %p480 = por %p478, %p479
      %p481 = scmp.ne.s32.totalorder %s473, %s476
      %p482 = scmp.eq.s32.totalorder %s35, 0
      %p483 = por %p481, %p482
      %p484 = scmp.ne.s32.totalorder %s473, %s476
      %p485 = scmp.eq.s32.totalorder %s40, 1
      %p486 = por %p484, %p485
      %p487 = scmp.ne.s32.totalorder %s476, %s477
      %p488 = scmp.eq.s32.totalorder %s40, 0
      %p489 = por %p487, %p488
      %p490 = scmp.ne.s32.totalorder %s476, %s477
      %p491 = scmp.eq.s32.totalorder %s41, 1
      %p492 = por %p490, %p491
      %p494 = scmp.ne.s32.totalorder %s477, %s493
      %p495 = scmp.eq.s32.totalorder %s41, 0
      %p496 = por %p494, %p495
      %s498 = sadd.s32 %s497, 1
      %p501 = scmp.eq.s32.totalorder %s35, 1
      %p502 = scmp.ne.s32.totalorder %s497, %s499
      %p503 = scmp.eq.s32.totalorder %s35, 0
      %p504 = por %p502, %p503
      %p505 = scmp.ne.s32.totalorder %s497, %s499
      %p506 = scmp.eq.s32.totalorder %s40, 1
      %p507 = por %p505, %p506
      %p508 = scmp.ne.s32.totalorder %s499, %s500
      %p509 = scmp.eq.s32.totalorder %s40, 0
      %p510 = por %p508, %p509
      %p511 = scmp.ne.s32.totalorder %s499, %s500
      %p512 = scmp.eq.s32.totalorder %s41, 1
      %p513 = por %p511, %p512
      %p515 = scmp.ne.s32.totalorder %s500, %s514
      %p516 = scmp.eq.s32.totalorder %s41, 0
      %p517 = por %p515, %p516
      %s519 = sadd.s32 %s518, 1
      %p522 = scmp.eq.s32.totalorder %s35, 1
      %p523 = scmp.ne.s32.totalorder %s518, %s520
      %p524 = scmp.eq.s32.totalorder %s35, 0
      %p525 = por %p523, %p524
      %p526 = scmp.ne.s32.totalorder %s518, %s520
      %p527 = scmp.eq.s32.totalorder %s40, 1
      %p528 = por %p526, %p527
      %p529 = scmp.ne.s32.totalorder %s520, %s521
      %p530 = scmp.eq.s32.totalorder %s40, 0
      %p531 = por %p529, %p530
      %p532 = scmp.ne.s32.totalorder %s520, %s521
      %p533 = scmp.eq.s32.totalorder %s41, 1
      %p534 = por %p532, %p533
      %p536 = scmp.ne.s32.totalorder %s521, %s535
      %p537 = scmp.eq.s32.totalorder %s41, 0
      %p538 = por %p536, %p537
      %s539 = ssub.s32 %s42, %s54
      %s540 = ssub.s32 %s43, %s50
      %s541 = sor.u32 %s539, %s540
      %p542 = scmp.eq.s32.totalorder %s541, 0
      %s544 = sadd.s32 %s543, 1
      %s545 = scalar_select %p542, %s543, %s544
      %p548 = pneg %p542
      %p549 = scmp.eq.s32.totalorder %s35, 1
      %p550 = por %p548, %p549
      %p551 = scmp.ne.s32.totalorder %s543, %s546
      %p552 = scmp.eq.s32.totalorder %s35, 0
      %p553 = por %p551, %p552
      %p554 = scmp.ne.s32.totalorder %s543, %s546
      %p555 = scmp.eq.s32.totalorder %s40, 1
      %p556 = por %p554, %p555
      %p557 = scmp.ne.s32.totalorder %s546, %s547
      %p558 = scmp.eq.s32.totalorder %s40, 0
      %p559 = por %p557, %p558
      %p560 = scmp.ne.s32.totalorder %s546, %s547
      %p561 = scmp.eq.s32.totalorder %s41, 1
      %p562 = por %p560, %p561
      %p564 = scmp.ne.s32.totalorder %s547, %s563
      %p565 = scmp.eq.s32.totalorder %s41, 0
      %p566 = por %p564, %p565
      %p567 = scmp.le.s32.totalorder 1, %s35
      %p568 = scmp.lt.s32.totalorder %s35, 3
      %p569 = pnand %p567, %p568
      %p570 = pneg %p569
      // Predicated region
      $region9: #{precompute_text_features.1} parent=5 // pred_check
        _
      $region10: #{precompute_text_features.1} parent=5 // pred_check_branch
        %572 = sbr.rel (%p569) target = $region12
      $region11: #{precompute_text_features.1} parent=5 // pred_region
        %s573 = ssub.s32 %s35, 1
        // Predicated region
        $region13: #{precompute_text_features.1} parent=11 // pred_check
          %p574 = pneg %p73
        $region14: #{precompute_text_features.1} parent=11 // pred_check_branch
          %576 = sbr.rel (%p574) target = $region16
        $region15: #{precompute_text_features.1} parent=11 // pred_region
          %s577 = smul.u32 3, %s44
          %p578 = scmp.lt.s32.totalorder %s577, 2
          %s579 = scalar_select %p578, %s577, 2
          %s580 = smul.addr %s579, 8
          %s581 = scalar_lea.vmem %s1, %s580
          %s582 = smul.u32 3, %s44
        $region16: #{precompute_text_features.1} parent=11 // pred_fallthru
          _
        // Predicated region
        $region17: #{precompute_text_features.1} parent=11 // pred_check
          %p583 = pneg %p510
        $region18: #{precompute_text_features.1} parent=11 // pred_check_branch
          %585 = sbr.rel (%p583) target = $region20
        $region19: #{precompute_text_features.1} parent=11 // pred_region
          _
        $region20: #{precompute_text_features.1} parent=11 // pred_fallthru
          _
        // Predicated region
        $region21: #{precompute_text_features.1} parent=11 // pred_check
          %p586 = pneg %p531
        $region22: #{precompute_text_features.1} parent=11 // pred_check_branch
          %588 = sbr.rel (%p586) target = $region24
        $region23: #{precompute_text_features.1} parent=11 // pred_region
          _
        $region24: #{precompute_text_features.1} parent=11 // pred_fallthru
          _
      $region12: #{precompute_text_features.1} parent=5 // pred_fallthru
        _
      %p589 = scmp.lt.s32.totalorder %s35, 2
      // Predicated region
      $region25: #{precompute_text_features.1} parent=5 // pred_check
        %p590 = pneg %p589
      $region26: #{precompute_text_features.1} parent=5 // pred_check_branch
        %592 = sbr.rel (%p590) target = $region28
      $region27: #{precompute_text_features.1} parent=5 // pred_region
        // Predicated region
        $region29: #{precompute_text_features.1} parent=27 // pred_check
          %p593 = pneg %p93
        $region30: #{precompute_text_features.1} parent=27 // pred_check_branch
          %595 = sbr.rel (%p593) target = $region32
        $region31: #{precompute_text_features.1} parent=27 // pred_region
          %p596 = scmp.lt.s32.totalorder %s43, 1
          %s597 = scalar_select %p596, %s43, 1
          %s598 = scalar_lea.vmem %s2, %s597
        $region32: #{precompute_text_features.1} parent=27 // pred_fallthru
          _
        // Predicated region
        $region33: #{precompute_text_features.1} parent=27 // pred_check
          %p599 = pneg %p119
        $region34: #{precompute_text_features.1} parent=27 // pred_check_branch
          %601 = sbr.rel (%p599) target = $region36
        $region35: #{precompute_text_features.1} parent=27 // pred_region
          %p602 = scmp.lt.s32.totalorder %s43, 1
          %s603 = scalar_select %p602, %s43, 1
          %s604 = scalar_lea.vmem %s3, %s603
        $region36: #{precompute_text_features.1} parent=27 // pred_fallthru
          _
        // Predicated region
        $region37: #{precompute_text_features.1} parent=27 // pred_check
          %p605 = pneg %p145
        $region38: #{precompute_text_features.1} parent=27 // pred_check_branch
          %607 = sbr.rel (%p605) target = $region40
        $region39: #{precompute_text_features.1} parent=27 // pred_region
          %p608 = scmp.lt.s32.totalorder %s43, 1
          %s609 = scalar_select %p608, %s43, 1
          %s610 = smul.addr %s609, 32
          %s611 = smul.addr %s610, 4
          %s612 = scalar_lea.vmem %s4, %s611
        $region40: #{precompute_text_features.1} parent=27 // pred_fallthru
          _
        // Predicated region
        $region41: #{precompute_text_features.1} parent=27 // pred_check
          %p613 = pneg %p171
        $region42: #{precompute_text_features.1} parent=27 // pred_check_branch
          %615 = sbr.rel (%p613) target = $region44
        $region43: #{precompute_text_features.1} parent=27 // pred_region
          %p616 = scmp.lt.s32.totalorder %s43, 1
          %s617 = scalar_select %p616, %s43, 1
          %s618 = smul.addr %s617, 2
          %s619 = scalar_lea.vmem %s5, %s618
        $region44: #{precompute_text_features.1} parent=27 // pred_fallthru
          _
        // Predicated region
        $region45: #{precompute_text_features.1} parent=27 // pred_check
          %p620 = pneg %p197
        $region46: #{precompute_text_features.1} parent=27 // pred_check_branch
          %622 = sbr.rel (%p620) target = $region48
        $region47: #{precompute_text_features.1} parent=27 // pred_region
          %p623 = scmp.lt.s32.totalorder %s43, 1
          %s624 = scalar_select %p623, %s43, 1
          %s625 = smul.addr %s624, 32
          %s626 = smul.addr %s625, 4
          %s627 = scalar_lea.vmem %s6, %s626
        $region48: #{precompute_text_features.1} parent=27 // pred_fallthru
          _
        // Predicated region
        $region49: #{precompute_text_features.1} parent=27 // pred_check
          %p628 = pneg %p223
        $region50: #{precompute_text_features.1} parent=27 // pred_check_branch
          %630 = sbr.rel (%p628) target = $region52
        $region51: #{precompute_text_features.1} parent=27 // pred_region
          %p631 = scmp.lt.s32.totalorder %s43, 1
          %s632 = scalar_select %p631, %s43, 1
          %s633 = smul.addr %s632, 2
          %s634 = scalar_lea.vmem %s7, %s633
        $region52: #{precompute_text_features.1} parent=27 // pred_fallthru
          _
        // Predicated region
        $region53: #{precompute_text_features.1} parent=27 // pred_check
          %p635 = pneg %p249
        $region54: #{precompute_text_features.1} parent=27 // pred_check_branch
          %637 = sbr.rel (%p635) target = $region56
        $region55: #{precompute_text_features.1} parent=27 // pred_region
          %p638 = scmp.lt.s32.totalorder %s43, 1
          %s639 = scalar_select %p638, %s43, 1
          %s640 = smul.addr %s639, 32
          %s641 = smul.addr %s640, 4
          %s642 = scalar_lea.vmem %s8, %s641
        $region56: #{precompute_text_features.1} parent=27 // pred_fallthru
          _
        // Predicated region
        $region57: #{precompute_text_features.1} parent=27 // pred_check
          %p643 = pneg %p275
        $region58: #{precompute_text_features.1} parent=27 // pred_check_branch
          %645 = sbr.rel (%p643) target = $region60
        $region59: #{precompute_text_features.1} parent=27 // pred_region
          %p646 = scmp.lt.s32.totalorder %s43, 1
          %s647 = scalar_select %p646, %s43, 1
          %s648 = smul.addr %s647, 2
          %s649 = scalar_lea.vmem %s9, %s648
        $region60: #{precompute_text_features.1} parent=27 // pred_fallthru
          _
        // Predicated region
        $region61: #{precompute_text_features.1} parent=27 // pred_check
          %p650 = pneg %p301
        $region62: #{precompute_text_features.1} parent=27 // pred_check_branch
          %652 = sbr.rel (%p650) target = $region64
        $region63: #{precompute_text_features.1} parent=27 // pred_region
          %s653 = sand.u32 %s291, 1
          %s654 = scalar_lea.sflag [#allocation6], %s653
          %s655 = sand.u32 %s291, 1
          %s656 = smul.addr %s655, 64
          %s657 = scalar_lea.vmem [#allocation5], %s656
          %s659 = ssub.s32 1024, 1024
          %660 = vsyncadd %s654, %s659
          %s661 = smul.addr %s43, 16
          %s662 = smul.addr %s661, 64
          %s663 = scalar_lea.hbm %s10, %s662
          %s664 = sshll.u32 %s657, 4
          %s665 = int_to_ptr.vmem [resolvable:$true] %s664
          %670 = dma.hbm_to_vmem [thread:$0]  %s663, 1024, %s665, %s654, 64, 64, 4
        $region64: #{precompute_text_features.1} parent=27 // pred_fallthru
          _
        // Predicated region
        $region65: #{precompute_text_features.1} parent=27 // pred_check
          %p671 = pneg %p327
        $region66: #{precompute_text_features.1} parent=27 // pred_check_branch
          %673 = sbr.rel (%p671) target = $region68
        $region67: #{precompute_text_features.1} parent=27 // pred_region
          %p674 = scmp.lt.s32.totalorder %s43, 1
          %s675 = scalar_select %p674, %s43, 1
          %s676 = scalar_lea.vmem %s11, %s675
        $region68: #{precompute_text_features.1} parent=27 // pred_fallthru
          _
        // Predicated region
        $region69: #{precompute_text_features.1} parent=27 // pred_check
          %p677 = pneg %p353
        $region70: #{precompute_text_features.1} parent=27 // pred_check_branch
          %679 = sbr.rel (%p677) target = $region72
        $region71: #{precompute_text_features.1} parent=27 // pred_region
          %p680 = scmp.lt.s32.totalorder %s43, 1
          %s681 = scalar_select %p680, %s43, 1
          %s682 = scalar_lea.vmem %s12, %s681
        $region72: #{precompute_text_features.1} parent=27 // pred_fallthru
          _
        // Predicated region
        $region73: #{precompute_text_features.1} parent=27 // pred_check
          %p683 = pneg %p379
        $region74: #{precompute_text_features.1} parent=27 // pred_check_branch
          %685 = sbr.rel (%p683) target = $region76
        $region75: #{precompute_text_features.1} parent=27 // pred_region
          %p686 = scmp.lt.s32.totalorder %s43, 1
          %s687 = scalar_select %p686, %s43, 1
          %s688 = scalar_lea.vmem %s13, %s687
        $region76: #{precompute_text_features.1} parent=27 // pred_fallthru
          _
        // Predicated region
        $region77: #{precompute_text_features.1} parent=27 // pred_check
          %p689 = pneg %p405
        $region78: #{precompute_text_features.1} parent=27 // pred_check_branch
          %691 = sbr.rel (%p689) target = $region80
        $region79: #{precompute_text_features.1} parent=27 // pred_region
          %p692 = scmp.lt.s32.totalorder %s43, 1
          %s693 = scalar_select %p692, %s43, 1
          %s694 = smul.addr %s693, 64
          %s695 = smul.addr %s694, 4
          %s696 = scalar_lea.vmem %s14, %s695
        $region80: #{precompute_text_features.1} parent=27 // pred_fallthru
          _
        // Predicated region
        $region81: #{precompute_text_features.1} parent=27 // pred_check
          %p697 = pneg %p431
        $region82: #{precompute_text_features.1} parent=27 // pred_check_branch
          %699 = sbr.rel (%p697) target = $region84
        $region83: #{precompute_text_features.1} parent=27 // pred_region
          %p700 = scmp.lt.s32.totalorder %s43, 1
          %s701 = scalar_select %p700, %s43, 1
          %s702 = smul.addr %s701, 4
          %s703 = scalar_lea.vmem %s15, %s702
        $region84: #{precompute_text_features.1} parent=27 // pred_fallthru
          _
        // Predicated region
        $region85: #{precompute_text_features.1} parent=27 // pred_check
          %p704 = pneg %p457
        $region86: #{precompute_text_features.1} parent=27 // pred_check_branch
          %706 = sbr.rel (%p704) target = $region88
        $region87: #{precompute_text_features.1} parent=27 // pred_region
          %p707 = scmp.lt.s32.totalorder %s43, 1
          %s708 = scalar_select %p707, %s43, 1
          %s709 = smul.addr %s708, 64
          %s710 = smul.addr %s709, 4
          %s711 = scalar_lea.vmem %s16, %s710
        $region88: #{precompute_text_features.1} parent=27 // pred_fallthru
          _
        // Predicated region
        $region89: #{precompute_text_features.1} parent=27 // pred_check
          %p712 = pneg %p483
        $region90: #{precompute_text_features.1} parent=27 // pred_check_branch
          %714 = sbr.rel (%p712) target = $region92
        $region91: #{precompute_text_features.1} parent=27 // pred_region
          %p715 = scmp.lt.s32.totalorder %s43, 1
          %s716 = scalar_select %p715, %s43, 1
          %s717 = scalar_lea.vmem %s17, %s716
        $region92: #{precompute_text_features.1} parent=27 // pred_fallthru
          _
      $region28: #{precompute_text_features.1} parent=5 // pred_fallthru
        _
      %p718 = scmp.le.s32.totalorder 1, %s35
      %p719 = scmp.lt.s32.totalorder %s35, 3
      %p720 = pnand %p718, %p719
      %p721 = pneg %p720
      // Predicated region
      $region93: #{precompute_text_features.1} parent=5 // pred_check
        _
      $region94: #{precompute_text_features.1} parent=5 // pred_check_branch
        %723 = sbr.rel (%p720) target = $region96
      $region95: #{precompute_text_features.1} parent=5 // pred_region
        %s724 = ssub.s32 %s35, 1
        %s725 = sand.u32 %s294, 1
        %s726 = scalar_lea.sflag [#allocation6], %s725
        %s727 = sand.u32 %s294, 1
        %s728 = smul.addr %s727, 64
        %s729 = scalar_lea.vmem [#allocation5], %s728
        // Predicated region
        $region97: #{precompute_text_features.1} parent=95 // pred_check
          %p730 = pneg %p307
        $region98: #{precompute_text_features.1} parent=95 // pred_check_branch
          %732 = sbr.rel (%p730) target = $region100
        $region99: #{precompute_text_features.1} parent=95 // pred_region
          %733 = dma.done %s726, 1024
        $region100: #{precompute_text_features.1} parent=95 // pred_fallthru
          _
        %s734 = smul.u32 3, %s44
        %p735 = scmp.lt.s32.totalorder %s734, 2
        %s736 = scalar_select %p735, %s734, 2
        %s737 = smul.addr %s736, 8
        %s738 = scalar_lea.vmem %s1, %s737
        %p739 = pneg %p73
        %p740 = pneg %p70
        %p741 = scmp.lt.s32.totalorder %s45, 1
        %s742 = scalar_select %p741, %s45, 1
        %s743 = scalar_lea.vmem %s2, %s742
        %p744 = pneg %p99
        %p745 = pneg %p96
        %p746 = scmp.lt.s32.totalorder %s45, 1
        %s747 = scalar_select %p746, %s45, 1
        %s748 = scalar_lea.vmem %s3, %s747
        %p749 = pneg %p125
        %p750 = pneg %p122
        %p751 = scmp.lt.s32.totalorder %s45, 1
        %s752 = scalar_select %p751, %s45, 1
        %s753 = smul.addr %s752, 32
        %s754 = smul.addr %s753, 4
        %s755 = scalar_lea.vmem %s4, %s754
        %p756 = pneg %p151
        %p757 = pneg %p148
        %p758 = scmp.lt.s32.totalorder %s45, 1
        %s759 = scalar_select %p758, %s45, 1
        %s760 = smul.addr %s759, 2
        %s761 = scalar_lea.vmem %s5, %s760
        %p762 = pneg %p177
        %p763 = pneg %p174
        %p764 = scmp.lt.s32.totalorder %s45, 1
        %s765 = scalar_select %p764, %s45, 1
        %s766 = smul.addr %s765, 32
        %s767 = smul.addr %s766, 4
        %s768 = scalar_lea.vmem %s6, %s767
        %p769 = pneg %p203
        %p770 = pneg %p200
        %p771 = scmp.lt.s32.totalorder %s45, 1
        %s772 = scalar_select %p771, %s45, 1
        %s773 = smul.addr %s772, 2
        %s774 = scalar_lea.vmem %s7, %s773
        %p775 = pneg %p229
        %p776 = pneg %p226
        %p777 = scmp.lt.s32.totalorder %s45, 1
        %s778 = scalar_select %p777, %s45, 1
        %s779 = smul.addr %s778, 32
        %s780 = smul.addr %s779, 4
        %s781 = scalar_lea.vmem %s8, %s780
        %p782 = pneg %p255
        %p783 = pneg %p252
        %p784 = scmp.lt.s32.totalorder %s45, 1
        %s785 = scalar_select %p784, %s45, 1
        %s786 = smul.addr %s785, 2
        %s787 = scalar_lea.vmem %s9, %s786
        %p788 = pneg %p281
        %p789 = pneg %p278
        %s790 = sand.u32 %s294, 1
        %s791 = scalar_lea.sflag [#allocation6], %s790
        %s792 = sand.u32 %s294, 1
        %s793 = smul.addr %s792, 64
        %s794 = scalar_lea.vmem [#allocation5], %s793
        %p795 = pneg %p307
        %p796 = pneg %p304
        %p797 = scmp.lt.s32.totalorder %s45, 1
        %s798 = scalar_select %p797, %s45, 1
        %s799 = scalar_lea.vmem %s11, %s798
        %p800 = pneg %p333
        %p801 = pneg %p330
        %p802 = scmp.lt.s32.totalorder %s45, 1
        %s803 = scalar_select %p802, %s45, 1
        %s804 = scalar_lea.vmem %s12, %s803
        %p805 = pneg %p359
        %p806 = pneg %p356
        %p807 = scmp.lt.s32.totalorder %s45, 1
        %s808 = scalar_select %p807, %s45, 1
        %s809 = scalar_lea.vmem %s13, %s808
        %p810 = pneg %p385
        %p811 = pneg %p382
        %p812 = scmp.lt.s32.totalorder %s45, 1
        %s813 = scalar_select %p812, %s45, 1
        %s814 = smul.addr %s813, 64
        %s815 = smul.addr %s814, 4
        %s816 = scalar_lea.vmem %s14, %s815
        %p817 = pneg %p411
        %p818 = pneg %p408
        %p819 = scmp.lt.s32.totalorder %s45, 1
        %s820 = scalar_select %p819, %s45, 1
        %s821 = smul.addr %s820, 4
        %s822 = scalar_lea.vmem %s15, %s821
        %p823 = pneg %p437
        %p824 = pneg %p434
        %p825 = scmp.lt.s32.totalorder %s45, 1
        %s826 = scalar_select %p825, %s45, 1
        %s827 = smul.addr %s826, 64
        %s828 = smul.addr %s827, 4
        %s829 = scalar_lea.vmem %s16, %s828
        %p830 = pneg %p463
        %p831 = pneg %p460
        %p832 = scmp.lt.s32.totalorder %s45, 1
        %s833 = scalar_select %p832, %s45, 1
        %s834 = scalar_lea.vmem %s17, %s833
        %p835 = pneg %p489
        %p836 = pneg %p486
        %p837 = pneg %p510
        %p838 = pneg %p507
        %p839 = pneg %p531
        %p840 = pneg %p528
        %p841 = pneg %p559
        %p842 = pneg %p556
        %p843 = scmp.lt.s32.totalorder %s44, 0
        %s844 = scalar_select %p843, %s44, 0
        %p845 = scmp.lt.s32.totalorder %s45, 1
        %s846 = scalar_select %p845, %s45, 1
        %s847 = smul.addr %s844, 2
        %s848 = sadd.s32 %s846, %s847
        %s849 = smul.addr %s848, 4
        %s850 = scalar_lea.vmem %s20, %s849
        %s851 = smul.u32 3, %s44
        %p852 = scmp.lt.s32.totalorder %s851, 2
        %s853 = scalar_select %p852, %s851, 2
        %s854 = smul.addr %s853, 8
        %s855 = scalar_lea.vmem %s1, %s854
        %s856 = smul.u32 3, %s44
        %p857 = scmp.lt.s32.totalorder %s45, 1
        %s858 = scalar_select %p857, %s45, 1
        %s859 = scalar_lea.vmem %s2, %s858
        %p860 = scmp.lt.s32.totalorder %s45, 1
        %s861 = scalar_select %p860, %s45, 1
        %s862 = scalar_lea.vmem %s3, %s861
        %p863 = scmp.lt.s32.totalorder %s45, 1
        %s864 = scalar_select %p863, %s45, 1
        %s865 = smul.addr %s864, 32
        %s866 = smul.addr %s865, 4
        %s867 = scalar_lea.vmem %s4, %s866
        %p868 = scmp.lt.s32.totalorder %s45, 1
        %s869 = scalar_select %p868, %s45, 1
        %s870 = smul.addr %s869, 2
        %s871 = scalar_lea.vmem %s5, %s870
        %p872 = scmp.lt.s32.totalorder %s45, 1
        %s873 = scalar_select %p872, %s45, 1
        %s874 = smul.addr %s873, 32
        %s875 = smul.addr %s874, 4
        %s876 = scalar_lea.vmem %s6, %s875
        %p877 = scmp.lt.s32.totalorder %s45, 1
        %s878 = scalar_select %p877, %s45, 1
        %s879 = smul.addr %s878, 2
        %s880 = scalar_lea.vmem %s7, %s879
        %p881 = scmp.lt.s32.totalorder %s45, 1
        %s882 = scalar_select %p881, %s45, 1
        %s883 = smul.addr %s882, 32
        %s884 = smul.addr %s883, 4
        %s885 = scalar_lea.vmem %s8, %s884
        %p886 = scmp.lt.s32.totalorder %s45, 1
        %s887 = scalar_select %p886, %s45, 1
        %s888 = smul.addr %s887, 2
        %s889 = scalar_lea.vmem %s9, %s888
        %p890 = scmp.lt.s32.totalorder %s45, 1
        %s891 = scalar_select %p890, %s45, 1
        %s892 = scalar_lea.vmem %s11, %s891
        %p893 = scmp.lt.s32.totalorder %s45, 1
        %s894 = scalar_select %p893, %s45, 1
        %s895 = scalar_lea.vmem %s12, %s894
        %p896 = scmp.lt.s32.totalorder %s45, 1
        %s897 = scalar_select %p896, %s45, 1
        %s898 = scalar_lea.vmem %s13, %s897
        %p899 = scmp.lt.s32.totalorder %s45, 1
        %s900 = scalar_select %p899, %s45, 1
        %s901 = smul.addr %s900, 64
        %s902 = smul.addr %s901, 4
        %s903 = scalar_lea.vmem %s14, %s902
        %p904 = scmp.lt.s32.totalorder %s45, 1
        %s905 = scalar_select %p904, %s45, 1
        %s906 = smul.addr %s905, 4
        %s907 = scalar_lea.vmem %s15, %s906
        %p908 = scmp.lt.s32.totalorder %s45, 1
        %s909 = scalar_select %p908, %s45, 1
        %s910 = smul.addr %s909, 64
        %s911 = smul.addr %s910, 4
        %s912 = scalar_lea.vmem %s16, %s911
        %p913 = scmp.lt.s32.totalorder %s45, 1
        %s914 = scalar_select %p913, %s45, 1
        %s915 = scalar_lea.vmem %s17, %s914
        %p916 = scmp.lt.s32.totalorder %s44, 0
        %s917 = scalar_select %p916, %s44, 0
        %p918 = scmp.lt.s32.totalorder %s45, 1
        %s919 = scalar_select %p918, %s45, 1
        %s920 = smul.addr %s917, 2
        %s921 = sadd.s32 %s919, %s920
        %s922 = smul.addr %s921, 4
        %s923 = scalar_lea.vmem %s20, %s922
        %p925 = scmp.eq.s32.totalorder %s45, 0
        // Predicated region
        $region101: #{precompute_text_features.1} parent=95 // pred_check
          %p926 = pneg %p925
        $region102: #{precompute_text_features.1} parent=95 // pred_check_branch
          %928 = sbr.rel (%p926) target = $region104
        $region103: #{precompute_text_features.1} parent=95 // pred_region
          %v929 = vld [vmem:[%s855] sm:$0xff]
          %v930 = vld [vmem:[%s855 + $0x8] sm:$0xff]
          %v931 = vld [vmem:[%s855 + $0x10] sm:$0xff]
          %932 = vst [vmem:[#allocation2] sm:$0xff] %v929
          %933 = vst [vmem:[#allocation2 + $0x8] sm:$0xff] %v930
          %934 = vst [vmem:[#allocation2 + $0x10] sm:$0xff] %v931
        $region104: #{precompute_text_features.1} parent=95 // pred_fallthru
          _
        %v935 = vlaneseq
        %v936 = vshrl.u32 %v935, 7
        %v937 = vlaneseq
        %v938 = vand.u32 %v937, 127
        %vm939 = vcmp.le.s32.totalorder %v938, %v936
        %v940 = vld [vmem:[#allocation2] sm:$0xff]
        %v941 = vld [vmem:[#allocation2 + $0x8] sm:$0xff]
        %v942 = vld [vmem:[#allocation2 + $0x10] sm:$0xff]
        %v943 = vld [vmem:[%s859] sm:$0x1]
        %v944 = vld [vmem:[%s862] sm:$0x1]
        %945 = vadd.xlane.f32.xlu0 %v940
        %v946 = vpop.xlane.xlu0 %945
        %947 = vadd.xlane.f32.xlu0 %v941
        %v948 = vpop.xlane.xlu0 %947
        %949 = vadd.xlane.f32.xlu0 %v942
        %v950 = vpop.xlane.xlu0 %949
        %v951 = vrcp.pop 128.0
        %v952 = vmul.f32 %v946, %v951
        %v953 = vmul.f32 %v948, %v951
        %v954 = vmul.f32 %v950, %v951
        %v955 = vsub.f32 %v940, %v952
        %v956 = vsub.f32 %v941, %v953
        %v957 = vsub.f32 %v942, %v954
        %v958 = vmul.f32 %v955, %v955
        %v959 = vmul.f32 %v956, %v956
        %v960 = vmul.f32 %v957, %v957
        %961 = vadd.xlane.f32.xlu0 %v958
        %v962 = vpop.xlane.xlu0 %961
        %963 = vadd.xlane.f32.xlu0 %v959
        %v964 = vpop.xlane.xlu0 %963
        %965 = vadd.xlane.f32.xlu0 %v960
        %v966 = vpop.xlane.xlu0 %965
        %v967 = vmul.f32 %v962, %v951
        %v968 = vmul.f32 %v964, %v951
        %v969 = vmul.f32 %v966, %v951
        %v970 = vadd.f32 %v967, 1e-05
        %v971 = vadd.f32 %v968, 1e-05
        %v972 = vadd.f32 %v969, 1e-05
        %v973 = vrsqrt.pop %v970
        %v974 = vrsqrt.pop %v971
        %v975 = vrsqrt.pop %v972
        %v976 = vmul.f32 %v955, %v973
        %v977 = vmul.f32 %v956, %v974
        %v978 = vmul.f32 %v957, %v975
        %v980 = vlaneseq
        %v981 = vshrl.u32 %v980, 7
        %v982 = vsub.s32 0, %v981
        %v983 = vrot.slane %v943, %v982
        %v985 = vmul.f32 %v976, %v983
        %v986 = vmul.f32 %v977, %v983
        %v987 = vmul.f32 %v978, %v983
        %v989 = vlaneseq
        %v990 = vshrl.u32 %v989, 7
        %v991 = vsub.s32 0, %v990
        %v992 = vrot.slane %v944, %v991
        %v994 = vadd.f32 %v985, %v992
        %v995 = vadd.f32 %v986, %v992
        %v996 = vadd.f32 %v987, %v992
        %v997 = vpack.c.bf16 %v995, %v994
        %v998 = vpack.c.bf16 %v996, %v996
        %v999 = vld [vmem:[%s867] sm:$0xf]
        %v1000 = vld [vmem:[%s867 + $0x4] sm:$0xf]
        %v1001 = vld [vmem:[%s867 + $0x8] sm:$0xf]
        %v1002 = vld [vmem:[%s867 + $0xc] sm:$0xf]
        %v1003 = vld [vmem:[%s867 + $0x10] sm:$0xf]
        %v1004 = vld [vmem:[%s867 + $0x14] sm:$0xf]
        %v1005 = vld [vmem:[%s867 + $0x18] sm:$0xf]
        %v1006 = vld [vmem:[%s867 + $0x1c] sm:$0xf]
        %v1007 = vld [vmem:[%s867 + $0x20] sm:$0xf]
        %v1008 = vld [vmem:[%s867 + $0x24] sm:$0xf]
        %v1009 = vld [vmem:[%s867 + $0x28] sm:$0xf]
        %v1010 = vld [vmem:[%s867 + $0x2c] sm:$0xf]
        %v1011 = vld [vmem:[%s867 + $0x30] sm:$0xf]
        %v1012 = vld [vmem:[%s867 + $0x34] sm:$0xf]
        %v1013 = vld [vmem:[%s867 + $0x38] sm:$0xf]
        %v1014 = vld [vmem:[%s867 + $0x3c] sm:$0xf]
        %v1015 = vld [vmem:[%s871] sm:$0x1]
        %v1017 = vlaneseq
        %v1018 = vshrl.u32 %v1017, 7
        %v1019 = vsub.s32 0, %v1018
        %v1020 = vrot.slane %v1015, %v1019
        %v1038 = vunpack.c.l.b16 %v999
        %v1039 = vunpack.c.l.b16 %v1000
        %v1040 = vunpack.c.l.b16 %v1001
        %v1041 = vunpack.c.l.b16 %v1002
        %v1042 = vunpack.c.l.b16 %v1003
        %v1043 = vunpack.c.l.b16 %v1004
        %v1044 = vunpack.c.l.b16 %v1005
        %v1045 = vunpack.c.l.b16 %v1006
        %v1046 = vunpack.c.l.b16 %v1007
        %v1047 = vunpack.c.l.b16 %v1008
        %v1048 = vunpack.c.l.b16 %v1009
        %v1049 = vunpack.c.l.b16 %v1010
        %v1050 = vunpack.c.l.b16 %v1011
        %v1051 = vunpack.c.l.b16 %v1012
        %v1052 = vunpack.c.l.b16 %v1013
        %v1053 = vunpack.c.l.b16 %v1014
        %v1054 = vpack.c.b16 %v1039, %v1038
        %v1055 = vpack.c.b16 %v1041, %v1040
        %v1056 = vpack.c.b16 %v1043, %v1042
        %v1057 = vpack.c.b16 %v1045, %v1044
        %v1058 = vpack.c.b16 %v1047, %v1046
        %v1059 = vpack.c.b16 %v1049, %v1048
        %v1060 = vpack.c.b16 %v1051, %v1050
        %v1061 = vpack.c.b16 %v1053, %v1052
        %1070 = vmatprep.subr.bf16.mxu0 0
        %1071 = vmatpush1.bf16.msra.mxu0 %v1054
        %1072 = vmatprep.subr.bf16.mxu0 0
        %1073 = vmatpush1.bf16.msra.mxu0 %v1055
        %1074 = vmatprep.subr.bf16.mxu0 0
        %1075 = vmatpush1.bf16.msra.mxu0 %v1056
        %1076 = vmatprep.subr.bf16.mxu0 0
        %1077 = vmatpush1.bf16.msra.mxu0 %v1057
        %1078 = vmatprep.subr.bf16.mxu0 0
        %1079 = vmatpush1.bf16.msra.mxu0 %v1058
        %1080 = vmatprep.subr.bf16.mxu0 0
        %1081 = vmatpush1.bf16.msra.mxu0 %v1059
        %1082 = vmatprep.subr.bf16.mxu0 0
        %1083 = vmatpush1.bf16.msra.mxu0 %v1060
        %1084 = vmatprep.subr.bf16.mxu0 0
        %1085 = vmatpush1.bf16.msra.mxu0 %v1061
        %1086 = vmatprep.subr.bf16.mxu0 0
        %1087 = vmatpush1.bf16.msra.mxu0 0
        %1088 = vmatprep.subr.bf16.mxu0 0
        %1089 = vmatpush1.bf16.msra.mxu0 0
        %1090 = vmatprep.subr.bf16.mxu0 0
        %1091 = vmatpush1.bf16.msra.mxu0 0
        %1092 = vmatprep.subr.bf16.mxu0 0
        %1093 = vmatpush1.bf16.msra.mxu0 0
        %1094 = vmatprep.subr.bf16.mxu0 0
        %1095 = vmatpush1.bf16.msra.mxu0 0
        %1096 = vmatprep.subr.bf16.mxu0 0
        %1097 = vmatpush1.bf16.msra.mxu0 0
        %1098 = vmatprep.subr.bf16.mxu0 0
        %1099 = vmatpush1.bf16.msra.mxu0 0
        %1100 = vmatprep.subr.bf16.mxu0 0
        %1101 = vmatpush1.bf16.msra.mxu0 0
        %1102 = vmatprep.mubr.bf16.mxu0 0
        %1103 = vmatmul.mubr.bf16.gmra.mrb[0].mxu0 %v997
        %v1104 = vpop.f32.mrb[0].mxu0
        %v1105 = vadd.f32 %v1020, %v1104
        %v1106 = vpop.f32.mrb[0].mxu0
        %v1107 = vpop.f32.mrb[0].mxu0
        %v1108 = vadd.f32 %v1020, %v1107
        %v1109 = vpop.f32.mrb[0].mxu0
        %1110 = vmatprep.mubr.bf16.mxu0 0
        %1111 = vmatmul.mubr.bf16.gmra.mrb[0].mxu0 %v998
        %v1112 = vpop.f32.mrb[0].mxu0
        %v1113 = vadd.f32 %v1020, %v1112
        %v1114 = vpop.f32.mrb[0].mxu0
        %v1115 = vpop.f32.mrb[0].mxu0
        %v1116 = vpop.f32.mrb[0].mxu0
        %1117 = vdwg.mxu0
        %v1118 = vld [vmem:[%s876] sm:$0xf]
        %v1119 = vld [vmem:[%s876 + $0x4] sm:$0xf]
        %v1120 = vld [vmem:[%s876 + $0x8] sm:$0xf]
        %v1121 = vld [vmem:[%s876 + $0xc] sm:$0xf]
        %v1122 = vld [vmem:[%s876 + $0x10] sm:$0xf]
        %v1123 = vld [vmem:[%s876 + $0x14] sm:$0xf]
        %v1124 = vld [vmem:[%s876 + $0x18] sm:$0xf]
        %v1125 = vld [vmem:[%s876 + $0x1c] sm:$0xf]
        %v1126 = vld [vmem:[%s876 + $0x20] sm:$0xf]
        %v1127 = vld [vmem:[%s876 + $0x24] sm:$0xf]
        %v1128 = vld [vmem:[%s876 + $0x28] sm:$0xf]
        %v1129 = vld [vmem:[%s876 + $0x2c] sm:$0xf]
        %v1130 = vld [vmem:[%s876 + $0x30] sm:$0xf]
        %v1131 = vld [vmem:[%s876 + $0x34] sm:$0xf]
        %v1132 = vld [vmem:[%s876 + $0x38] sm:$0xf]
        %v1133 = vld [vmem:[%s876 + $0x3c] sm:$0xf]
        %v1134 = vld [vmem:[%s880] sm:$0x1]
        %v1136 = vlaneseq
        %v1137 = vshrl.u32 %v1136, 7
        %v1138 = vsub.s32 0, %v1137
        %v1139 = vrot.slane %v1134, %v1138
        %v1157 = vunpack.c.l.b16 %v1118
        %v1158 = vunpack.c.l.b16 %v1119
        %v1159 = vunpack.c.l.b16 %v1120
        %v1160 = vunpack.c.l.b16 %v1121
        %v1161 = vunpack.c.l.b16 %v1122
        %v1162 = vunpack.c.l.b16 %v1123
        %v1163 = vunpack.c.l.b16 %v1124
        %v1164 = vunpack.c.l.b16 %v1125
        %v1165 = vunpack.c.l.b16 %v1126
        %v1166 = vunpack.c.l.b16 %v1127
        %v1167 = vunpack.c.l.b16 %v1128
        %v1168 = vunpack.c.l.b16 %v1129
        %v1169 = vunpack.c.l.b16 %v1130
        %v1170 = vunpack.c.l.b16 %v1131
        %v1171 = vunpack.c.l.b16 %v1132
        %v1172 = vunpack.c.l.b16 %v1133
        %v1173 = vpack.c.b16 %v1158, %v1157
        %v1174 = vpack.c.b16 %v1160, %v1159
        %v1175 = vpack.c.b16 %v1162, %v1161
        %v1176 = vpack.c.b16 %v1164, %v1163
        %v1177 = vpack.c.b16 %v1166, %v1165
        %v1178 = vpack.c.b16 %v1168, %v1167
        %v1179 = vpack.c.b16 %v1170, %v1169
        %v1180 = vpack.c.b16 %v1172, %v1171
        %1189 = vmatprep.subr.bf16.mxu0 0
        %1190 = vmatpush1.bf16.msra.mxu0 %v1173
        %1191 = vmatprep.subr.bf16.mxu0 0
        %1192 = vmatpush1.bf16.msra.mxu0 %v1174
        %1193 = vmatprep.subr.bf16.mxu0 0
        %1194 = vmatpush1.bf16.msra.mxu0 %v1175
        %1195 = vmatprep.subr.bf16.mxu0 0
        %1196 = vmatpush1.bf16.msra.mxu0 %v1176
        %1197 = vmatprep.subr.bf16.mxu0 0
        %1198 = vmatpush1.bf16.msra.mxu0 %v1177
        %1199 = vmatprep.subr.bf16.mxu0 0
        %1200 = vmatpush1.bf16.msra.mxu0 %v1178
        %1201 = vmatprep.subr.bf16.mxu0 0
        %1202 = vmatpush1.bf16.msra.mxu0 %v1179
        %1203 = vmatprep.subr.bf16.mxu0 0
        %1204 = vmatpush1.bf16.msra.mxu0 %v1180
        %1205 = vmatprep.subr.bf16.mxu0 0
        %1206 = vmatpush1.bf16.msra.mxu0 0
        %1207 = vmatprep.subr.bf16.mxu0 0
        %1208 = vmatpush1.bf16.msra.mxu0 0
        %1209 = vmatprep.subr.bf16.mxu0 0
        %1210 = vmatpush1.bf16.msra.mxu0 0
        %1211 = vmatprep.subr.bf16.mxu0 0
        %1212 = vmatpush1.bf16.msra.mxu0 0
        %1213 = vmatprep.subr.bf16.mxu0 0
        %1214 = vmatpush1.bf16.msra.mxu0 0
        %1215 = vmatprep.subr.bf16.mxu0 0
        %1216 = vmatpush1.bf16.msra.mxu0 0
        %1217 = vmatprep.subr.bf16.mxu0 0
        %1218 = vmatpush1.bf16.msra.mxu0 0
        %1219 = vmatprep.subr.bf16.mxu0 0
        %1220 = vmatpush1.bf16.msra.mxu0 0
        %1221 = vmatprep.mubr.bf16.mxu0 0
        %1222 = vmatmul.mubr.bf16.gmra.mrb[0].mxu0 %v997
        %v1223 = vpop.f32.mrb[0].mxu0
        %v1224 = vadd.f32 %v1139, %v1223
        %v1225 = vpop.f32.mrb[0].mxu0
        %v1226 = vpop.f32.mrb[0].mxu0
        %v1227 = vadd.f32 %v1139, %v1226
        %v1228 = vpop.f32.mrb[0].mxu0
        %1229 = vmatprep.mubr.bf16.mxu0 0
        %1230 = vmatmul.mubr.bf16.gmra.mrb[0].mxu0 %v998
        %v1231 = vpop.f32.mrb[0].mxu0
        %v1232 = vadd.f32 %v1139, %v1231
        %v1233 = vpop.f32.mrb[0].mxu0
        %v1234 = vpop.f32.mrb[0].mxu0
        %v1235 = vpop.f32.mrb[0].mxu0
        %1236 = vdwg.mxu0
        %v1237 = vld [vmem:[%s885] sm:$0xf]
        %v1238 = vld [vmem:[%s885 + $0x4] sm:$0xf]
        %v1239 = vld [vmem:[%s885 + $0x8] sm:$0xf]
        %v1240 = vld [vmem:[%s885 + $0xc] sm:$0xf]
        %v1241 = vld [vmem:[%s885 + $0x10] sm:$0xf]
        %v1242 = vld [vmem:[%s885 + $0x14] sm:$0xf]
        %v1243 = vld [vmem:[%s885 + $0x18] sm:$0xf]
        %v1244 = vld [vmem:[%s885 + $0x1c] sm:$0xf]
        %v1245 = vld [vmem:[%s885 + $0x20] sm:$0xf]
        %v1246 = vld [vmem:[%s885 + $0x24] sm:$0xf]
        %v1247 = vld [vmem:[%s885 + $0x28] sm:$0xf]
        %v1248 = vld [vmem:[%s885 + $0x2c] sm:$0xf]
        %v1249 = vld [vmem:[%s885 + $0x30] sm:$0xf]
        %v1250 = vld [vmem:[%s885 + $0x34] sm:$0xf]
        %v1251 = vld [vmem:[%s885 + $0x38] sm:$0xf]
        %v1252 = vld [vmem:[%s885 + $0x3c] sm:$0xf]
        %v1253 = vld [vmem:[%s889] sm:$0x1]
        %v1255 = vlaneseq
        %v1256 = vshrl.u32 %v1255, 7
        %v1257 = vsub.s32 0, %v1256
        %v1258 = vrot.slane %v1253, %v1257
        %v1276 = vunpack.c.l.b16 %v1237
        %v1277 = vunpack.c.l.b16 %v1238
        %v1278 = vunpack.c.l.b16 %v1239
        %v1279 = vunpack.c.l.b16 %v1240
        %v1280 = vunpack.c.l.b16 %v1241
        %v1281 = vunpack.c.l.b16 %v1242
        %v1282 = vunpack.c.l.b16 %v1243
        %v1283 = vunpack.c.l.b16 %v1244
        %v1284 = vunpack.c.l.b16 %v1245
        %v1285 = vunpack.c.l.b16 %v1246
        %v1286 = vunpack.c.l.b16 %v1247
        %v1287 = vunpack.c.l.b16 %v1248
        %v1288 = vunpack.c.l.b16 %v1249
        %v1289 = vunpack.c.l.b16 %v1250
        %v1290 = vunpack.c.l.b16 %v1251
        %v1291 = vunpack.c.l.b16 %v1252
        %v1292 = vpack.c.b16 %v1277, %v1276
        %v1293 = vpack.c.b16 %v1279, %v1278
        %v1294 = vpack.c.b16 %v1281, %v1280
        %v1295 = vpack.c.b16 %v1283, %v1282
        %v1296 = vpack.c.b16 %v1285, %v1284
        %v1297 = vpack.c.b16 %v1287, %v1286
        %v1298 = vpack.c.b16 %v1289, %v1288
        %v1299 = vpack.c.b16 %v1291, %v1290
        %1308 = vmatprep.subr.bf16.mxu0 0
        %1309 = vmatpush1.bf16.msra.mxu0 %v1292
        %1310 = vmatprep.subr.bf16.mxu0 0
        %1311 = vmatpush1.bf16.msra.mxu0 %v1293
        %1312 = vmatprep.subr.bf16.mxu0 0
        %1313 = vmatpush1.bf16.msra.mxu0 %v1294
        %1314 = vmatprep.subr.bf16.mxu0 0
        %1315 = vmatpush1.bf16.msra.mxu0 %v1295
        %1316 = vmatprep.subr.bf16.mxu0 0
        %1317 = vmatpush1.bf16.msra.mxu0 %v1296
        %1318 = vmatprep.subr.bf16.mxu0 0
        %1319 = vmatpush1.bf16.msra.mxu0 %v1297
        %1320 = vmatprep.subr.bf16.mxu0 0
        %1321 = vmatpush1.bf16.msra.mxu0 %v1298
        %1322 = vmatprep.subr.bf16.mxu0 0
        %1323 = vmatpush1.bf16.msra.mxu0 %v1299
        %1324 = vmatprep.subr.bf16.mxu0 0
        %1325 = vmatpush1.bf16.msra.mxu0 0
        %1326 = vmatprep.subr.bf16.mxu0 0
        %1327 = vmatpush1.bf16.msra.mxu0 0
        %1328 = vmatprep.subr.bf16.mxu0 0
        %1329 = vmatpush1.bf16.msra.mxu0 0
        %1330 = vmatprep.subr.bf16.mxu0 0
        %1331 = vmatpush1.bf16.msra.mxu0 0
        %1332 = vmatprep.subr.bf16.mxu0 0
        %1333 = vmatpush1.bf16.msra.mxu0 0
        %1334 = vmatprep.subr.bf16.mxu0 0
        %1335 = vmatpush1.bf16.msra.mxu0 0
        %1336 = vmatprep.subr.bf16.mxu0 0
        %1337 = vmatpush1.bf16.msra.mxu0 0
        %1338 = vmatprep.subr.bf16.mxu0 0
        %1339 = vmatpush1.bf16.msra.mxu0 0
        %1340 = vmatprep.mubr.bf16.mxu0 0
        %1341 = vmatmul.mubr.bf16.gmra.mrb[0].mxu0 %v997
        %v1342 = vpop.f32.mrb[0].mxu0
        %v1343 = vadd.f32 %v1258, %v1342
        %v1344 = vpop.f32.mrb[0].mxu0
        %v1345 = vpop.f32.mrb[0].mxu0
        %v1346 = vadd.f32 %v1258, %v1345
        %v1347 = vpop.f32.mrb[0].mxu0
        %1348 = vmatprep.mubr.bf16.mxu0 0
        %1349 = vmatmul.mubr.bf16.gmra.mrb[0].mxu0 %v998
        %v1350 = vpop.f32.mrb[0].mxu0
        %v1351 = vadd.f32 %v1258, %v1350
        %v1352 = vpop.f32.mrb[0].mxu0
        %v1353 = vpop.f32.mrb[0].mxu0
        %v1354 = vpop.f32.mrb[0].mxu0
        %1355 = vdwg.mxu0
        %v1356 = vpack.c.bf16 %v1105, %v1105
        %v1357 = vpack.c.bf16 %v1108, %v1108
        %v1358 = vpack.c.bf16 %v1113, %v1113
        %v1359 = vpack.c.bf16 %v1224, %v1224
        %v1360 = vpack.c.bf16 %v1227, %v1227
        %v1361 = vpack.c.bf16 %v1232, %v1232
        %vm1362 = vcmask 523264
        %v1364 = vsel %vm1362, %v1356, 0
        %v1367 = vsel %vm1362, %v1359, 0
        %1369 = vmatprep.subr.bf16.mxu0 0
        %1370 = vmatpush1.bf16.xpose.msra.mxu0 %v1367
        %1371 = vmatprep.subr.bf16.mxu0 0
        %1372 = vmatpush1.bf16.xpose.msra.mxu0 0
        %1373 = vmatprep.subr.bf16.mxu0 0
        %1374 = vmatpush1.bf16.xpose.msra.mxu0 0
        %1375 = vmatprep.subr.bf16.mxu0 0
        %1376 = vmatpush1.bf16.xpose.msra.mxu0 0
        %1377 = vmatprep.subr.bf16.mxu0 0
        %1378 = vmatpush1.bf16.xpose.msra.mxu0 0
        %1379 = vmatprep.subr.bf16.mxu0 0
        %1380 = vmatpush1.bf16.xpose.msra.mxu0 0
        %1381 = vmatprep.subr.bf16.mxu0 0
        %1382 = vmatpush1.bf16.xpose.msra.mxu0 0
        %1383 = vmatprep.subr.bf16.mxu0 0
        %1384 = vmatpush1.bf16.xpose.msra.mxu0 0
        %1385 = vmatprep.subr.bf16.mxu0 0
        %1386 = vmatpush1.bf16.xpose.msra.mxu0 0
        %1387 = vmatprep.subr.bf16.mxu0 0
        %1388 = vmatpush1.bf16.xpose.msra.mxu0 0
        %1389 = vmatprep.subr.bf16.mxu0 0
        %1390 = vmatpush1.bf16.xpose.msra.mxu0 0
        %1391 = vmatprep.subr.bf16.mxu0 0
        %1392 = vmatpush1.bf16.xpose.msra.mxu0 0
        %1393 = vmatprep.subr.bf16.mxu0 0
        %1394 = vmatpush1.bf16.xpose.msra.mxu0 0
        %1395 = vmatprep.subr.bf16.mxu0 0
        %1396 = vmatpush1.bf16.xpose.msra.mxu0 0
        %1397 = vmatprep.subr.bf16.mxu0 0
        %1398 = vmatpush1.bf16.xpose.msra.mxu0 0
        %1399 = vmatprep.subr.bf16.mxu0 0
        %1400 = vmatpush1.bf16.xpose.msra.mxu0 0
        %1401 = vmatprep.mubr.bf16.mxu0 0
        %1402 = vmatmul.mubr.bf16.gmra.mrb[0].mxu0 %v1364
        %v1403 = vpop.f32.mrb[0].mxu0
        %v1404 = vadd.f32 0.0, %v1403
        %v1405 = vpop.f32.mrb[0].mxu0
        %v1406 = vpop.f32.mrb[0].mxu0
        %v1407 = vpop.f32.mrb[0].mxu0
        %1408 = vdwg.mxu0
        %v1410 = vsel %vm1362, %v1357, 0
        %v1413 = vsel %vm1362, %v1360, 0
        %1415 = vmatprep.subr.bf16.mxu0 0
        %1416 = vmatpush1.bf16.xpose.msra.mxu0 %v1413
        %1417 = vmatprep.subr.bf16.mxu0 0
        %1418 = vmatpush1.bf16.xpose.msra.mxu0 0
        %1419 = vmatprep.subr.bf16.mxu0 0
        %1420 = vmatpush1.bf16.xpose.msra.mxu0 0
        %1421 = vmatprep.subr.bf16.mxu0 0
        %1422 = vmatpush1.bf16.xpose.msra.mxu0 0
        %1423 = vmatprep.subr.bf16.mxu0 0
        %1424 = vmatpush1.bf16.xpose.msra.mxu0 0
        %1425 = vmatprep.subr.bf16.mxu0 0
        %1426 = vmatpush1.bf16.xpose.msra.mxu0 0
        %1427 = vmatprep.subr.bf16.mxu0 0
        %1428 = vmatpush1.bf16.xpose.msra.mxu0 0
        %1429 = vmatprep.subr.bf16.mxu0 0
        %1430 = vmatpush1.bf16.xpose.msra.mxu0 0
        %1431 = vmatprep.subr.bf16.mxu0 0
        %1432 = vmatpush1.bf16.xpose.msra.mxu0 0
        %1433 = vmatprep.subr.bf16.mxu0 0
        %1434 = vmatpush1.bf16.xpose.msra.mxu0 0
        %1435 = vmatprep.subr.bf16.mxu0 0
        %1436 = vmatpush1.bf16.xpose.msra.mxu0 0
        %1437 = vmatprep.subr.bf16.mxu0 0
        %1438 = vmatpush1.bf16.xpose.msra.mxu0 0
        %1439 = vmatprep.subr.bf16.mxu0 0
        %1440 = vmatpush1.bf16.xpose.msra.mxu0 0
        %1441 = vmatprep.subr.bf16.mxu0 0
        %1442 = vmatpush1.bf16.xpose.msra.mxu0 0
        %1443 = vmatprep.subr.bf16.mxu0 0
        %1444 = vmatpush1.bf16.xpose.msra.mxu0 0
        %1445 = vmatprep.subr.bf16.mxu0 0
        %1446 = vmatpush1.bf16.xpose.msra.mxu0 0
        %1447 = vmatprep.mubr.bf16.mxu0 0
        %1448 = vmatmul.mubr.bf16.gmra.mrb[0].mxu0 %v1410
        %v1449 = vpop.f32.mrb[0].mxu0
        %v1450 = vadd.f32 0.0, %v1449
        %v1451 = vpop.f32.mrb[0].mxu0
        %v1452 = vpop.f32.mrb[0].mxu0
        %v1453 = vpop.f32.mrb[0].mxu0
        %1454 = vdwg.mxu0
        %v1456 = vsel %vm1362, %v1358, 0
        %v1459 = vsel %vm1362, %v1361, 0
        %1461 = vmatprep.subr.bf16.mxu0 0
        %1462 = vmatpush1.bf16.xpose.msra.mxu0 %v1459
        %1463 = vmatprep.subr.bf16.mxu0 0
        %1464 = vmatpush1.bf16.xpose.msra.mxu0 0
        %1465 = vmatprep.subr.bf16.mxu0 0
        %1466 = vmatpush1.bf16.xpose.msra.mxu0 0
        %1467 = vmatprep.subr.bf16.mxu0 0
        %1468 = vmatpush1.bf16.xpose.msra.mxu0 0
        %1469 = vmatprep.subr.bf16.mxu0 0
        %1470 = vmatpush1.bf16.xpose.msra.mxu0 0
        %1471 = vmatprep.subr.bf16.mxu0 0
        %1472 = vmatpush1.bf16.xpose.msra.mxu0 0
        %1473 = vmatprep.subr.bf16.mxu0 0
        %1474 = vmatpush1.bf16.xpose.msra.mxu0 0
        %1475 = vmatprep.subr.bf16.mxu0 0
        %1476 = vmatpush1.bf16.xpose.msra.mxu0 0
        %1477 = vmatprep.subr.bf16.mxu0 0
        %1478 = vmatpush1.bf16.xpose.msra.mxu0 0
        %1479 = vmatprep.subr.bf16.mxu0 0
        %1480 = vmatpush1.bf16.xpose.msra.mxu0 0
        %1481 = vmatprep.subr.bf16.mxu0 0
        %1482 = vmatpush1.bf16.xpose.msra.mxu0 0
        %1483 = vmatprep.subr.bf16.mxu0 0
        %1484 = vmatpush1.bf16.xpose.msra.mxu0 0
        %1485 = vmatprep.subr.bf16.mxu0 0
        %1486 = vmatpush1.bf16.xpose.msra.mxu0 0
        %1487 = vmatprep.subr.bf16.mxu0 0
        %1488 = vmatpush1.bf16.xpose.msra.mxu0 0
        %1489 = vmatprep.subr.bf16.mxu0 0
        %1490 = vmatpush1.bf16.xpose.msra.mxu0 0
        %1491 = vmatprep.subr.bf16.mxu0 0
        %1492 = vmatpush1.bf16.xpose.msra.mxu0 0
        %1493 = vmatprep.mubr.bf16.mxu0 0
        %1494 = vmatmul.mubr.bf16.gmra.mrb[0].mxu0 %v1456
        %v1495 = vpop.f32.mrb[0].mxu0
        %v1496 = vadd.f32 0.0, %v1495
        %v1497 = vpop.f32.mrb[0].mxu0
        %v1498 = vpop.f32.mrb[0].mxu0
        %v1499 = vpop.f32.mrb[0].mxu0
        %1500 = vdwg.mxu0
        %v1501 = vmul.f32 %v1404, 0.125
        %v1502 = vmul.f32 %v1450, 0.125
        %v1503 = vmul.f32 %v1496, 0.125
        %v1504 = vsel %vm939, 1, 0
        %vm1505 = vcmp.eq.s32.totalorder %v1504, 1
        %v1506 = vsel %vm1505, %v1501, -1e+30
        %v1507 = vsel %vm1505, %v1502, -1e+30
        %v1508 = vsel %vm1505, %v1503, -1e+30
        %vm1509 = vcmask 64512
        %v1510 = vsel %vm1509, %v1506, -inf
        %1511 = vmax.xlane.f32.xlu0 %v1510
        %v1512 = vpop.xlane.xlu0 %1511
        %v1513 = vsel %vm1509, %v1507, -inf
        %1514 = vmax.xlane.f32.xlu0 %v1513
        %v1515 = vpop.xlane.xlu0 %1514
        %v1516 = vsel %vm1509, %v1508, -inf
        %1517 = vmax.xlane.f32.xlu0 %v1516
        %v1518 = vpop.xlane.xlu0 %1517
        %v1519 = vsub.f32 %v1506, %v1512
        %v1520 = vsub.f32 %v1507, %v1515
        %v1521 = vsub.f32 %v1508, %v1518
        %v1522 = vmul.f32 %v1519, 1.442695
        %v1523 = vpow.pop %v1522
        %v1524 = vmul.f32 %v1520, 1.442695
        %v1525 = vpow.pop %v1524
        %v1526 = vmul.f32 %v1521, 1.442695
        %v1527 = vpow.pop %v1526
        %v1528 = vsel %vm1509, %v1523, 0.0
        %1529 = vadd.xlane.f32.xlu0 %v1528
        %v1530 = vpop.xlane.xlu0 %1529
        %v1531 = vsel %vm1509, %v1525, 0.0
        %1532 = vadd.xlane.f32.xlu0 %v1531
        %v1533 = vpop.xlane.xlu0 %1532
        %v1534 = vsel %vm1509, %v1527, 0.0
        %1535 = vadd.xlane.f32.xlu0 %v1534
        %v1536 = vpop.xlane.xlu0 %1535
        %v1537 = vrcp.pop %v1530
        %v1538 = vrcp.pop %v1533
        %v1539 = vrcp.pop %v1536
        %v1540 = vmul.f32 %v1523, %v1537
        %v1541 = vmul.f32 %v1525, %v1538
        %v1542 = vmul.f32 %v1527, %v1539
        %v1543 = vpack.c.bf16 %v1540, %v1540
        %v1544 = vpack.c.bf16 %v1541, %v1541
        %v1545 = vpack.c.bf16 %v1542, %v1542
        %v1546 = vpack.c.bf16 %v1343, %v1343
        %v1547 = vpack.c.bf16 %v1346, %v1346
        %v1548 = vpack.c.bf16 %v1351, %v1351
        %v1550 = vsel %vm1509, %v1543, 0
        %vm1552 = vcmask 1043456
        %v1554 = vsel %vm1552, %v1546, 0
        %1556 = vmatprep.subr.bf16.mxu0 0
        %1557 = vmatpush1.bf16.msra.mxu0 %v1554
        %1558 = vmatprep.subr.bf16.mxu0 0
        %1559 = vmatpush1.bf16.msra.mxu0 0
        %1560 = vmatprep.subr.bf16.mxu0 0
        %1561 = vmatpush1.bf16.msra.mxu0 0
        %1562 = vmatprep.subr.bf16.mxu0 0
        %1563 = vmatpush1.bf16.msra.mxu0 0
        %1564 = vmatprep.subr.bf16.mxu0 0
        %1565 = vmatpush1.bf16.msra.mxu0 0
        %1566 = vmatprep.subr.bf16.mxu0 0
        %1567 = vmatpush1.bf16.msra.mxu0 0
        %1568 = vmatprep.subr.bf16.mxu0 0
        %1569 = vmatpush1.bf16.msra.mxu0 0
        %1570 = vmatprep.subr.bf16.mxu0 0
        %1571 = vmatpush1.bf16.msra.mxu0 0
        %1572 = vmatprep.subr.bf16.mxu0 0
        %1573 = vmatpush1.bf16.msra.mxu0 0
        %1574 = vmatprep.subr.bf16.mxu0 0
        %1575 = vmatpush1.bf16.msra.mxu0 0
        %1576 = vmatprep.subr.bf16.mxu0 0
        %1577 = vmatpush1.bf16.msra.mxu0 0
        %1578 = vmatprep.subr.bf16.mxu0 0
        %1579 = vmatpush1.bf16.msra.mxu0 0
        %1580 = vmatprep.subr.bf16.mxu0 0
        %1581 = vmatpush1.bf16.msra.mxu0 0
        %1582 = vmatprep.subr.bf16.mxu0 0
        %1583 = vmatpush1.bf16.msra.mxu0 0
        %1584 = vmatprep.subr.bf16.mxu0 0
        %1585 = vmatpush1.bf16.msra.mxu0 0
        %1586 = vmatprep.subr.bf16.mxu0 0
        %1587 = vmatpush1.bf16.msra.mxu0 0
        %1588 = vmatprep.mubr.bf16.mxu0 0
        %1589 = vmatmul.mubr.bf16.gmra.mrb[0].mxu0 %v1550
        %v1590 = vpop.f32.mrb[0].mxu0
        %v1591 = vadd.f32 0.0, %v1590
        %v1592 = vpop.f32.mrb[0].mxu0
        %v1593 = vpop.f32.mrb[0].mxu0
        %v1594 = vpop.f32.mrb[0].mxu0
        %1595 = vdwg.mxu0
        %v1597 = vsel %vm1509, %v1544, 0
        %v1600 = vsel %vm1552, %v1547, 0
        %1602 = vmatprep.subr.bf16.mxu0 0
        %1603 = vmatpush1.bf16.msra.mxu0 %v1600
        %1604 = vmatprep.subr.bf16.mxu0 0
        %1605 = vmatpush1.bf16.msra.mxu0 0
        %1606 = vmatprep.subr.bf16.mxu0 0
        %1607 = vmatpush1.bf16.msra.mxu0 0
        %1608 = vmatprep.subr.bf16.mxu0 0
        %1609 = vmatpush1.bf16.msra.mxu0 0
        %1610 = vmatprep.subr.bf16.mxu0 0
        %1611 = vmatpush1.bf16.msra.mxu0 0
        %1612 = vmatprep.subr.bf16.mxu0 0
        %1613 = vmatpush1.bf16.msra.mxu0 0
        %1614 = vmatprep.subr.bf16.mxu0 0
        %1615 = vmatpush1.bf16.msra.mxu0 0
        %1616 = vmatprep.subr.bf16.mxu0 0
        %1617 = vmatpush1.bf16.msra.mxu0 0
        %1618 = vmatprep.subr.bf16.mxu0 0
        %1619 = vmatpush1.bf16.msra.mxu0 0
        %1620 = vmatprep.subr.bf16.mxu0 0
        %1621 = vmatpush1.bf16.msra.mxu0 0
        %1622 = vmatprep.subr.bf16.mxu0 0
        %1623 = vmatpush1.bf16.msra.mxu0 0
        %1624 = vmatprep.subr.bf16.mxu0 0
        %1625 = vmatpush1.bf16.msra.mxu0 0
        %1626 = vmatprep.subr.bf16.mxu0 0
        %1627 = vmatpush1.bf16.msra.mxu0 0
        %1628 = vmatprep.subr.bf16.mxu0 0
        %1629 = vmatpush1.bf16.msra.mxu0 0
        %1630 = vmatprep.subr.bf16.mxu0 0
        %1631 = vmatpush1.bf16.msra.mxu0 0
        %1632 = vmatprep.subr.bf16.mxu0 0
        %1633 = vmatpush1.bf16.msra.mxu0 0
        %1634 = vmatprep.mubr.bf16.mxu0 0
        %1635 = vmatmul.mubr.bf16.gmra.mrb[0].mxu0 %v1597
        %v1636 = vpop.f32.mrb[0].mxu0
        %v1637 = vadd.f32 0.0, %v1636
        %v1638 = vpop.f32.mrb[0].mxu0
        %v1639 = vpop.f32.mrb[0].mxu0
        %v1640 = vpop.f32.mrb[0].mxu0
        %1641 = vdwg.mxu0
        %v1643 = vsel %vm1509, %v1545, 0
        %v1646 = vsel %vm1552, %v1548, 0
        %1648 = vmatprep.subr.bf16.mxu0 0
        %1649 = vmatpush1.bf16.msra.mxu0 %v1646
        %1650 = vmatprep.subr.bf16.mxu0 0
        %1651 = vmatpush1.bf16.msra.mxu0 0
        %1652 = vmatprep.subr.bf16.mxu0 0
        %1653 = vmatpush1.bf16.msra.mxu0 0
        %1654 = vmatprep.subr.bf16.mxu0 0
        %1655 = vmatpush1.bf16.msra.mxu0 0
        %1656 = vmatprep.subr.bf16.mxu0 0
        %1657 = vmatpush1.bf16.msra.mxu0 0
        %1658 = vmatprep.subr.bf16.mxu0 0
        %1659 = vmatpush1.bf16.msra.mxu0 0
        %1660 = vmatprep.subr.bf16.mxu0 0
        %1661 = vmatpush1.bf16.msra.mxu0 0
        %1662 = vmatprep.subr.bf16.mxu0 0
        %1663 = vmatpush1.bf16.msra.mxu0 0
        %1664 = vmatprep.subr.bf16.mxu0 0
        %1665 = vmatpush1.bf16.msra.mxu0 0
        %1666 = vmatprep.subr.bf16.mxu0 0
        %1667 = vmatpush1.bf16.msra.mxu0 0
        %1668 = vmatprep.subr.bf16.mxu0 0
        %1669 = vmatpush1.bf16.msra.mxu0 0
        %1670 = vmatprep.subr.bf16.mxu0 0
        %1671 = vmatpush1.bf16.msra.mxu0 0
        %1672 = vmatprep.subr.bf16.mxu0 0
        %1673 = vmatpush1.bf16.msra.mxu0 0
        %1674 = vmatprep.subr.bf16.mxu0 0
        %1675 = vmatpush1.bf16.msra.mxu0 0
        %1676 = vmatprep.subr.bf16.mxu0 0
        %1677 = vmatpush1.bf16.msra.mxu0 0
        %1678 = vmatprep.subr.bf16.mxu0 0
        %1679 = vmatpush1.bf16.msra.mxu0 0
        %1680 = vmatprep.mubr.bf16.mxu0 0
        %1681 = vmatmul.mubr.bf16.gmra.mrb[0].mxu0 %v1643
        %v1682 = vpop.f32.mrb[0].mxu0
        %v1683 = vadd.f32 0.0, %v1682
        %v1684 = vpop.f32.mrb[0].mxu0
        %v1685 = vpop.f32.mrb[0].mxu0
        %v1686 = vpop.f32.mrb[0].mxu0
        %1687 = vdwg.mxu0
        %v1688 = vpack.c.bf16 %v1637, %v1591
        %v1689 = vpack.c.bf16 %v1683, %v1683
        %v1690 = vld [vmem:[%s729] sm:$0xf]
        %v1691 = vld [vmem:[%s729 + $0x4] sm:$0xf]
        %v1692 = vld [vmem:[%s729 + $0x8] sm:$0xf]
        %v1693 = vld [vmem:[%s729 + $0xc] sm:$0xf]
        %v1694 = vld [vmem:[%s729 + $0x10] sm:$0xf]
        %v1695 = vld [vmem:[%s729 + $0x14] sm:$0xf]
        %v1696 = vld [vmem:[%s729 + $0x18] sm:$0xf]
        %v1697 = vld [vmem:[%s729 + $0x1c] sm:$0xf]
        %s1698 = scalar_lea.vmem %s867, 64
        %v1699 = vld [vmem:[%s1698] sm:$0xf]
        %v1700 = vld [vmem:[%s1698 + $0x4] sm:$0xf]
        %v1701 = vld [vmem:[%s1698 + $0x8] sm:$0xf]
        %v1702 = vld [vmem:[%s1698 + $0xc] sm:$0xf]
        %v1703 = vld [vmem:[%s1698 + $0x10] sm:$0xf]
        %v1704 = vld [vmem:[%s1698 + $0x14] sm:$0xf]
        %v1705 = vld [vmem:[%s1698 + $0x18] sm:$0xf]
        %v1706 = vld [vmem:[%s1698 + $0x1c] sm:$0xf]
        %v1707 = vld [vmem:[%s1698 + $0x20] sm:$0xf]
        %v1708 = vld [vmem:[%s1698 + $0x24] sm:$0xf]
        %v1709 = vld [vmem:[%s1698 + $0x28] sm:$0xf]
        %v1710 = vld [vmem:[%s1698 + $0x2c] sm:$0xf]
        %v1711 = vld [vmem:[%s1698 + $0x30] sm:$0xf]
        %v1712 = vld [vmem:[%s1698 + $0x34] sm:$0xf]
        %v1713 = vld [vmem:[%s1698 + $0x38] sm:$0xf]
        %v1714 = vld [vmem:[%s1698 + $0x3c] sm:$0xf]
        %s1715 = scalar_lea.vmem %s871, 1
        %v1716 = vld [vmem:[%s1715] sm:$0x1]
        %v1718 = vlaneseq
        %v1719 = vshrl.u32 %v1718, 7
        %v1720 = vsub.s32 0, %v1719
        %v1721 = vrot.slane %v1716, %v1720
        %v1739 = vunpack.c.l.b16 %v1699
        %v1740 = vunpack.c.l.b16 %v1700
        %v1741 = vunpack.c.l.b16 %v1701
        %v1742 = vunpack.c.l.b16 %v1702
        %v1743 = vunpack.c.l.b16 %v1703
        %v1744 = vunpack.c.l.b16 %v1704
        %v1745 = vunpack.c.l.b16 %v1705
        %v1746 = vunpack.c.l.b16 %v1706
        %v1747 = vunpack.c.l.b16 %v1707
        %v1748 = vunpack.c.l.b16 %v1708
        %v1749 = vunpack.c.l.b16 %v1709
        %v1750 = vunpack.c.l.b16 %v1710
        %v1751 = vunpack.c.l.b16 %v1711
        %v1752 = vunpack.c.l.b16 %v1712
        %v1753 = vunpack.c.l.b16 %v1713
        %v1754 = vunpack.c.l.b16 %v1714
        %v1755 = vpack.c.b16 %v1740, %v1739
        %v1756 = vpack.c.b16 %v1742, %v1741
        %v1757 = vpack.c.b16 %v1744, %v1743
        %v1758 = vpack.c.b16 %v1746, %v1745
        %v1759 = vpack.c.b16 %v1748, %v1747
        %v1760 = vpack.c.b16 %v1750, %v1749
        %v1761 = vpack.c.b16 %v1752, %v1751
        %v1762 = vpack.c.b16 %v1754, %v1753
        %1771 = vmatprep.subr.bf16.mxu0 0
        %1772 = vmatpush1.bf16.msra.mxu0 %v1755
        %1773 = vmatprep.subr.bf16.mxu0 0
        %1774 = vmatpush1.bf16.msra.mxu0 %v1756
        %1775 = vmatprep.subr.bf16.mxu0 0
        %1776 = vmatpush1.bf16.msra.mxu0 %v1757
        %1777 = vmatprep.subr.bf16.mxu0 0
        %1778 = vmatpush1.bf16.msra.mxu0 %v1758
        %1779 = vmatprep.subr.bf16.mxu0 0
        %1780 = vmatpush1.bf16.msra.mxu0 %v1759
        %1781 = vmatprep.subr.bf16.mxu0 0
        %1782 = vmatpush1.bf16.msra.mxu0 %v1760
        %1783 = vmatprep.subr.bf16.mxu0 0
        %1784 = vmatpush1.bf16.msra.mxu0 %v1761
        %1785 = vmatprep.subr.bf16.mxu0 0
        %1786 = vmatpush1.bf16.msra.mxu0 %v1762
        %1787 = vmatprep.subr.bf16.mxu0 0
        %1788 = vmatpush1.bf16.msra.mxu0 0
        %1789 = vmatprep.subr.bf16.mxu0 0
        %1790 = vmatpush1.bf16.msra.mxu0 0
        %1791 = vmatprep.subr.bf16.mxu0 0
        %1792 = vmatpush1.bf16.msra.mxu0 0
        %1793 = vmatprep.subr.bf16.mxu0 0
        %1794 = vmatpush1.bf16.msra.mxu0 0
        %1795 = vmatprep.subr.bf16.mxu0 0
        %1796 = vmatpush1.bf16.msra.mxu0 0
        %1797 = vmatprep.subr.bf16.mxu0 0
        %1798 = vmatpush1.bf16.msra.mxu0 0
        %1799 = vmatprep.subr.bf16.mxu0 0
        %1800 = vmatpush1.bf16.msra.mxu0 0
        %1801 = vmatprep.subr.bf16.mxu0 0
        %1802 = vmatpush1.bf16.msra.mxu0 0
        %1803 = vmatprep.mubr.bf16.mxu0 0
        %1804 = vmatmul.mubr.bf16.gmra.mrb[0].mxu0 %v997
        %v1805 = vpop.f32.mrb[0].mxu0
        %v1806 = vadd.f32 %v1721, %v1805
        %v1807 = vpop.f32.mrb[0].mxu0
        %v1808 = vpop.f32.mrb[0].mxu0
        %v1809 = vadd.f32 %v1721, %v1808
        %v1810 = vpop.f32.mrb[0].mxu0
        %1811 = vmatprep.mubr.bf16.mxu0 0
        %1812 = vmatmul.mubr.bf16.gmra.mrb[0].mxu0 %v998
        %v1813 = vpop.f32.mrb[0].mxu0
        %v1814 = vadd.f32 %v1721, %v1813
        %v1815 = vpop.f32.mrb[0].mxu0
        %v1816 = vpop.f32.mrb[0].mxu0
        %v1817 = vpop.f32.mrb[0].mxu0
        %1818 = vdwg.mxu0
        %s1819 = scalar_lea.vmem %s876, 64
        %v1820 = vld [vmem:[%s1819] sm:$0xf]
        %v1821 = vld [vmem:[%s1819 + $0x4] sm:$0xf]
        %v1822 = vld [vmem:[%s1819 + $0x8] sm:$0xf]
        %v1823 = vld [vmem:[%s1819 + $0xc] sm:$0xf]
        %v1824 = vld [vmem:[%s1819 + $0x10] sm:$0xf]
        %v1825 = vld [vmem:[%s1819 + $0x14] sm:$0xf]
        %v1826 = vld [vmem:[%s1819 + $0x18] sm:$0xf]
        %v1827 = vld [vmem:[%s1819 + $0x1c] sm:$0xf]
        %v1828 = vld [vmem:[%s1819 + $0x20] sm:$0xf]
        %v1829 = vld [vmem:[%s1819 + $0x24] sm:$0xf]
        %v1830 = vld [vmem:[%s1819 + $0x28] sm:$0xf]
        %v1831 = vld [vmem:[%s1819 + $0x2c] sm:$0xf]
        %v1832 = vld [vmem:[%s1819 + $0x30] sm:$0xf]
        %v1833 = vld [vmem:[%s1819 + $0x34] sm:$0xf]
        %v1834 = vld [vmem:[%s1819 + $0x38] sm:$0xf]
        %v1835 = vld [vmem:[%s1819 + $0x3c] sm:$0xf]
        %s1836 = scalar_lea.vmem %s880, 1
        %v1837 = vld [vmem:[%s1836] sm:$0x1]
        %v1839 = vlaneseq
        %v1840 = vshrl.u32 %v1839, 7
        %v1841 = vsub.s32 0, %v1840
        %v1842 = vrot.slane %v1837, %v1841
        %v1860 = vunpack.c.l.b16 %v1820
        %v1861 = vunpack.c.l.b16 %v1821
        %v1862 = vunpack.c.l.b16 %v1822
        %v1863 = vunpack.c.l.b16 %v1823
        %v1864 = vunpack.c.l.b16 %v1824
        %v1865 = vunpack.c.l.b16 %v1825
        %v1866 = vunpack.c.l.b16 %v1826
        %v1867 = vunpack.c.l.b16 %v1827
        %v1868 = vunpack.c.l.b16 %v1828
        %v1869 = vunpack.c.l.b16 %v1829
        %v1870 = vunpack.c.l.b16 %v1830
        %v1871 = vunpack.c.l.b16 %v1831
        %v1872 = vunpack.c.l.b16 %v1832
        %v1873 = vunpack.c.l.b16 %v1833
        %v1874 = vunpack.c.l.b16 %v1834
        %v1875 = vunpack.c.l.b16 %v1835
        %v1876 = vpack.c.b16 %v1861, %v1860
        %v1877 = vpack.c.b16 %v1863, %v1862
        %v1878 = vpack.c.b16 %v1865, %v1864
        %v1879 = vpack.c.b16 %v1867, %v1866
        %v1880 = vpack.c.b16 %v1869, %v1868
        %v1881 = vpack.c.b16 %v1871, %v1870
        %v1882 = vpack.c.b16 %v1873, %v1872
        %v1883 = vpack.c.b16 %v1875, %v1874
        %1892 = vmatprep.subr.bf16.mxu0 0
        %1893 = vmatpush1.bf16.msra.mxu0 %v1876
        %1894 = vmatprep.subr.bf16.mxu0 0
        %1895 = vmatpush1.bf16.msra.mxu0 %v1877
        %1896 = vmatprep.subr.bf16.mxu0 0
        %1897 = vmatpush1.bf16.msra.mxu0 %v1878
        %1898 = vmatprep.subr.bf16.mxu0 0
        %1899 = vmatpush1.bf16.msra.mxu0 %v1879
        %1900 = vmatprep.subr.bf16.mxu0 0
        %1901 = vmatpush1.bf16.msra.mxu0 %v1880
        %1902 = vmatprep.subr.bf16.mxu0 0
        %1903 = vmatpush1.bf16.msra.mxu0 %v1881
        %1904 = vmatprep.subr.bf16.mxu0 0
        %1905 = vmatpush1.bf16.msra.mxu0 %v1882
        %1906 = vmatprep.subr.bf16.mxu0 0
        %1907 = vmatpush1.bf16.msra.mxu0 %v1883
        %1908 = vmatprep.subr.bf16.mxu0 0
        %1909 = vmatpush1.bf16.msra.mxu0 0
        %1910 = vmatprep.subr.bf16.mxu0 0
        %1911 = vmatpush1.bf16.msra.mxu0 0
        %1912 = vmatprep.subr.bf16.mxu0 0
        %1913 = vmatpush1.bf16.msra.mxu0 0
        %1914 = vmatprep.subr.bf16.mxu0 0
        %1915 = vmatpush1.bf16.msra.mxu0 0
        %1916 = vmatprep.subr.bf16.mxu0 0
        %1917 = vmatpush1.bf16.msra.mxu0 0
        %1918 = vmatprep.subr.bf16.mxu0 0
        %1919 = vmatpush1.bf16.msra.mxu0 0
        %1920 = vmatprep.subr.bf16.mxu0 0
        %1921 = vmatpush1.bf16.msra.mxu0 0
        %1922 = vmatprep.subr.bf16.mxu0 0
        %1923 = vmatpush1.bf16.msra.mxu0 0
        %1924 = vmatprep.mubr.bf16.mxu0 0
        %1925 = vmatmul.mubr.bf16.gmra.mrb[0].mxu0 %v997
        %v1926 = vpop.f32.mrb[0].mxu0
        %v1927 = vadd.f32 %v1842, %v1926
        %v1928 = vpop.f32.mrb[0].mxu0
        %v1929 = vpop.f32.mrb[0].mxu0
        %v1930 = vadd.f32 %v1842, %v1929
        %v1931 = vpop.f32.mrb[0].mxu0
        %1932 = vmatprep.mubr.bf16.mxu0 0
        %1933 = vmatmul.mubr.bf16.gmra.mrb[0].mxu0 %v998
        %v1934 = vpop.f32.mrb[0].mxu0
        %v1935 = vadd.f32 %v1842, %v1934
        %v1936 = vpop.f32.mrb[0].mxu0
        %v1937 = vpop.f32.mrb[0].mxu0
        %v1938 = vpop.f32.mrb[0].mxu0
        %1939 = vdwg.mxu0
        %s1940 = scalar_lea.vmem %s885, 64
        %v1941 = vld [vmem:[%s1940] sm:$0xf]
        %v1942 = vld [vmem:[%s1940 + $0x4] sm:$0xf]
        %v1943 = vld [vmem:[%s1940 + $0x8] sm:$0xf]
        %v1944 = vld [vmem:[%s1940 + $0xc] sm:$0xf]
        %v1945 = vld [vmem:[%s1940 + $0x10] sm:$0xf]
        %v1946 = vld [vmem:[%s1940 + $0x14] sm:$0xf]
        %v1947 = vld [vmem:[%s1940 + $0x18] sm:$0xf]
        %v1948 = vld [vmem:[%s1940 + $0x1c] sm:$0xf]
        %v1949 = vld [vmem:[%s1940 + $0x20] sm:$0xf]
        %v1950 = vld [vmem:[%s1940 + $0x24] sm:$0xf]
        %v1951 = vld [vmem:[%s1940 + $0x28] sm:$0xf]
        %v1952 = vld [vmem:[%s1940 + $0x2c] sm:$0xf]
        %v1953 = vld [vmem:[%s1940 + $0x30] sm:$0xf]
        %v1954 = vld [vmem:[%s1940 + $0x34] sm:$0xf]
        %v1955 = vld [vmem:[%s1940 + $0x38] sm:$0xf]
        %v1956 = vld [vmem:[%s1940 + $0x3c] sm:$0xf]
        %s1957 = scalar_lea.vmem %s889, 1
        %v1958 = vld [vmem:[%s1957] sm:$0x1]
        %v1960 = vlaneseq
        %v1961 = vshrl.u32 %v1960, 7
        %v1962 = vsub.s32 0, %v1961
        %v1963 = vrot.slane %v1958, %v1962
        %v1981 = vunpack.c.l.b16 %v1941
        %v1982 = vunpack.c.l.b16 %v1942
        %v1983 = vunpack.c.l.b16 %v1943
        %v1984 = vunpack.c.l.b16 %v1944
        %v1985 = vunpack.c.l.b16 %v1945
        %v1986 = vunpack.c.l.b16 %v1946
        %v1987 = vunpack.c.l.b16 %v1947
        %v1988 = vunpack.c.l.b16 %v1948
        %v1989 = vunpack.c.l.b16 %v1949
        %v1990 = vunpack.c.l.b16 %v1950
        %v1991 = vunpack.c.l.b16 %v1951
        %v1992 = vunpack.c.l.b16 %v1952
        %v1993 = vunpack.c.l.b16 %v1953
        %v1994 = vunpack.c.l.b16 %v1954
        %v1995 = vunpack.c.l.b16 %v1955
        %v1996 = vunpack.c.l.b16 %v1956
        %v1997 = vpack.c.b16 %v1982, %v1981
        %v1998 = vpack.c.b16 %v1984, %v1983
        %v1999 = vpack.c.b16 %v1986, %v1985
        %v2000 = vpack.c.b16 %v1988, %v1987
        %v2001 = vpack.c.b16 %v1990, %v1989
        %v2002 = vpack.c.b16 %v1992, %v1991
        %v2003 = vpack.c.b16 %v1994, %v1993
        %v2004 = vpack.c.b16 %v1996, %v1995
        %2013 = vmatprep.subr.bf16.mxu0 0
        %2014 = vmatpush1.bf16.msra.mxu0 %v1997
        %2015 = vmatprep.subr.bf16.mxu0 0
        %2016 = vmatpush1.bf16.msra.mxu0 %v1998
        %2017 = vmatprep.subr.bf16.mxu0 0
        %2018 = vmatpush1.bf16.msra.mxu0 %v1999
        %2019 = vmatprep.subr.bf16.mxu0 0
        %2020 = vmatpush1.bf16.msra.mxu0 %v2000
        %2021 = vmatprep.subr.bf16.mxu0 0
        %2022 = vmatpush1.bf16.msra.mxu0 %v2001
        %2023 = vmatprep.subr.bf16.mxu0 0
        %2024 = vmatpush1.bf16.msra.mxu0 %v2002
        %2025 = vmatprep.subr.bf16.mxu0 0
        %2026 = vmatpush1.bf16.msra.mxu0 %v2003
        %2027 = vmatprep.subr.bf16.mxu0 0
        %2028 = vmatpush1.bf16.msra.mxu0 %v2004
        %2029 = vmatprep.subr.bf16.mxu0 0
        %2030 = vmatpush1.bf16.msra.mxu0 0
        %2031 = vmatprep.subr.bf16.mxu0 0
        %2032 = vmatpush1.bf16.msra.mxu0 0
        %2033 = vmatprep.subr.bf16.mxu0 0
        %2034 = vmatpush1.bf16.msra.mxu0 0
        %2035 = vmatprep.subr.bf16.mxu0 0
        %2036 = vmatpush1.bf16.msra.mxu0 0
        %2037 = vmatprep.subr.bf16.mxu0 0
        %2038 = vmatpush1.bf16.msra.mxu0 0
        %2039 = vmatprep.subr.bf16.mxu0 0
        %2040 = vmatpush1.bf16.msra.mxu0 0
        %2041 = vmatprep.subr.bf16.mxu0 0
        %2042 = vmatpush1.bf16.msra.mxu0 0
        %2043 = vmatprep.subr.bf16.mxu0 0
        %2044 = vmatpush1.bf16.msra.mxu0 0
        %2045 = vmatprep.mubr.bf16.mxu0 0
        %2046 = vmatmul.mubr.bf16.gmra.mrb[0].mxu0 %v997
        %v2047 = vpop.f32.mrb[0].mxu0
        %v2048 = vadd.f32 %v1963, %v2047
        %v2049 = vpop.f32.mrb[0].mxu0
        %v2050 = vpop.f32.mrb[0].mxu0
        %v2051 = vadd.f32 %v1963, %v2050
        %v2052 = vpop.f32.mrb[0].mxu0
        %2053 = vmatprep.mubr.bf16.mxu0 0
        %2054 = vmatmul.mubr.bf16.gmra.mrb[0].mxu0 %v998
        %v2055 = vpop.f32.mrb[0].mxu0
        %v2056 = vadd.f32 %v1963, %v2055
        %v2057 = vpop.f32.mrb[0].mxu0
        %v2058 = vpop.f32.mrb[0].mxu0
        %v2059 = vpop.f32.mrb[0].mxu0
        %2060 = vdwg.mxu0
        %v2061 = vpack.c.bf16 %v1806, %v1806
        %v2062 = vpack.c.bf16 %v1809, %v1809
        %v2063 = vpack.c.bf16 %v1814, %v1814
        %v2064 = vpack.c.bf16 %v1927, %v1927
        %v2065 = vpack.c.bf16 %v1930, %v1930
        %v2066 = vpack.c.bf16 %v1935, %v1935
        %v2068 = vsel %vm1362, %v2061, 0
        %v2071 = vsel %vm1362, %v2064, 0
        %2073 = vmatprep.subr.bf16.mxu0 0
        %2074 = vmatpush1.bf16.xpose.msra.mxu0 %v2071
        %2075 = vmatprep.subr.bf16.mxu0 0
        %2076 = vmatpush1.bf16.xpose.msra.mxu0 0
        %2077 = vmatprep.subr.bf16.mxu0 0
        %2078 = vmatpush1.bf16.xpose.msra.mxu0 0
        %2079 = vmatprep.subr.bf16.mxu0 0
        %2080 = vmatpush1.bf16.xpose.msra.mxu0 0
        %2081 = vmatprep.subr.bf16.mxu0 0
        %2082 = vmatpush1.bf16.xpose.msra.mxu0 0
        %2083 = vmatprep.subr.bf16.mxu0 0
        %2084 = vmatpush1.bf16.xpose.msra.mxu0 0
        %2085 = vmatprep.subr.bf16.mxu0 0
        %2086 = vmatpush1.bf16.xpose.msra.mxu0 0
        %2087 = vmatprep.subr.bf16.mxu0 0
        %2088 = vmatpush1.bf16.xpose.msra.mxu0 0
        %2089 = vmatprep.subr.bf16.mxu0 0
        %2090 = vmatpush1.bf16.xpose.msra.mxu0 0
        %2091 = vmatprep.subr.bf16.mxu0 0
        %2092 = vmatpush1.bf16.xpose.msra.mxu0 0
        %2093 = vmatprep.subr.bf16.mxu0 0
        %2094 = vmatpush1.bf16.xpose.msra.mxu0 0
        %2095 = vmatprep.subr.bf16.mxu0 0
        %2096 = vmatpush1.bf16.xpose.msra.mxu0 0
        %2097 = vmatprep.subr.bf16.mxu0 0
        %2098 = vmatpush1.bf16.xpose.msra.mxu0 0
        %2099 = vmatprep.subr.bf16.mxu0 0
        %2100 = vmatpush1.bf16.xpose.msra.mxu0 0
        %2101 = vmatprep.subr.bf16.mxu0 0
        %2102 = vmatpush1.bf16.xpose.msra.mxu0 0
        %2103 = vmatprep.subr.bf16.mxu0 0
        %2104 = vmatpush1.bf16.xpose.msra.mxu0 0
        %2105 = vmatprep.mubr.bf16.mxu0 0
        %2106 = vmatmul.mubr.bf16.gmra.mrb[0].mxu0 %v2068
        %v2107 = vpop.f32.mrb[0].mxu0
        %v2108 = vadd.f32 0.0, %v2107
        %v2109 = vpop.f32.mrb[0].mxu0
        %v2110 = vpop.f32.mrb[0].mxu0
        %v2111 = vpop.f32.mrb[0].mxu0
        %2112 = vdwg.mxu0
        %v2114 = vsel %vm1362, %v2062, 0
        %v2117 = vsel %vm1362, %v2065, 0
        %2119 = vmatprep.subr.bf16.mxu0 0
        %2120 = vmatpush1.bf16.xpose.msra.mxu0 %v2117
        %2121 = vmatprep.subr.bf16.mxu0 0
        %2122 = vmatpush1.bf16.xpose.msra.mxu0 0
        %2123 = vmatprep.subr.bf16.mxu0 0
        %2124 = vmatpush1.bf16.xpose.msra.mxu0 0
        %2125 = vmatprep.subr.bf16.mxu0 0
        %2126 = vmatpush1.bf16.xpose.msra.mxu0 0
        %2127 = vmatprep.subr.bf16.mxu0 0
        %2128 = vmatpush1.bf16.xpose.msra.mxu0 0
        %2129 = vmatprep.subr.bf16.mxu0 0
        %2130 = vmatpush1.bf16.xpose.msra.mxu0 0
        %2131 = vmatprep.subr.bf16.mxu0 0
        %2132 = vmatpush1.bf16.xpose.msra.mxu0 0
        %2133 = vmatprep.subr.bf16.mxu0 0
        %2134 = vmatpush1.bf16.xpose.msra.mxu0 0
        %2135 = vmatprep.subr.bf16.mxu0 0
        %2136 = vmatpush1.bf16.xpose.msra.mxu0 0
        %2137 = vmatprep.subr.bf16.mxu0 0
        %2138 = vmatpush1.bf16.xpose.msra.mxu0 0
        %2139 = vmatprep.subr.bf16.mxu0 0
        %2140 = vmatpush1.bf16.xpose.msra.mxu0 0
        %2141 = vmatprep.subr.bf16.mxu0 0
        %2142 = vmatpush1.bf16.xpose.msra.mxu0 0
        %2143 = vmatprep.subr.bf16.mxu0 0
        %2144 = vmatpush1.bf16.xpose.msra.mxu0 0
        %2145 = vmatprep.subr.bf16.mxu0 0
        %2146 = vmatpush1.bf16.xpose.msra.mxu0 0
        %2147 = vmatprep.subr.bf16.mxu0 0
        %2148 = vmatpush1.bf16.xpose.msra.mxu0 0
        %2149 = vmatprep.subr.bf16.mxu0 0
        %2150 = vmatpush1.bf16.xpose.msra.mxu0 0
        %2151 = vmatprep.mubr.bf16.mxu0 0
        %2152 = vmatmul.mubr.bf16.gmra.mrb[0].mxu0 %v2114
        %v2153 = vpop.f32.mrb[0].mxu0
        %v2154 = vadd.f32 0.0, %v2153
        %v2155 = vpop.f32.mrb[0].mxu0
        %v2156 = vpop.f32.mrb[0].mxu0
        %v2157 = vpop.f32.mrb[0].mxu0
        %2158 = vdwg.mxu0
        %v2160 = vsel %vm1362, %v2063, 0
        %v2163 = vsel %vm1362, %v2066, 0
        %2165 = vmatprep.subr.bf16.mxu0 0
        %2166 = vmatpush1.bf16.xpose.msra.mxu0 %v2163
        %2167 = vmatprep.subr.bf16.mxu0 0
        %2168 = vmatpush1.bf16.xpose.msra.mxu0 0
        %2169 = vmatprep.subr.bf16.mxu0 0
        %2170 = vmatpush1.bf16.xpose.msra.mxu0 0
        %2171 = vmatprep.subr.bf16.mxu0 0
        %2172 = vmatpush1.bf16.xpose.msra.mxu0 0
        %2173 = vmatprep.subr.bf16.mxu0 0
        %2174 = vmatpush1.bf16.xpose.msra.mxu0 0
        %2175 = vmatprep.subr.bf16.mxu0 0
        %2176 = vmatpush1.bf16.xpose.msra.mxu0 0
        %2177 = vmatprep.subr.bf16.mxu0 0
        %2178 = vmatpush1.bf16.xpose.msra.mxu0 0
        %2179 = vmatprep.subr.bf16.mxu0 0
        %2180 = vmatpush1.bf16.xpose.msra.mxu0 0
        %2181 = vmatprep.subr.bf16.mxu0 0
        %2182 = vmatpush1.bf16.xpose.msra.mxu0 0
        %2183 = vmatprep.subr.bf16.mxu0 0
        %2184 = vmatpush1.bf16.xpose.msra.mxu0 0
        %2185 = vmatprep.subr.bf16.mxu0 0
        %2186 = vmatpush1.bf16.xpose.msra.mxu0 0
        %2187 = vmatprep.subr.bf16.mxu0 0
        %2188 = vmatpush1.bf16.xpose.msra.mxu0 0
        %2189 = vmatprep.subr.bf16.mxu0 0
        %2190 = vmatpush1.bf16.xpose.msra.mxu0 0
        %2191 = vmatprep.subr.bf16.mxu0 0
        %2192 = vmatpush1.bf16.xpose.msra.mxu0 0
        %2193 = vmatprep.subr.bf16.mxu0 0
        %2194 = vmatpush1.bf16.xpose.msra.mxu0 0
        %2195 = vmatprep.subr.bf16.mxu0 0
        %2196 = vmatpush1.bf16.xpose.msra.mxu0 0
        %2197 = vmatprep.mubr.bf16.mxu0 0
        %2198 = vmatmul.mubr.bf16.gmra.mrb[0].mxu0 %v2160
        %v2199 = vpop.f32.mrb[0].mxu0
        %v2200 = vadd.f32 0.0, %v2199
        %v2201 = vpop.f32.mrb[0].mxu0
        %v2202 = vpop.f32.mrb[0].mxu0
        %v2203 = vpop.f32.mrb[0].mxu0
        %2204 = vdwg.mxu0
        %v2205 = vmul.f32 %v2108, 0.125
        %v2206 = vmul.f32 %v2154, 0.125
        %v2207 = vmul.f32 %v2200, 0.125
        %v2208 = vsel %vm1505, %v2205, -1e+30
        %v2209 = vsel %vm1505, %v2206, -1e+30
        %v2210 = vsel %vm1505, %v2207, -1e+30
        %v2211 = vsel %vm1509, %v2208, -inf
        %2212 = vmax.xlane.f32.xlu0 %v2211
        %v2213 = vpop.xlane.xlu0 %2212
        %v2214 = vsel %vm1509, %v2209, -inf
        %2215 = vmax.xlane.f32.xlu0 %v2214
        %v2216 = vpop.xlane.xlu0 %2215
        %v2217 = vsel %vm1509, %v2210, -inf
        %2218 = vmax.xlane.f32.xlu0 %v2217
        %v2219 = vpop.xlane.xlu0 %2218
        %v2220 = vsub.f32 %v2208, %v2213
        %v2221 = vsub.f32 %v2209, %v2216
        %v2222 = vsub.f32 %v2210, %v2219
        %v2223 = vmul.f32 %v2220, 1.442695
        %v2224 = vpow.pop %v2223
        %v2225 = vmul.f32 %v2221, 1.442695
        %v2226 = vpow.pop %v2225
        %v2227 = vmul.f32 %v2222, 1.442695
        %v2228 = vpow.pop %v2227
        %v2229 = vsel %vm1509, %v2224, 0.0
        %2230 = vadd.xlane.f32.xlu0 %v2229
        %v2231 = vpop.xlane.xlu0 %2230
        %v2232 = vsel %vm1509, %v2226, 0.0
        %2233 = vadd.xlane.f32.xlu0 %v2232
        %v2234 = vpop.xlane.xlu0 %2233
        %v2235 = vsel %vm1509, %v2228, 0.0
        %2236 = vadd.xlane.f32.xlu0 %v2235
        %v2237 = vpop.xlane.xlu0 %2236
        %v2238 = vrcp.pop %v2231
        %v2239 = vrcp.pop %v2234
        %v2240 = vrcp.pop %v2237
        %v2241 = vmul.f32 %v2224, %v2238
        %v2242 = vmul.f32 %v2226, %v2239
        %v2243 = vmul.f32 %v2228, %v2240
        %v2244 = vpack.c.bf16 %v2241, %v2241
        %v2245 = vpack.c.bf16 %v2242, %v2242
        %v2246 = vpack.c.bf16 %v2243, %v2243
        %v2247 = vpack.c.bf16 %v2048, %v2048
        %v2248 = vpack.c.bf16 %v2051, %v2051
        %v2249 = vpack.c.bf16 %v2056, %v2056
        %v2251 = vsel %vm1509, %v2244, 0
        %v2254 = vsel %vm1552, %v2247, 0
        %2256 = vmatprep.subr.bf16.mxu0 0
        %2257 = vmatpush1.bf16.msra.mxu0 %v2254
        %2258 = vmatprep.subr.bf16.mxu0 0
        %2259 = vmatpush1.bf16.msra.mxu0 0
        %2260 = vmatprep.subr.bf16.mxu0 0
        %2261 = vmatpush1.bf16.msra.mxu0 0
        %2262 = vmatprep.subr.bf16.mxu0 0
        %2263 = vmatpush1.bf16.msra.mxu0 0
        %2264 = vmatprep.subr.bf16.mxu0 0
        %2265 = vmatpush1.bf16.msra.mxu0 0
        %2266 = vmatprep.subr.bf16.mxu0 0
        %2267 = vmatpush1.bf16.msra.mxu0 0
        %2268 = vmatprep.subr.bf16.mxu0 0
        %2269 = vmatpush1.bf16.msra.mxu0 0
        %2270 = vmatprep.subr.bf16.mxu0 0
        %2271 = vmatpush1.bf16.msra.mxu0 0
        %2272 = vmatprep.subr.bf16.mxu0 0
        %2273 = vmatpush1.bf16.msra.mxu0 0
        %2274 = vmatprep.subr.bf16.mxu0 0
        %2275 = vmatpush1.bf16.msra.mxu0 0
        %2276 = vmatprep.subr.bf16.mxu0 0
        %2277 = vmatpush1.bf16.msra.mxu0 0
        %2278 = vmatprep.subr.bf16.mxu0 0
        %2279 = vmatpush1.bf16.msra.mxu0 0
        %2280 = vmatprep.subr.bf16.mxu0 0
        %2281 = vmatpush1.bf16.msra.mxu0 0
        %2282 = vmatprep.subr.bf16.mxu0 0
        %2283 = vmatpush1.bf16.msra.mxu0 0
        %2284 = vmatprep.subr.bf16.mxu0 0
        %2285 = vmatpush1.bf16.msra.mxu0 0
        %2286 = vmatprep.subr.bf16.mxu0 0
        %2287 = vmatpush1.bf16.msra.mxu0 0
        %2288 = vmatprep.mubr.bf16.mxu0 0
        %2289 = vmatmul.mubr.bf16.gmra.mrb[0].mxu0 %v2251
        %v2290 = vpop.f32.mrb[0].mxu0
        %v2291 = vadd.f32 0.0, %v2290
        %v2292 = vpop.f32.mrb[0].mxu0
        %v2293 = vpop.f32.mrb[0].mxu0
        %v2294 = vpop.f32.mrb[0].mxu0
        %2295 = vdwg.mxu0
        %v2297 = vsel %vm1509, %v2245, 0
        %v2300 = vsel %vm1552, %v2248, 0
        %2302 = vmatprep.subr.bf16.mxu0 0
        %2303 = vmatpush1.bf16.msra.mxu0 %v2300
        %2304 = vmatprep.subr.bf16.mxu0 0
        %2305 = vmatpush1.bf16.msra.mxu0 0
        %2306 = vmatprep.subr.bf16.mxu0 0
        %2307 = vmatpush1.bf16.msra.mxu0 0
        %2308 = vmatprep.subr.bf16.mxu0 0
        %2309 = vmatpush1.bf16.msra.mxu0 0
        %2310 = vmatprep.subr.bf16.mxu0 0
        %2311 = vmatpush1.bf16.msra.mxu0 0
        %2312 = vmatprep.subr.bf16.mxu0 0
        %2313 = vmatpush1.bf16.msra.mxu0 0
        %2314 = vmatprep.subr.bf16.mxu0 0
        %2315 = vmatpush1.bf16.msra.mxu0 0
        %2316 = vmatprep.subr.bf16.mxu0 0
        %2317 = vmatpush1.bf16.msra.mxu0 0
        %2318 = vmatprep.subr.bf16.mxu0 0
        %2319 = vmatpush1.bf16.msra.mxu0 0
        %2320 = vmatprep.subr.bf16.mxu0 0
        %2321 = vmatpush1.bf16.msra.mxu0 0
        %2322 = vmatprep.subr.bf16.mxu0 0
        %2323 = vmatpush1.bf16.msra.mxu0 0
        %2324 = vmatprep.subr.bf16.mxu0 0
        %2325 = vmatpush1.bf16.msra.mxu0 0
        %2326 = vmatprep.subr.bf16.mxu0 0
        %2327 = vmatpush1.bf16.msra.mxu0 0
        %2328 = vmatprep.subr.bf16.mxu0 0
        %2329 = vmatpush1.bf16.msra.mxu0 0
        %2330 = vmatprep.subr.bf16.mxu0 0
        %2331 = vmatpush1.bf16.msra.mxu0 0
        %2332 = vmatprep.subr.bf16.mxu0 0
        %2333 = vmatpush1.bf16.msra.mxu0 0
        %2334 = vmatprep.mubr.bf16.mxu0 0
        %2335 = vmatmul.mubr.bf16.gmra.mrb[0].mxu0 %v2297
        %v2336 = vpop.f32.mrb[0].mxu0
        %v2337 = vadd.f32 0.0, %v2336
        %v2338 = vpop.f32.mrb[0].mxu0
        %v2339 = vpop.f32.mrb[0].mxu0
        %v2340 = vpop.f32.mrb[0].mxu0
        %2341 = vdwg.mxu0
        %v2343 = vsel %vm1509, %v2246, 0
        %v2346 = vsel %vm1552, %v2249, 0
        %2348 = vmatprep.subr.bf16.mxu0 0
        %2349 = vmatpush1.bf16.msra.mxu0 %v2346
        %2350 = vmatprep.subr.bf16.mxu0 0
        %2351 = vmatpush1.bf16.msra.mxu0 0
        %2352 = vmatprep.subr.bf16.mxu0 0
        %2353 = vmatpush1.bf16.msra.mxu0 0
        %2354 = vmatprep.subr.bf16.mxu0 0
        %2355 = vmatpush1.bf16.msra.mxu0 0
        %2356 = vmatprep.subr.bf16.mxu0 0
        %2357 = vmatpush1.bf16.msra.mxu0 0
        %2358 = vmatprep.subr.bf16.mxu0 0
        %2359 = vmatpush1.bf16.msra.mxu0 0
        %2360 = vmatprep.subr.bf16.mxu0 0
        %2361 = vmatpush1.bf16.msra.mxu0 0
        %2362 = vmatprep.subr.bf16.mxu0 0
        %2363 = vmatpush1.bf16.msra.mxu0 0
        %2364 = vmatprep.subr.bf16.mxu0 0
        %2365 = vmatpush1.bf16.msra.mxu0 0
        %2366 = vmatprep.subr.bf16.mxu0 0
        %2367 = vmatpush1.bf16.msra.mxu0 0
        %2368 = vmatprep.subr.bf16.mxu0 0
        %2369 = vmatpush1.bf16.msra.mxu0 0
        %2370 = vmatprep.subr.bf16.mxu0 0
        %2371 = vmatpush1.bf16.msra.mxu0 0
        %2372 = vmatprep.subr.bf16.mxu0 0
        %2373 = vmatpush1.bf16.msra.mxu0 0
        %2374 = vmatprep.subr.bf16.mxu0 0
        %2375 = vmatpush1.bf16.msra.mxu0 0
        %2376 = vmatprep.subr.bf16.mxu0 0
        %2377 = vmatpush1.bf16.msra.mxu0 0
        %2378 = vmatprep.subr.bf16.mxu0 0
        %2379 = vmatpush1.bf16.msra.mxu0 0
        %2380 = vmatprep.mubr.bf16.mxu0 0
        %2381 = vmatmul.mubr.bf16.gmra.mrb[0].mxu0 %v2343
        %v2382 = vpop.f32.mrb[0].mxu0
        %v2383 = vadd.f32 0.0, %v2382
        %v2384 = vpop.f32.mrb[0].mxu0
        %v2385 = vpop.f32.mrb[0].mxu0
        %v2386 = vpop.f32.mrb[0].mxu0
        %2387 = vdwg.mxu0
        %v2388 = vpack.c.bf16 %v2337, %v2291
        %v2389 = vpack.c.bf16 %v2383, %v2383
        %s2390 = scalar_lea.vmem %s729, 32 [#allocation5]
        %v2391 = vld [vmem:[%s2390] sm:$0xf]
        %v2392 = vld [vmem:[%s2390 + $0x4] sm:$0xf]
        %v2393 = vld [vmem:[%s2390 + $0x8] sm:$0xf]
        %v2394 = vld [vmem:[%s2390 + $0xc] sm:$0xf]
        %v2395 = vld [vmem:[%s2390 + $0x10] sm:$0xf]
        %v2396 = vld [vmem:[%s2390 + $0x14] sm:$0xf]
        %v2397 = vld [vmem:[%s2390 + $0x18] sm:$0xf]
        %v2398 = vld [vmem:[%s2390 + $0x1c] sm:$0xf]
        %v2407 = vunpack.c.l.b16 %v2391
        %v2408 = vunpack.c.l.b16 %v2392
        %v2409 = vunpack.c.l.b16 %v2393
        %v2410 = vunpack.c.l.b16 %v2394
        %v2411 = vunpack.c.l.b16 %v2395
        %v2412 = vunpack.c.l.b16 %v2396
        %v2413 = vunpack.c.l.b16 %v2397
        %v2414 = vunpack.c.l.b16 %v2398
        %v2415 = vpack.c.b16 %v2408, %v2407
        %v2416 = vpack.c.b16 %v2410, %v2409
        %v2417 = vpack.c.b16 %v2412, %v2411
        %v2418 = vpack.c.b16 %v2414, %v2413
        %v2424 = vsel %vm1362, %v2388, 0
        %v2427 = vsel %vm1362, %v2389, 0
        %2429 = vmatprep.subr.bf16.mxu0 0
        %2430 = vmatpush1.bf16.msra.mxu0 %v2415
        %2431 = vmatprep.subr.bf16.mxu0 0
        %2432 = vmatpush1.bf16.msra.mxu0 %v2416
        %2433 = vmatprep.subr.bf16.mxu0 0
        %2434 = vmatpush1.bf16.msra.mxu0 %v2417
        %2435 = vmatprep.subr.bf16.mxu0 0
        %2436 = vmatpush1.bf16.msra.mxu0 %v2418
        %2437 = vmatprep.subr.bf16.mxu0 0
        %2438 = vmatpush1.bf16.msra.mxu0 0
        %2439 = vmatprep.subr.bf16.mxu0 0
        %2440 = vmatpush1.bf16.msra.mxu0 0
        %2441 = vmatprep.subr.bf16.mxu0 0
        %2442 = vmatpush1.bf16.msra.mxu0 0
        %2443 = vmatprep.subr.bf16.mxu0 0
        %2444 = vmatpush1.bf16.msra.mxu0 0
        %2445 = vmatprep.subr.bf16.mxu0 0
        %2446 = vmatpush1.bf16.msra.mxu0 0
        %2447 = vmatprep.subr.bf16.mxu0 0
        %2448 = vmatpush1.bf16.msra.mxu0 0
        %2449 = vmatprep.subr.bf16.mxu0 0
        %2450 = vmatpush1.bf16.msra.mxu0 0
        %2451 = vmatprep.subr.bf16.mxu0 0
        %2452 = vmatpush1.bf16.msra.mxu0 0
        %2453 = vmatprep.subr.bf16.mxu0 0
        %2454 = vmatpush1.bf16.msra.mxu0 0
        %2455 = vmatprep.subr.bf16.mxu0 0
        %2456 = vmatpush1.bf16.msra.mxu0 0
        %2457 = vmatprep.subr.bf16.mxu0 0
        %2458 = vmatpush1.bf16.msra.mxu0 0
        %2459 = vmatprep.subr.bf16.mxu0 0
        %2460 = vmatpush1.bf16.msra.mxu0 0
        %2461 = vmatprep.mubr.bf16.mxu0 0
        %2462 = vmatmul.mubr.bf16.gmra.mrb[0].mxu0 %v2424
        %v2463 = vpop.f32.mrb[0].mxu0
        %v2464 = vadd.f32 0.0, %v2463
        %v2465 = vpop.f32.mrb[0].mxu0
        %v2466 = vpop.f32.mrb[0].mxu0
        %v2467 = vadd.f32 0.0, %v2466
        %v2468 = vpop.f32.mrb[0].mxu0
        %2469 = vmatprep.mubr.bf16.mxu0 0
        %2470 = vmatmul.mubr.bf16.gmra.mrb[0].mxu0 %v2427
        %v2471 = vpop.f32.mrb[0].mxu0
        %v2472 = vadd.f32 0.0, %v2471
        %v2473 = vpop.f32.mrb[0].mxu0
        %v2474 = vpop.f32.mrb[0].mxu0
        %v2475 = vpop.f32.mrb[0].mxu0
        %2476 = vdwg.mxu0
        %v2485 = vunpack.c.l.b16 %v1690
        %v2486 = vunpack.c.l.b16 %v1691
        %v2487 = vunpack.c.l.b16 %v1692
        %v2488 = vunpack.c.l.b16 %v1693
        %v2489 = vunpack.c.l.b16 %v1694
        %v2490 = vunpack.c.l.b16 %v1695
        %v2491 = vunpack.c.l.b16 %v1696
        %v2492 = vunpack.c.l.b16 %v1697
        %v2493 = vpack.c.b16 %v2486, %v2485
        %v2494 = vpack.c.b16 %v2488, %v2487
        %v2495 = vpack.c.b16 %v2490, %v2489
        %v2496 = vpack.c.b16 %v2492, %v2491
        %v2502 = vsel %vm1362, %v1688, 0
        %v2505 = vsel %vm1362, %v1689, 0
        %2507 = vmatprep.subr.bf16.mxu0 0
        %2508 = vmatpush1.bf16.msra.mxu0 %v2493
        %2509 = vmatprep.subr.bf16.mxu0 0
        %2510 = vmatpush1.bf16.msra.mxu0 %v2494
        %2511 = vmatprep.subr.bf16.mxu0 0
        %2512 = vmatpush1.bf16.msra.mxu0 %v2495
        %2513 = vmatprep.subr.bf16.mxu0 0
        %2514 = vmatpush1.bf16.msra.mxu0 %v2496
        %2515 = vmatprep.subr.bf16.mxu0 0
        %2516 = vmatpush1.bf16.msra.mxu0 0
        %2517 = vmatprep.subr.bf16.mxu0 0
        %2518 = vmatpush1.bf16.msra.mxu0 0
        %2519 = vmatprep.subr.bf16.mxu0 0
        %2520 = vmatpush1.bf16.msra.mxu0 0
        %2521 = vmatprep.subr.bf16.mxu0 0
        %2522 = vmatpush1.bf16.msra.mxu0 0
        %2523 = vmatprep.subr.bf16.mxu0 0
        %2524 = vmatpush1.bf16.msra.mxu0 0
        %2525 = vmatprep.subr.bf16.mxu0 0
        %2526 = vmatpush1.bf16.msra.mxu0 0
        %2527 = vmatprep.subr.bf16.mxu0 0
        %2528 = vmatpush1.bf16.msra.mxu0 0
        %2529 = vmatprep.subr.bf16.mxu0 0
        %2530 = vmatpush1.bf16.msra.mxu0 0
        %2531 = vmatprep.subr.bf16.mxu0 0
        %2532 = vmatpush1.bf16.msra.mxu0 0
        %2533 = vmatprep.subr.bf16.mxu0 0
        %2534 = vmatpush1.bf16.msra.mxu0 0
        %2535 = vmatprep.subr.bf16.mxu0 0
        %2536 = vmatpush1.bf16.msra.mxu0 0
        %2537 = vmatprep.subr.bf16.mxu0 0
        %2538 = vmatpush1.bf16.msra.mxu0 0
        %2539 = vmatprep.mubr.bf16.mxu0 0
        %2540 = vmatmul.mubr.bf16.gmra.mrb[0].mxu0 %v2502
        %v2541 = vpop.f32.mrb[0].mxu0
        %v2542 = vadd.f32 %v2464, %v2541
        %v2543 = vpop.f32.mrb[0].mxu0
        %v2544 = vpop.f32.mrb[0].mxu0
        %v2545 = vadd.f32 %v2467, %v2544
        %v2546 = vpop.f32.mrb[0].mxu0
        %2547 = vmatprep.mubr.bf16.mxu0 0
        %2548 = vmatmul.mubr.bf16.gmra.mrb[0].mxu0 %v2505
        %v2549 = vpop.f32.mrb[0].mxu0
        %v2550 = vadd.f32 %v2472, %v2549
        %v2551 = vpop.f32.mrb[0].mxu0
        %v2552 = vpop.f32.mrb[0].mxu0
        %v2553 = vpop.f32.mrb[0].mxu0
        %2554 = vdwg.mxu0
        %v2555 = vadd.f32 %v940, %v2542
        %v2556 = vadd.f32 %v941, %v2545
        %v2557 = vadd.f32 %v942, %v2550
        %v2558 = vld [vmem:[%s892] sm:$0x1]
        %v2560 = vlaneseq
        %v2561 = vshrl.u32 %v2560, 7
        %v2562 = vsub.s32 0, %v2561
        %v2563 = vrot.slane %v2558, %v2562
        %v2565 = vadd.f32 %v2555, %v2563
        %v2566 = vadd.f32 %v2556, %v2563
        %v2567 = vadd.f32 %v2557, %v2563
        %v2568 = vld [vmem:[%s895] sm:$0x1]
        %v2569 = vld [vmem:[%s898] sm:$0x1]
        %2570 = vadd.xlane.f32.xlu0 %v2565
        %v2571 = vpop.xlane.xlu0 %2570
        %2572 = vadd.xlane.f32.xlu0 %v2566
        %v2573 = vpop.xlane.xlu0 %2572
        %2574 = vadd.xlane.f32.xlu0 %v2567
        %v2575 = vpop.xlane.xlu0 %2574
        %v2576 = vmul.f32 %v2571, %v951
        %v2577 = vmul.f32 %v2573, %v951
        %v2578 = vmul.f32 %v2575, %v951
        %v2579 = vsub.f32 %v2565, %v2576
        %v2580 = vsub.f32 %v2566, %v2577
        %v2581 = vsub.f32 %v2567, %v2578
        %v2582 = vmul.f32 %v2579, %v2579
        %v2583 = vmul.f32 %v2580, %v2580
        %v2584 = vmul.f32 %v2581, %v2581
        %2585 = vadd.xlane.f32.xlu0 %v2582
        %v2586 = vpop.xlane.xlu0 %2585
        %2587 = vadd.xlane.f32.xlu0 %v2583
        %v2588 = vpop.xlane.xlu0 %2587
        %2589 = vadd.xlane.f32.xlu0 %v2584
        %v2590 = vpop.xlane.xlu0 %2589
        %v2591 = vmul.f32 %v2586, %v951
        %v2592 = vmul.f32 %v2588, %v951
        %v2593 = vmul.f32 %v2590, %v951
        %v2594 = vadd.f32 %v2591, 1e-05
        %v2595 = vadd.f32 %v2592, 1e-05
        %v2596 = vadd.f32 %v2593, 1e-05
        %v2597 = vrsqrt.pop %v2594
        %v2598 = vrsqrt.pop %v2595
        %v2599 = vrsqrt.pop %v2596
        %v2600 = vmul.f32 %v2579, %v2597
        %v2601 = vmul.f32 %v2580, %v2598
        %v2602 = vmul.f32 %v2581, %v2599
        %v2604 = vlaneseq
        %v2605 = vshrl.u32 %v2604, 7
        %v2606 = vsub.s32 0, %v2605
        %v2607 = vrot.slane %v2568, %v2606
        %v2609 = vmul.f32 %v2600, %v2607
        %v2610 = vmul.f32 %v2601, %v2607
        %v2611 = vmul.f32 %v2602, %v2607
        %v2613 = vlaneseq
        %v2614 = vshrl.u32 %v2613, 7
        %v2615 = vsub.s32 0, %v2614
        %v2616 = vrot.slane %v2569, %v2615
        %v2618 = vadd.f32 %v2609, %v2616
        %v2619 = vadd.f32 %v2610, %v2616
        %v2620 = vadd.f32 %v2611, %v2616
        %v2621 = vpack.c.bf16 %v2619, %v2618
        %v2622 = vpack.c.bf16 %v2620, %v2620
        %v2623 = vld [vmem:[%s903] sm:$0xff]
        %v2624 = vld [vmem:[%s903 + $0x8] sm:$0xff]
        %v2625 = vld [vmem:[%s903 + $0x10] sm:$0xff]
        %v2626 = vld [vmem:[%s903 + $0x18] sm:$0xff]
        %v2627 = vld [vmem:[%s903 + $0x20] sm:$0xff]
        %v2628 = vld [vmem:[%s903 + $0x28] sm:$0xff]
        %v2629 = vld [vmem:[%s903 + $0x30] sm:$0xff]
        %v2630 = vld [vmem:[%s903 + $0x38] sm:$0xff]
        %v2631 = vld [vmem:[%s903 + $0x40] sm:$0xff]
        %v2632 = vld [vmem:[%s903 + $0x48] sm:$0xff]
        %v2633 = vld [vmem:[%s903 + $0x50] sm:$0xff]
        %v2634 = vld [vmem:[%s903 + $0x58] sm:$0xff]
        %v2635 = vld [vmem:[%s903 + $0x60] sm:$0xff]
        %v2636 = vld [vmem:[%s903 + $0x68] sm:$0xff]
        %v2637 = vld [vmem:[%s903 + $0x70] sm:$0xff]
        %v2638 = vld [vmem:[%s903 + $0x78] sm:$0xff]
        %v2639 = vld [vmem:[%s903 + $0x80] sm:$0xff]
        %v2640 = vld [vmem:[%s903 + $0x88] sm:$0xff]
        %v2641 = vld [vmem:[%s903 + $0x90] sm:$0xff]
        %v2642 = vld [vmem:[%s903 + $0x98] sm:$0xff]
        %v2643 = vld [vmem:[%s903 + $0xa0] sm:$0xff]
        %v2644 = vld [vmem:[%s903 + $0xa8] sm:$0xff]
        %v2645 = vld [vmem:[%s903 + $0xb0] sm:$0xff]
        %v2646 = vld [vmem:[%s903 + $0xb8] sm:$0xff]
        %v2647 = vld [vmem:[%s903 + $0xc0] sm:$0xff]
        %v2648 = vld [vmem:[%s903 + $0xc8] sm:$0xff]
        %v2649 = vld [vmem:[%s903 + $0xd0] sm:$0xff]
        %v2650 = vld [vmem:[%s903 + $0xd8] sm:$0xff]
        %v2651 = vld [vmem:[%s903 + $0xe0] sm:$0xff]
        %v2652 = vld [vmem:[%s903 + $0xe8] sm:$0xff]
        %v2653 = vld [vmem:[%s903 + $0xf0] sm:$0xff]
        %v2654 = vld [vmem:[%s903 + $0xf8] sm:$0xff]
        %v2655 = vld [vmem:[%s907] sm:$0xf]
        %v2657 = vlaneseq
        %v2658 = vshrl.u32 %v2657, 7
        %v2659 = vsub.s32 0, %v2658
        %v2660 = vrot.slane %v2655, %v2659
        %v2661 = vlaneseq
        %v2662 = vshrl.u32 %v2661, 7
        %v2663 = vsub.s32 1, %v2662
        %v2664 = vrot.slane %v2655, %v2663
        %v2665 = vlaneseq
        %v2666 = vshrl.u32 %v2665, 7
        %v2667 = vsub.s32 2, %v2666
        %v2668 = vrot.slane %v2655, %v2667
        %v2669 = vlaneseq
        %v2670 = vshrl.u32 %v2669, 7
        %v2671 = vsub.s32 3, %v2670
        %v2672 = vrot.slane %v2655, %v2671
        %v2709 = vunpack.c.l.b16 %v2623
        %v2710 = vunpack.c.h.b16 %v2623
        %v2711 = vunpack.c.l.b16 %v2624
        %v2712 = vunpack.c.h.b16 %v2624
        %v2713 = vunpack.c.l.b16 %v2625
        %v2714 = vunpack.c.h.b16 %v2625
        %v2715 = vunpack.c.l.b16 %v2626
        %v2716 = vunpack.c.h.b16 %v2626
        %v2717 = vunpack.c.l.b16 %v2627
        %v2718 = vunpack.c.h.b16 %v2627
        %v2719 = vunpack.c.l.b16 %v2628
        %v2720 = vunpack.c.h.b16 %v2628
        %v2721 = vunpack.c.l.b16 %v2629
        %v2722 = vunpack.c.h.b16 %v2629
        %v2723 = vunpack.c.l.b16 %v2630
        %v2724 = vunpack.c.h.b16 %v2630
        %v2725 = vunpack.c.l.b16 %v2631
        %v2726 = vunpack.c.h.b16 %v2631
        %v2727 = vunpack.c.l.b16 %v2632
        %v2728 = vunpack.c.h.b16 %v2632
        %v2729 = vunpack.c.l.b16 %v2633
        %v2730 = vunpack.c.h.b16 %v2633
        %v2731 = vunpack.c.l.b16 %v2634
        %v2732 = vunpack.c.h.b16 %v2634
        %v2733 = vunpack.c.l.b16 %v2635
        %v2734 = vunpack.c.h.b16 %v2635
        %v2735 = vunpack.c.l.b16 %v2636
        %v2736 = vunpack.c.h.b16 %v2636
        %v2737 = vunpack.c.l.b16 %v2637
        %v2738 = vunpack.c.h.b16 %v2637
        %v2739 = vunpack.c.l.b16 %v2638
        %v2740 = vunpack.c.h.b16 %v2638
        %v2741 = vunpack.c.l.b16 %v2639
        %v2742 = vunpack.c.h.b16 %v2639
        %v2743 = vunpack.c.l.b16 %v2640
        %v2744 = vunpack.c.h.b16 %v2640
        %v2745 = vunpack.c.l.b16 %v2641
        %v2746 = vunpack.c.h.b16 %v2641
        %v2747 = vunpack.c.l.b16 %v2642
        %v2748 = vunpack.c.h.b16 %v2642
        %v2749 = vunpack.c.l.b16 %v2643
        %v2750 = vunpack.c.h.b16 %v2643
        %v2751 = vunpack.c.l.b16 %v2644
        %v2752 = vunpack.c.h.b16 %v2644
        %v2753 = vunpack.c.l.b16 %v2645
        %v2754 = vunpack.c.h.b16 %v2645
        %v2755 = vunpack.c.l.b16 %v2646
        %v2756 = vunpack.c.h.b16 %v2646
        %v2757 = vunpack.c.l.b16 %v2647
        %v2758 = vunpack.c.h.b16 %v2647
        %v2759 = vunpack.c.l.b16 %v2648
        %v2760 = vunpack.c.h.b16 %v2648
        %v2761 = vunpack.c.l.b16 %v2649
        %v2762 = vunpack.c.h.b16 %v2649
        %v2763 = vunpack.c.l.b16 %v2650
        %v2764 = vunpack.c.h.b16 %v2650
        %v2765 = vunpack.c.l.b16 %v2651
        %v2766 = vunpack.c.h.b16 %v2651
        %v2767 = vunpack.c.l.b16 %v2652
        %v2768 = vunpack.c.h.b16 %v2652
        %v2769 = vunpack.c.l.b16 %v2653
        %v2770 = vunpack.c.h.b16 %v2653
        %v2771 = vunpack.c.l.b16 %v2654
        %v2772 = vunpack.c.h.b16 %v2654
        %v2773 = vpack.c.b16 %v2713, %v2709
        %v2774 = vpack.c.b16 %v2714, %v2710
        %v2775 = vpack.c.b16 %v2715, %v2711
        %v2776 = vpack.c.b16 %v2716, %v2712
        %v2777 = vpack.c.b16 %v2721, %v2717
        %v2778 = vpack.c.b16 %v2722, %v2718
        %v2779 = vpack.c.b16 %v2723, %v2719
        %v2780 = vpack.c.b16 %v2724, %v2720
        %v2781 = vpack.c.b16 %v2729, %v2725
        %v2782 = vpack.c.b16 %v2730, %v2726
        %v2783 = vpack.c.b16 %v2731, %v2727
        %v2784 = vpack.c.b16 %v2732, %v2728
        %v2785 = vpack.c.b16 %v2737, %v2733
        %v2786 = vpack.c.b16 %v2738, %v2734
        %v2787 = vpack.c.b16 %v2739, %v2735
        %v2788 = vpack.c.b16 %v2740, %v2736
        %v2789 = vpack.c.b16 %v2745, %v2741
        %v2790 = vpack.c.b16 %v2746, %v2742
        %v2791 = vpack.c.b16 %v2747, %v2743
        %v2792 = vpack.c.b16 %v2748, %v2744
        %v2793 = vpack.c.b16 %v2753, %v2749
        %v2794 = vpack.c.b16 %v2754, %v2750
        %v2795 = vpack.c.b16 %v2755, %v2751
        %v2796 = vpack.c.b16 %v2756, %v2752
        %v2797 = vpack.c.b16 %v2761, %v2757
        %v2798 = vpack.c.b16 %v2762, %v2758
        %v2799 = vpack.c.b16 %v2763, %v2759
        %v2800 = vpack.c.b16 %v2764, %v2760
        %v2801 = vpack.c.b16 %v2769, %v2765
        %v2802 = vpack.c.b16 %v2770, %v2766
        %v2803 = vpack.c.b16 %v2771, %v2767
        %v2804 = vpack.c.b16 %v2772, %v2768
        %2837 = vmatprep.subr.bf16.mxu0 %v2774
        %2838 = vmatpush1.bf16.msra.mxu0 %v2773
        %2839 = vmatprep.subr.bf16.mxu0 %v2778
        %2840 = vmatpush1.bf16.msra.mxu0 %v2777
        %2841 = vmatprep.subr.bf16.mxu0 %v2782
        %2842 = vmatpush1.bf16.msra.mxu0 %v2781
        %2843 = vmatprep.subr.bf16.mxu0 %v2786
        %2844 = vmatpush1.bf16.msra.mxu0 %v2785
        %2845 = vmatprep.subr.bf16.mxu0 %v2790
        %2846 = vmatpush1.bf16.msra.mxu0 %v2789
        %2847 = vmatprep.subr.bf16.mxu0 %v2794
        %2848 = vmatpush1.bf16.msra.mxu0 %v2793
        %2849 = vmatprep.subr.bf16.mxu0 %v2798
        %2850 = vmatpush1.bf16.msra.mxu0 %v2797
        %2851 = vmatprep.subr.bf16.mxu0 %v2802
        %2852 = vmatpush1.bf16.msra.mxu0 %v2801
        %2853 = vmatprep.subr.bf16.mxu0 0
        %2854 = vmatpush1.bf16.msra.mxu0 0
        %2855 = vmatprep.subr.bf16.mxu0 0
        %2856 = vmatpush1.bf16.msra.mxu0 0
        %2857 = vmatprep.subr.bf16.mxu0 0
        %2858 = vmatpush1.bf16.msra.mxu0 0
        %2859 = vmatprep.subr.bf16.mxu0 0
        %2860 = vmatpush1.bf16.msra.mxu0 0
        %2861 = vmatprep.subr.bf16.mxu0 0
        %2862 = vmatpush1.bf16.msra.mxu0 0
        %2863 = vmatprep.subr.bf16.mxu0 0
        %2864 = vmatpush1.bf16.msra.mxu0 0
        %2865 = vmatprep.subr.bf16.mxu0 0
        %2866 = vmatpush1.bf16.msra.mxu0 0
        %2867 = vmatprep.subr.bf16.mxu0 0
        %2868 = vmatpush1.bf16.msra.mxu0 0
        %2869 = vmatprep.mubr.bf16.mxu0 0
        %2870 = vmatmul.mubr.bf16.gmra.mrb[0].mxu0 %v2621
        %v2871 = vpop.f32.mrb[0].mxu0
        %v2872 = vadd.f32 %v2660, %v2871
        %v2873 = vpop.f32.mrb[0].mxu0
        %v2874 = vadd.f32 %v2664, %v2873
        %v2875 = vpop.f32.mrb[0].mxu0
        %v2876 = vadd.f32 %v2660, %v2875
        %v2877 = vpop.f32.mrb[0].mxu0
        %v2878 = vadd.f32 %v2664, %v2877
        %2879 = vmatprep.mubr.bf16.mxu0 0
        %2880 = vmatmul.mubr.bf16.gmra.mrb[0].mxu0 %v2622
        %v2881 = vpop.f32.mrb[0].mxu0
        %v2882 = vadd.f32 %v2660, %v2881
        %v2883 = vpop.f32.mrb[0].mxu0
        %v2884 = vadd.f32 %v2664, %v2883
        %v2885 = vpop.f32.mrb[0].mxu0
        %v2886 = vpop.f32.mrb[0].mxu0
        %2887 = vdwg.mxu0
        %2888 = vmatprep.subr.bf16.mxu0 %v2776
        %2889 = vmatpush1.bf16.msra.mxu0 %v2775
        %2890 = vmatprep.subr.bf16.mxu0 %v2780
        %2891 = vmatpush1.bf16.msra.mxu0 %v2779
        %2892 = vmatprep.subr.bf16.mxu0 %v2784
        %2893 = vmatpush1.bf16.msra.mxu0 %v2783
        %2894 = vmatprep.subr.bf16.mxu0 %v2788
        %2895 = vmatpush1.bf16.msra.mxu0 %v2787
        %2896 = vmatprep.subr.bf16.mxu0 %v2792
        %2897 = vmatpush1.bf16.msra.mxu0 %v2791
        %2898 = vmatprep.subr.bf16.mxu0 %v2796
        %2899 = vmatpush1.bf16.msra.mxu0 %v2795
        %2900 = vmatprep.subr.bf16.mxu0 %v2800
        %2901 = vmatpush1.bf16.msra.mxu0 %v2799
        %2902 = vmatprep.subr.bf16.mxu0 %v2804
        %2903 = vmatpush1.bf16.msra.mxu0 %v2803
        %2904 = vmatprep.subr.bf16.mxu0 0
        %2905 = vmatpush1.bf16.msra.mxu0 0
        %2906 = vmatprep.subr.bf16.mxu0 0
        %2907 = vmatpush1.bf16.msra.mxu0 0
        %2908 = vmatprep.subr.bf16.mxu0 0
        %2909 = vmatpush1.bf16.msra.mxu0 0
        %2910 = vmatprep.subr.bf16.mxu0 0
        %2911 = vmatpush1.bf16.msra.mxu0 0
        %2912 = vmatprep.subr.bf16.mxu0 0
        %2913 = vmatpush1.bf16.msra.mxu0 0
        %2914 = vmatprep.subr.bf16.mxu0 0
        %2915 = vmatpush1.bf16.msra.mxu0 0
        %2916 = vmatprep.subr.bf16.mxu0 0
        %2917 = vmatpush1.bf16.msra.mxu0 0
        %2918 = vmatprep.subr.bf16.mxu0 0
        %2919 = vmatpush1.bf16.msra.mxu0 0
        %2920 = vmatprep.mubr.bf16.mxu0 0
        %2921 = vmatmul.mubr.bf16.gmra.mrb[0].mxu0 %v2621
        %v2922 = vpop.f32.mrb[0].mxu0
        %v2923 = vadd.f32 %v2668, %v2922
        %v2924 = vpop.f32.mrb[0].mxu0
        %v2925 = vadd.f32 %v2672, %v2924
        %v2926 = vpop.f32.mrb[0].mxu0
        %v2927 = vadd.f32 %v2668, %v2926
        %v2928 = vpop.f32.mrb[0].mxu0
        %v2929 = vadd.f32 %v2672, %v2928
        %2930 = vmatprep.mubr.bf16.mxu0 0
        %2931 = vmatmul.mubr.bf16.gmra.mrb[0].mxu0 %v2622
        %v2932 = vpop.f32.mrb[0].mxu0
        %v2933 = vadd.f32 %v2668, %v2932
        %v2934 = vpop.f32.mrb[0].mxu0
        %v2935 = vadd.f32 %v2672, %v2934
        %v2936 = vpop.f32.mrb[0].mxu0
        %v2937 = vpop.f32.mrb[0].mxu0
        %2938 = vdwg.mxu0
        %v2939 = vmul.f32 %v2872, 1.702
        %v2940 = vmul.f32 %v2874, 1.702
        %v2941 = vmul.f32 %v2923, 1.702
        %v2942 = vmul.f32 %v2925, 1.702
        %v2943 = vmul.f32 %v2876, 1.702
        %v2944 = vmul.f32 %v2878, 1.702
        %v2945 = vmul.f32 %v2927, 1.702
        %v2946 = vmul.f32 %v2929, 1.702
        %v2947 = vmul.f32 %v2882, 1.702
        %v2948 = vmul.f32 %v2884, 1.702
        %v2949 = vmul.f32 %v2933, 1.702
        %v2950 = vmul.f32 %v2935, 1.702
        %v2951 = vxor.u32 %v2939, 2147483648
        %v2952 = vxor.u32 %v2940, 2147483648
        %v2953 = vxor.u32 %v2941, 2147483648
        %v2954 = vxor.u32 %v2942, 2147483648
        %v2955 = vxor.u32 %v2943, 2147483648
        %v2956 = vxor.u32 %v2944, 2147483648
        %v2957 = vxor.u32 %v2945, 2147483648
        %v2958 = vxor.u32 %v2946, 2147483648
        %v2959 = vxor.u32 %v2947, 2147483648
        %v2960 = vxor.u32 %v2948, 2147483648
        %v2961 = vxor.u32 %v2949, 2147483648
        %v2962 = vxor.u32 %v2950, 2147483648
        %v2963 = vmul.f32 %v2951, 1.442695
        %v2964 = vpow.pop %v2963
        %v2965 = vmul.f32 %v2952, 1.442695
        %v2966 = vpow.pop %v2965
        %v2967 = vmul.f32 %v2953, 1.442695
        %v2968 = vpow.pop %v2967
        %v2969 = vmul.f32 %v2954, 1.442695
        %v2970 = vpow.pop %v2969
        %v2971 = vmul.f32 %v2955, 1.442695
        %v2972 = vpow.pop %v2971
        %v2973 = vmul.f32 %v2956, 1.442695
        %v2974 = vpow.pop %v2973
        %v2975 = vmul.f32 %v2957, 1.442695
        %v2976 = vpow.pop %v2975
        %v2977 = vmul.f32 %v2958, 1.442695
        %v2978 = vpow.pop %v2977
        %v2979 = vmul.f32 %v2959, 1.442695
        %v2980 = vpow.pop %v2979
        %v2981 = vmul.f32 %v2960, 1.442695
        %v2982 = vpow.pop %v2981
        %v2983 = vmul.f32 %v2961, 1.442695
        %v2984 = vpow.pop %v2983
        %v2985 = vmul.f32 %v2962, 1.442695
        %v2986 = vpow.pop %v2985
        %v2987 = vadd.f32 %v2964, 1.0
        %v2988 = vadd.f32 %v2966, 1.0
        %v2989 = vadd.f32 %v2968, 1.0
        %v2990 = vadd.f32 %v2970, 1.0
        %v2991 = vadd.f32 %v2972, 1.0
        %v2992 = vadd.f32 %v2974, 1.0
        %v2993 = vadd.f32 %v2976, 1.0
        %v2994 = vadd.f32 %v2978, 1.0
        %v2995 = vadd.f32 %v2980, 1.0
        %v2996 = vadd.f32 %v2982, 1.0
        %v2997 = vadd.f32 %v2984, 1.0
        %v2998 = vadd.f32 %v2986, 1.0
        %v2999 = vrcp.pop %v2987
        %v3000 = vmul.f32 1.0, %v2999
        %v3001 = vrcp.pop %v2988
        %v3002 = vmul.f32 1.0, %v3001
        %v3003 = vrcp.pop %v2989
        %v3004 = vmul.f32 1.0, %v3003
        %v3005 = vrcp.pop %v2990
        %v3006 = vmul.f32 1.0, %v3005
        %v3007 = vrcp.pop %v2991
        %v3008 = vmul.f32 1.0, %v3007
        %v3009 = vrcp.pop %v2992
        %v3010 = vmul.f32 1.0, %v3009
        %v3011 = vrcp.pop %v2993
        %v3012 = vmul.f32 1.0, %v3011
        %v3013 = vrcp.pop %v2994
        %v3014 = vmul.f32 1.0, %v3013
        %v3015 = vrcp.pop %v2995
        %v3016 = vmul.f32 1.0, %v3015
        %v3017 = vrcp.pop %v2996
        %v3018 = vmul.f32 1.0, %v3017
        %v3019 = vrcp.pop %v2997
        %v3020 = vmul.f32 1.0, %v3019
        %v3021 = vrcp.pop %v2998
        %v3022 = vmul.f32 1.0, %v3021
        %v3023 = vmul.f32 %v2872, %v3000
        %v3024 = vmul.f32 %v2874, %v3002
        %v3025 = vmul.f32 %v2923, %v3004
        %v3026 = vmul.f32 %v2925, %v3006
        %v3027 = vmul.f32 %v2876, %v3008
        %v3028 = vmul.f32 %v2878, %v3010
        %v3029 = vmul.f32 %v2927, %v3012
        %v3030 = vmul.f32 %v2929, %v3014
        %v3031 = vmul.f32 %v2882, %v3016
        %v3032 = vmul.f32 %v2884, %v3018
        %v3033 = vmul.f32 %v2933, %v3020
        %v3034 = vmul.f32 %v2935, %v3022
        %v3035 = vpack.c.bf16 %v3027, %v3023
        %v3036 = vpack.c.bf16 %v3028, %v3024
        %v3037 = vpack.c.bf16 %v3029, %v3025
        %v3038 = vpack.c.bf16 %v3030, %v3026
        %v3039 = vpack.c.bf16 %v3031, %v3031
        %v3040 = vpack.c.bf16 %v3032, %v3032
        %v3041 = vpack.c.bf16 %v3033, %v3033
        %v3042 = vpack.c.bf16 %v3034, %v3034
        %v3043 = vld [vmem:[%s912] sm:$0xf]
        %v3044 = vld [vmem:[%s912 + $0x4] sm:$0xf]
        %v3045 = vld [vmem:[%s912 + $0x8] sm:$0xf]
        %v3046 = vld [vmem:[%s912 + $0xc] sm:$0xf]
        %v3047 = vld [vmem:[%s912 + $0x10] sm:$0xf]
        %v3048 = vld [vmem:[%s912 + $0x14] sm:$0xf]
        %v3049 = vld [vmem:[%s912 + $0x18] sm:$0xf]
        %v3050 = vld [vmem:[%s912 + $0x1c] sm:$0xf]
        %v3051 = vld [vmem:[%s912 + $0x20] sm:$0xf]
        %v3052 = vld [vmem:[%s912 + $0x24] sm:$0xf]
        %v3053 = vld [vmem:[%s912 + $0x28] sm:$0xf]
        %v3054 = vld [vmem:[%s912 + $0x2c] sm:$0xf]
        %v3055 = vld [vmem:[%s912 + $0x30] sm:$0xf]
        %v3056 = vld [vmem:[%s912 + $0x34] sm:$0xf]
        %v3057 = vld [vmem:[%s912 + $0x38] sm:$0xf]
        %v3058 = vld [vmem:[%s912 + $0x3c] sm:$0xf]
        %v3059 = vld [vmem:[%s912 + $0x40] sm:$0xf]
        %v3060 = vld [vmem:[%s912 + $0x44] sm:$0xf]
        %v3061 = vld [vmem:[%s912 + $0x48] sm:$0xf]
        %v3062 = vld [vmem:[%s912 + $0x4c] sm:$0xf]
        %v3063 = vld [vmem:[%s912 + $0x50] sm:$0xf]
        %v3064 = vld [vmem:[%s912 + $0x54] sm:$0xf]
        %v3065 = vld [vmem:[%s912 + $0x58] sm:$0xf]
        %v3066 = vld [vmem:[%s912 + $0x5c] sm:$0xf]
        %v3067 = vld [vmem:[%s912 + $0x60] sm:$0xf]
        %v3068 = vld [vmem:[%s912 + $0x64] sm:$0xf]
        %v3069 = vld [vmem:[%s912 + $0x68] sm:$0xf]
        %v3070 = vld [vmem:[%s912 + $0x6c] sm:$0xf]
        %v3071 = vld [vmem:[%s912 + $0x70] sm:$0xf]
        %v3072 = vld [vmem:[%s912 + $0x74] sm:$0xf]
        %v3073 = vld [vmem:[%s912 + $0x78] sm:$0xf]
        %v3074 = vld [vmem:[%s912 + $0x7c] sm:$0xf]
        %v3075 = vld [vmem:[%s912 + $0x80] sm:$0xf]
        %v3076 = vld [vmem:[%s912 + $0x84] sm:$0xf]
        %v3077 = vld [vmem:[%s912 + $0x88] sm:$0xf]
        %v3078 = vld [vmem:[%s912 + $0x8c] sm:$0xf]
        %v3079 = vld [vmem:[%s912 + $0x90] sm:$0xf]
        %v3080 = vld [vmem:[%s912 + $0x94] sm:$0xf]
        %v3081 = vld [vmem:[%s912 + $0x98] sm:$0xf]
        %v3082 = vld [vmem:[%s912 + $0x9c] sm:$0xf]
        %v3083 = vld [vmem:[%s912 + $0xa0] sm:$0xf]
        %v3084 = vld [vmem:[%s912 + $0xa4] sm:$0xf]
        %v3085 = vld [vmem:[%s912 + $0xa8] sm:$0xf]
        %v3086 = vld [vmem:[%s912 + $0xac] sm:$0xf]
        %v3087 = vld [vmem:[%s912 + $0xb0] sm:$0xf]
        %v3088 = vld [vmem:[%s912 + $0xb4] sm:$0xf]
        %v3089 = vld [vmem:[%s912 + $0xb8] sm:$0xf]
        %v3090 = vld [vmem:[%s912 + $0xbc] sm:$0xf]
        %v3091 = vld [vmem:[%s912 + $0xc0] sm:$0xf]
        %v3092 = vld [vmem:[%s912 + $0xc4] sm:$0xf]
        %v3093 = vld [vmem:[%s912 + $0xc8] sm:$0xf]
        %v3094 = vld [vmem:[%s912 + $0xcc] sm:$0xf]
        %v3095 = vld [vmem:[%s912 + $0xd0] sm:$0xf]
        %v3096 = vld [vmem:[%s912 + $0xd4] sm:$0xf]
        %v3097 = vld [vmem:[%s912 + $0xd8] sm:$0xf]
        %v3098 = vld [vmem:[%s912 + $0xdc] sm:$0xf]
        %v3099 = vld [vmem:[%s912 + $0xe0] sm:$0xf]
        %v3100 = vld [vmem:[%s912 + $0xe4] sm:$0xf]
        %v3101 = vld [vmem:[%s912 + $0xe8] sm:$0xf]
        %v3102 = vld [vmem:[%s912 + $0xec] sm:$0xf]
        %v3103 = vld [vmem:[%s912 + $0xf0] sm:$0xf]
        %v3104 = vld [vmem:[%s912 + $0xf4] sm:$0xf]
        %v3105 = vld [vmem:[%s912 + $0xf8] sm:$0xf]
        %v3106 = vld [vmem:[%s912 + $0xfc] sm:$0xf]
        %v3171 = vunpack.c.l.b16 %v3043
        %v3172 = vunpack.c.l.b16 %v3044
        %v3173 = vunpack.c.l.b16 %v3045
        %v3174 = vunpack.c.l.b16 %v3046
        %v3175 = vunpack.c.l.b16 %v3047
        %v3176 = vunpack.c.l.b16 %v3048
        %v3177 = vunpack.c.l.b16 %v3049
        %v3178 = vunpack.c.l.b16 %v3050
        %v3179 = vunpack.c.l.b16 %v3051
        %v3180 = vunpack.c.l.b16 %v3052
        %v3181 = vunpack.c.l.b16 %v3053
        %v3182 = vunpack.c.l.b16 %v3054
        %v3183 = vunpack.c.l.b16 %v3055
        %v3184 = vunpack.c.l.b16 %v3056
        %v3185 = vunpack.c.l.b16 %v3057
        %v3186 = vunpack.c.l.b16 %v3058
        %v3187 = vunpack.c.l.b16 %v3059
        %v3188 = vunpack.c.l.b16 %v3060
        %v3189 = vunpack.c.l.b16 %v3061
        %v3190 = vunpack.c.l.b16 %v3062
        %v3191 = vunpack.c.l.b16 %v3063
        %v3192 = vunpack.c.l.b16 %v3064
        %v3193 = vunpack.c.l.b16 %v3065
        %v3194 = vunpack.c.l.b16 %v3066
        %v3195 = vunpack.c.l.b16 %v3067
        %v3196 = vunpack.c.l.b16 %v3068
        %v3197 = vunpack.c.l.b16 %v3069
        %v3198 = vunpack.c.l.b16 %v3070
        %v3199 = vunpack.c.l.b16 %v3071
        %v3200 = vunpack.c.l.b16 %v3072
        %v3201 = vunpack.c.l.b16 %v3073
        %v3202 = vunpack.c.l.b16 %v3074
        %v3203 = vunpack.c.l.b16 %v3075
        %v3204 = vunpack.c.l.b16 %v3076
        %v3205 = vunpack.c.l.b16 %v3077
        %v3206 = vunpack.c.l.b16 %v3078
        %v3207 = vunpack.c.l.b16 %v3079
        %v3208 = vunpack.c.l.b16 %v3080
        %v3209 = vunpack.c.l.b16 %v3081
        %v3210 = vunpack.c.l.b16 %v3082
        %v3211 = vunpack.c.l.b16 %v3083
        %v3212 = vunpack.c.l.b16 %v3084
        %v3213 = vunpack.c.l.b16 %v3085
        %v3214 = vunpack.c.l.b16 %v3086
        %v3215 = vunpack.c.l.b16 %v3087
        %v3216 = vunpack.c.l.b16 %v3088
        %v3217 = vunpack.c.l.b16 %v3089
        %v3218 = vunpack.c.l.b16 %v3090
        %v3219 = vunpack.c.l.b16 %v3091
        %v3220 = vunpack.c.l.b16 %v3092
        %v3221 = vunpack.c.l.b16 %v3093
        %v3222 = vunpack.c.l.b16 %v3094
        %v3223 = vunpack.c.l.b16 %v3095
        %v3224 = vunpack.c.l.b16 %v3096
        %v3225 = vunpack.c.l.b16 %v3097
        %v3226 = vunpack.c.l.b16 %v3098
        %v3227 = vunpack.c.l.b16 %v3099
        %v3228 = vunpack.c.l.b16 %v3100
        %v3229 = vunpack.c.l.b16 %v3101
        %v3230 = vunpack.c.l.b16 %v3102
        %v3231 = vunpack.c.l.b16 %v3103
        %v3232 = vunpack.c.l.b16 %v3104
        %v3233 = vunpack.c.l.b16 %v3105
        %v3234 = vunpack.c.l.b16 %v3106
        %v3235 = vpack.c.b16 %v3172, %v3171
        %v3236 = vpack.c.b16 %v3174, %v3173
        %v3237 = vpack.c.b16 %v3176, %v3175
        %v3238 = vpack.c.b16 %v3178, %v3177
        %v3239 = vpack.c.b16 %v3180, %v3179
        %v3240 = vpack.c.b16 %v3182, %v3181
        %v3241 = vpack.c.b16 %v3184, %v3183
        %v3242 = vpack.c.b16 %v3186, %v3185
        %v3243 = vpack.c.b16 %v3188, %v3187
        %v3244 = vpack.c.b16 %v3190, %v3189
        %v3245 = vpack.c.b16 %v3192, %v3191
        %v3246 = vpack.c.b16 %v3194, %v3193
        %v3247 = vpack.c.b16 %v3196, %v3195
        %v3248 = vpack.c.b16 %v3198, %v3197
        %v3249 = vpack.c.b16 %v3200, %v3199
        %v3250 = vpack.c.b16 %v3202, %v3201
        %v3251 = vpack.c.b16 %v3204, %v3203
        %v3252 = vpack.c.b16 %v3206, %v3205
        %v3253 = vpack.c.b16 %v3208, %v3207
        %v3254 = vpack.c.b16 %v3210, %v3209
        %v3255 = vpack.c.b16 %v3212, %v3211
        %v3256 = vpack.c.b16 %v3214, %v3213
        %v3257 = vpack.c.b16 %v3216, %v3215
        %v3258 = vpack.c.b16 %v3218, %v3217
        %v3259 = vpack.c.b16 %v3220, %v3219
        %v3260 = vpack.c.b16 %v3222, %v3221
        %v3261 = vpack.c.b16 %v3224, %v3223
        %v3262 = vpack.c.b16 %v3226, %v3225
        %v3263 = vpack.c.b16 %v3228, %v3227
        %v3264 = vpack.c.b16 %v3230, %v3229
        %v3265 = vpack.c.b16 %v3232, %v3231
        %v3266 = vpack.c.b16 %v3234, %v3233
        %3299 = vmatprep.subr.bf16.mxu0 0
        %3300 = vmatpush1.bf16.msra.mxu0 %v3235
        %3301 = vmatprep.subr.bf16.mxu0 0
        %3302 = vmatpush1.bf16.msra.mxu0 %v3236
        %3303 = vmatprep.subr.bf16.mxu0 0
        %3304 = vmatpush1.bf16.msra.mxu0 %v3237
        %3305 = vmatprep.subr.bf16.mxu0 0
        %3306 = vmatpush1.bf16.msra.mxu0 %v3238
        %3307 = vmatprep.subr.bf16.mxu0 0
        %3308 = vmatpush1.bf16.msra.mxu0 %v3239
        %3309 = vmatprep.subr.bf16.mxu0 0
        %3310 = vmatpush1.bf16.msra.mxu0 %v3240
        %3311 = vmatprep.subr.bf16.mxu0 0
        %3312 = vmatpush1.bf16.msra.mxu0 %v3241
        %3313 = vmatprep.subr.bf16.mxu0 0
        %3314 = vmatpush1.bf16.msra.mxu0 %v3242
        %3315 = vmatprep.subr.bf16.mxu0 0
        %3316 = vmatpush1.bf16.msra.mxu0 %v3243
        %3317 = vmatprep.subr.bf16.mxu0 0
        %3318 = vmatpush1.bf16.msra.mxu0 %v3244
        %3319 = vmatprep.subr.bf16.mxu0 0
        %3320 = vmatpush1.bf16.msra.mxu0 %v3245
        %3321 = vmatprep.subr.bf16.mxu0 0
        %3322 = vmatpush1.bf16.msra.mxu0 %v3246
        %3323 = vmatprep.subr.bf16.mxu0 0
        %3324 = vmatpush1.bf16.msra.mxu0 %v3247
        %3325 = vmatprep.subr.bf16.mxu0 0
        %3326 = vmatpush1.bf16.msra.mxu0 %v3248
        %3327 = vmatprep.subr.bf16.mxu0 0
        %3328 = vmatpush1.bf16.msra.mxu0 %v3249
        %3329 = vmatprep.subr.bf16.mxu0 0
        %3330 = vmatpush1.bf16.msra.mxu0 %v3250
        %3331 = vmatprep.mubr.bf16.mxu0 %v3036
        %3332 = vmatmul.mubr.bf16.gmra.mrb[0].mxu0 %v3035
        %v3333 = vpop.f32.mrb[0].mxu0
        %v3334 = vadd.f32 0.0, %v3333
        %v3335 = vpop.f32.mrb[0].mxu0
        %v3336 = vpop.f32.mrb[0].mxu0
        %v3337 = vadd.f32 0.0, %v3336
        %v3338 = vpop.f32.mrb[0].mxu0
        %3339 = vmatprep.mubr.bf16.mxu0 %v3040
        %3340 = vmatmul.mubr.bf16.gmra.mrb[0].mxu0 %v3039
        %v3341 = vpop.f32.mrb[0].mxu0
        %v3342 = vadd.f32 0.0, %v3341
        %v3343 = vpop.f32.mrb[0].mxu0
        %v3344 = vpop.f32.mrb[0].mxu0
        %v3345 = vpop.f32.mrb[0].mxu0
        %3346 = vdwg.mxu0
        %3347 = vmatprep.subr.bf16.mxu0 0
        %3348 = vmatpush1.bf16.msra.mxu0 %v3251
        %3349 = vmatprep.subr.bf16.mxu0 0
        %3350 = vmatpush1.bf16.msra.mxu0 %v3252
        %3351 = vmatprep.subr.bf16.mxu0 0
        %3352 = vmatpush1.bf16.msra.mxu0 %v3253
        %3353 = vmatprep.subr.bf16.mxu0 0
        %3354 = vmatpush1.bf16.msra.mxu0 %v3254
        %3355 = vmatprep.subr.bf16.mxu0 0
        %3356 = vmatpush1.bf16.msra.mxu0 %v3255
        %3357 = vmatprep.subr.bf16.mxu0 0
        %3358 = vmatpush1.bf16.msra.mxu0 %v3256
        %3359 = vmatprep.subr.bf16.mxu0 0
        %3360 = vmatpush1.bf16.msra.mxu0 %v3257
        %3361 = vmatprep.subr.bf16.mxu0 0
        %3362 = vmatpush1.bf16.msra.mxu0 %v3258
        %3363 = vmatprep.subr.bf16.mxu0 0
        %3364 = vmatpush1.bf16.msra.mxu0 %v3259
        %3365 = vmatprep.subr.bf16.mxu0 0
        %3366 = vmatpush1.bf16.msra.mxu0 %v3260
        %3367 = vmatprep.subr.bf16.mxu0 0
        %3368 = vmatpush1.bf16.msra.mxu0 %v3261
        %3369 = vmatprep.subr.bf16.mxu0 0
        %3370 = vmatpush1.bf16.msra.mxu0 %v3262
        %3371 = vmatprep.subr.bf16.mxu0 0
        %3372 = vmatpush1.bf16.msra.mxu0 %v3263
        %3373 = vmatprep.subr.bf16.mxu0 0
        %3374 = vmatpush1.bf16.msra.mxu0 %v3264
        %3375 = vmatprep.subr.bf16.mxu0 0
        %3376 = vmatpush1.bf16.msra.mxu0 %v3265
        %3377 = vmatprep.subr.bf16.mxu0 0
        %3378 = vmatpush1.bf16.msra.mxu0 %v3266
        %3379 = vmatprep.mubr.bf16.mxu0 %v3038
        %3380 = vmatmul.mubr.bf16.gmra.mrb[0].mxu0 %v3037
        %v3381 = vpop.f32.mrb[0].mxu0
        %v3382 = vadd.f32 %v3334, %v3381
        %v3383 = vpop.f32.mrb[0].mxu0
        %v3384 = vpop.f32.mrb[0].mxu0
        %v3385 = vadd.f32 %v3337, %v3384
        %v3386 = vpop.f32.mrb[0].mxu0
        %3387 = vmatprep.mubr.bf16.mxu0 %v3042
        %3388 = vmatmul.mubr.bf16.gmra.mrb[0].mxu0 %v3041
        %v3389 = vpop.f32.mrb[0].mxu0
        %v3390 = vadd.f32 %v3342, %v3389
        %v3391 = vpop.f32.mrb[0].mxu0
        %v3392 = vpop.f32.mrb[0].mxu0
        %v3393 = vpop.f32.mrb[0].mxu0
        %3394 = vdwg.mxu0
        %v3395 = vadd.f32 %v2565, %v3382
        %v3396 = vadd.f32 %v2566, %v3385
        %v3397 = vadd.f32 %v2567, %v3390
        %v3398 = vld [vmem:[%s915] sm:$0x1]
        %v3400 = vlaneseq
        %v3401 = vshrl.u32 %v3400, 7
        %v3402 = vsub.s32 0, %v3401
        %v3403 = vrot.slane %v3398, %v3402
        %v3405 = vadd.f32 %v3395, %v3403
        %v3406 = vadd.f32 %v3396, %v3403
        %v3407 = vadd.f32 %v3397, %v3403
        %3408 = vst [vmem:[#allocation2] sm:$0xff] %v3405
        %3409 = vst [vmem:[#allocation2 + $0x8] sm:$0xff] %v3406
        %3410 = vst [vmem:[#allocation2 + $0x10] sm:$0xff] %v3407
        %s3411 = sld [smem:[#allocation4]]
        %s3412 = scalar_lea.vmem [#allocation2], %s3411
        %v3413 = vld [vmem:[%s3412] sm:$0x1]
        %s3414 = sld [smem:[#allocation4 + $0x1]]
        %s3415 = sadd.s32 %s3414, 8
        %s3416 = scalar_lea.vmem [#allocation2], %s3415
        %v3417 = vld [vmem:[%s3416] sm:$0x1]
        %s3418 = sld [smem:[#allocation4 + $0x2]]
        %s3419 = sadd.s32 %s3418, 16
        %s3420 = scalar_lea.vmem [#allocation2], %s3419
        %v3421 = vld [vmem:[%s3420] sm:$0x1]
        %v3423 = vrot.slane %v3417, 7
        %v3426 = vrot.slane %v3421, 6
        %vm3428 = vcmask 1040384
        %v3429 = vsel %vm3428, %v3413, %v3423
        %vm3430 = vcmask 1041408
        %v3431 = vsel %vm3430, %v3429, %v3426
        %v3432 = vld [vmem:[%s18] sm:$0x1]
        %v3433 = vld [vmem:[%s19] sm:$0x1]
        %vm3434 = vcmask 1042432
        %v3435 = vsel %vm3434, %v3431, 0.0
        %3436 = vadd.xlane.f32.xlu0 %v3435
        %v3437 = vpop.xlane.xlu0 %3436
        %v3438 = vmul.f32 %v3437, %v951
        %v3439 = vsub.f32 %v3431, %v3438
        %v3440 = vmul.f32 %v3439, %v3439
        %v3441 = vsel %vm3434, %v3440, 0.0
        %3442 = vadd.xlane.f32.xlu0 %v3441
        %v3443 = vpop.xlane.xlu0 %3442
        %v3444 = vmul.f32 %v3443, %v951
        %v3445 = vadd.f32 %v3444, 1e-05
        %v3446 = vrsqrt.pop %v3445
        %v3447 = vmul.f32 %v3439, %v3446
        %v3449 = vlaneseq
        %v3450 = vshrl.u32 %v3449, 7
        %v3451 = vsub.s32 0, %v3450
        %v3452 = vrot.slane %v3432, %v3451
        %v3454 = vmul.f32 %v3447, %v3452
        %v3456 = vlaneseq
        %v3457 = vshrl.u32 %v3456, 7
        %v3458 = vsub.s32 0, %v3457
        %v3459 = vrot.slane %v3433, %v3458
        %v3461 = vadd.f32 %v3454, %v3459
        %3462 = vst [vmem:[%s923] sm:$0x7] %v3461
        %p3463 = scmp.lt.s32.totalorder %s44, 0
        %s3464 = scalar_select %p3463, %s44, 0
        %p3465 = scmp.lt.s32.totalorder %s45, 1
        %s3466 = scalar_select %p3465, %s45, 1
        %s3467 = smul.addr %s3464, 2
        %s3468 = sadd.s32 %s3466, %s3467
        %s3469 = smul.addr %s3468, 4
        %s3470 = scalar_lea.vmem %s20, %s3469
        // Predicated region
        $region105: #{precompute_text_features.1} parent=95 // pred_check
          %p3471 = pneg %p556
        $region106: #{precompute_text_features.1} parent=95 // pred_check_branch
          %3473 = sbr.rel (%p3471) target = $region108
        $region107: #{precompute_text_features.1} parent=95 // pred_region
          _
        $region108: #{precompute_text_features.1} parent=95 // pred_fallthru
          _
      $region96: #{precompute_text_features.1} parent=5 // pred_fallthru
        _
      %p3474 = scmp.le.s32.totalorder 2, %s35
      // Predicated region
      $region109: #{precompute_text_features.1} parent=5 // pred_check
        %p3475 = pneg %p3474
      $region110: #{precompute_text_features.1} parent=5 // pred_check_branch
        %3477 = sbr.rel (%p3475) target = $region112
      $region111: #{precompute_text_features.1} parent=5 // pred_region
        %s3478 = ssub.s32 %s35, 2
        // Predicated region
        $region113: #{precompute_text_features.1} parent=111 // pred_check
          %p3479 = pneg %p562
        $region114: #{precompute_text_features.1} parent=111 // pred_check_branch
          %3481 = sbr.rel (%p3479) target = $region116
        $region115: #{precompute_text_features.1} parent=111 // pred_region
          %p3482 = scmp.lt.s32.totalorder %s46, 0
          %s3483 = scalar_select %p3482, %s46, 0
          %p3484 = scmp.lt.s32.totalorder %s47, 1
          %s3485 = scalar_select %p3484, %s47, 1
          %s3486 = smul.addr %s3483, 2
          %s3487 = sadd.s32 %s3485, %s3486
          %s3488 = smul.addr %s3487, 4
          %s3489 = scalar_lea.vmem %s20, %s3488
        $region116: #{precompute_text_features.1} parent=111 // pred_fallthru
          _
      $region112: #{precompute_text_features.1} parent=5 // pred_fallthru
        _
    $region6: #{precompute_text_features.1} parent=1 // loop_footer
      %s39 = sadd.s32 1, %s35
    $region7: #{precompute_text_features.1} parent=1 // loop_footer_branch
      %34 = sbr.rel target = $region3
    $region8: #{precompute_text_features.1} parent=1 // loop_exit
      _
    %3490 = vsyncpa [#allocation6], 1
    %s3491 = scalar_lea.sflag [#allocation6], 1
    %3492 = vsyncpa %s3491, 1

</llo_original>
